<compile_context>
chip_gen: v7x
topology: tpu7x:2x2x1
jax: 0.10.0
libtpu: 0.0.40
codegen_flags: <defaults>
</compile_context>

<pallas_src>
import functools

import numpy as np
import jax
import jax.numpy as jnp
from jax.experimental import pallas as pl
from jax.experimental.pallas import tpu as pltpu

EPS = 1e-5   # BatchNorm2d default eps
PAD = 2      # module hard-codes padding=2


# ---------------------------------------------------------------------------
# Pass 1: conv5x5 (pad=2, no bias) + per-channel sum / sum-of-squares
# ---------------------------------------------------------------------------
def _make_conv_stats_kernel(K, Cin, Cout, H, W, Wp):
    HWp = H * Wp

    def kernel(w_ref, m_ref, x_ref, y_ref, sum_ref, ssq_ref, acc_ref):
        n = pl.program_id(0)

        @pl.when(n == 0)
        def _init():
            sum_ref[...] = jnp.zeros_like(sum_ref)
            ssq_ref[...] = jnp.zeros_like(ssq_ref)

        # 5x5 conv: one MXU contraction of depth Cin per tap.  Tap shifts are
        # static lane slices of the flattened padded input; the shifted loads
        # ride the vld slots while the MXU runs the dots.
        for kh in range(K):
            for kw in range(K):
                t = kh * K + kw
                off = kh * Wp + kw
                seg = x_ref[0, :, off:off + HWp]            # (Cin, H*Wp)
                w_tap = w_ref[:, t * Cin:(t + 1) * Cin]     # (Cout, Cin)
                contrib = jnp.dot(w_tap, seg,
                                  preferred_element_type=jnp.float32)
                if t == 0:
                    acc_ref[...] = contrib                  # init via first tap
                else:
                    acc_ref[...] += contrib

        # Zero the Wp-W garbage columns once, then stats + streamed store.
        yv = acc_ref[...] * m_ref[...]                      # (Cout, H*Wp), f32
        y_ref[0] = yv.astype(y_ref.dtype)
        sum_ref[...] += jnp.sum(yv, axis=1, keepdims=True)
        ssq_ref[...] += jnp.sum(yv * yv, axis=1, keepdims=True)

    return kernel


# ---------------------------------------------------------------------------
# Pass 2: elementwise BatchNorm(scale/shift) + ReLU + channel concat
# ---------------------------------------------------------------------------
def _make_bn_relu_cat_kernel(Cout, C2, W, has_skip):
    def kernel(*refs):
        if has_skip:
            scale_ref, shift_ref, y_ref, x2_ref, o_ref = refs
        else:
            scale_ref, shift_ref, y_ref, o_ref = refs

        y = y_ref[0, :, :, :W]                              # (Cout, TH, W) f32
        yn = jnp.maximum(y * scale_ref[...] + shift_ref[...], 0.0)
        if has_skip:
            o_ref[0, :C2] = x2_ref[0].astype(o_ref.dtype)   # skip connection
            o_ref[0, C2:C2 + Cout] = yn.astype(o_ref.dtype)
        else:
            o_ref[0] = yn.astype(o_ref.dtype)

    return kernel


def _choose_row_tile(H, Wp, target_lanes=2048):
    """Largest H-divisor row tile (multiple of 8 or full H) near ~2048 lanes."""
    if H * Wp <= target_lanes:
        return H
    cands = [th for th in range(8, H, 8) if H % th == 0 and th * Wp <= target_lanes]
    return max(cands) if cands else H


def _vmem_limit(block_bytes):
    return int(min(64 << 20, max(32 << 20, 2 * block_bytes + (4 << 20))))


# ---------------------------------------------------------------------------
# Wrapper: upsample + pad prep (structured ops) + two pallas_calls
# ---------------------------------------------------------------------------
@functools.partial(jax.jit, static_argnames=("kernel_size", "concat"))
def decoder_forward(x1, x2, w_mat, gamma, beta, *, kernel_size=5, concat=True):
    N, Cin, H1, W1 = x1.shape
    _, C2_full, H, W = x2.shape
    Cout = gamma.shape[0]
    K = kernel_size
    C2 = C2_full if concat else 0
    Ctot = C2 + Cout
    Wp = W + K - 1                 # padded width (strided-window trick)
    HP = H + K                     # padded height (+1 slack row for last tap)
    HWp = H * Wp
    out_dtype = x1.dtype
    in_isize = np.dtype(x1.dtype).itemsize

    # -- nearest upsample (matches F.interpolate mode='nearest') -------------
    if H % H1 == 0 and W % W1 == 0:
        up = jnp.repeat(jnp.repeat(x1, H // H1, axis=2), W // W1, axis=3)
    else:
        hsrc = jnp.asarray((np.arange(H) * H1) // H)
        wsrc = jnp.asarray((np.arange(W) * W1) // W)
        up = jnp.take(jnp.take(x1, hsrc, axis=2), wsrc, axis=3)

    # -- halo padding: rows (PAD, K-PAD), cols (PAD, K-1-PAD) -----------------
    xpad = jnp.pad(up, ((0, 0), (0, 0), (PAD, K - PAD), (PAD, K - 1 - PAD)))
    x_flat = xpad.reshape(N, Cin, HP * Wp)                   # free bitcast

    # valid-column mask in the (H, Wp)-flattened output layout
    vmask = jnp.asarray(((np.arange(HWp) % Wp) < W).astype(np.float32)
                        ).reshape(1, HWp)

    # ---------------------------- pass 1 ------------------------------------
    kern1 = _make_conv_stats_kernel(K, Cin, Cout, H, W, Wp)
    blk1 = (Cout * K * K * Cin * 4 + HWp * 4
            + 2 * Cin * HP * Wp * in_isize
            + 2 * Cout * HWp * 4
            + Cout * HWp * 4 + 4 * Cout * 4)
    y_flat, ssum, sssq = pl.pallas_call(
        kern1,
        out_shape=(jax.ShapeDtypeStruct((N, Cout, HWp), jnp.float32),
                   jax.ShapeDtypeStruct((Cout, 1), jnp.float32),
                   jax.ShapeDtypeStruct((Cout, 1), jnp.float32)),
        grid_spec=pltpu.PrefetchScalarGridSpec(
            num_scalar_prefetch=0,
            grid=(N,),
            in_specs=[
                pl.BlockSpec((Cout, K * K * Cin), lambda n: (0, 0)),   # weights
                pl.BlockSpec((1, HWp), lambda n: (0, 0)),              # col mask
                pl.BlockSpec((1, Cin, HP * Wp), lambda n: (n, 0, 0)),  # padded in
            ],
            out_specs=[
                pl.BlockSpec((1, Cout, HWp), lambda n: (n, 0, 0)),     # raw conv y
                pl.BlockSpec((Cout, 1), lambda n: (0, 0)),             # sum  (acc)
                pl.BlockSpec((Cout, 1), lambda n: (0, 0)),             # ssq  (acc)
            ],
            scratch_shapes=[pltpu.VMEM((Cout, HWp), jnp.float32)],     # conv acc
        ),
        compiler_params=pltpu.CompilerParams(
            dimension_semantics=("arbitrary",),   # batch = BN-stats reduction
            vmem_limit_bytes=_vmem_limit(blk1)),
    )(w_mat, vmask, x_flat)

    # -- per-channel affine from batch statistics (tiny XLA work) ------------
    cnt = jnp.float32(N * H * W)
    mean = ssum[:, 0] / cnt
    var = jnp.maximum(sssq[:, 0] / cnt - mean * mean, 0.0)   # clamp cancellation
    inv = jax.lax.rsqrt(var + jnp.float32(EPS))
    g32 = gamma.astype(jnp.float32)
    scale = (g32 * inv).reshape(Cout, 1, 1)
    shift = (beta.astype(jnp.float32) - mean * g32 * inv).reshape(Cout, 1, 1)

    # ---------------------------- pass 2 ------------------------------------
    y4 = y_flat.reshape(N, Cout, H, Wp)                      # free bitcast
    TH = _choose_row_tile(H, Wp)
    HT = H // TH
    kern2 = _make_bn_relu_cat_kernel(Cout, C2, W, concat)

    in_specs = [
        pl.BlockSpec((Cout, 1, 1), lambda n, t: (0, 0, 0)),            # scale
        pl.BlockSpec((Cout, 1, 1), lambda n, t: (0, 0, 0)),            # shift
        pl.BlockSpec((1, Cout, TH, Wp), lambda n, t: (n, 0, t, 0)),    # y tile
    ]
    inputs = [scale, shift, y4]
    if concat:
        in_specs.append(pl.BlockSpec((1, C2, TH, W), lambda n, t: (n, 0, t, 0)))
        inputs.append(x2)

    out_isize = np.dtype(out_dtype).itemsize
    blk2 = (2 * Cout * TH * Wp * 4
            + (2 * C2 * TH * W * np.dtype(x2.dtype).itemsize if concat else 0)
            + 2 * Ctot * TH * W * out_isize + 8 * Cout * 4)
    out = pl.pallas_call(
        kern2,
        out_shape=jax.ShapeDtypeStruct((N, Ctot, H, W), out_dtype),
        grid_spec=pltpu.PrefetchScalarGridSpec(
            num_scalar_prefetch=0,
            grid=(N, HT),
            in_specs=in_specs,
            out_specs=pl.BlockSpec((1, Ctot, TH, W), lambda n, t: (n, 0, t, 0)),
        ),
        compiler_params=pltpu.CompilerParams(
            dimension_semantics=("parallel", "parallel"),
            vmem_limit_bytes=_vmem_limit(blk2)),
    )(*inputs)

    return out


class DecoderLayerPallas:
    """Pallas TPU DecoderLayer: Conv2d(k=5, p=2, no bias) -> BN -> ReLU (+ concat)."""

    def __init__(self, input_channel, output_channel, kernel_size=5, key=None):
        assert kernel_size == 5, "module is defined for kernel_size=5 (padding=2)"
        if key is None:
            key = jax.random.PRNGKey(0)
        fan_in = input_channel * kernel_size * kernel_size
        bound = (1.0 / fan_in) ** 0.5
        # PyTorch Conv2d weight layout (Cout, Cin, kH, kW); synthetic init.
        self.w = jax.random.uniform(
            key, (output_channel, input_channel, kernel_size, kernel_size),
            minval=-bound, maxval=bound, dtype=jnp.float32)
        # Kernel-friendly layout: (Cout, kH*kW*Cin), taps ordered (kh, kw, ci).
        self.w_mat = jnp.transpose(self.w, (0, 2, 3, 1)).reshape(
            output_channel, kernel_size * kernel_size * input_channel)
        self.gamma = jnp.ones((output_channel,), jnp.float32)  # BN weight init
        self.beta = jnp.zeros((output_channel,), jnp.float32)  # BN bias init
        self.kernel_size = kernel_size

    def __call__(self, x1, x2, concat=True):
        # x1: (N, Cin, H1, W1), x2: (N, C2, H2, W2)  -- NCHW like PyTorch
        return decoder_forward(x1, x2, self.w_mat, self.gamma, self.beta,
                               kernel_size=self.kernel_size, concat=concat)


# ---------------------------------------------------------------------------
# Pure-JAX reference (no Pallas) for a correctness sanity check
# ---------------------------------------------------------------------------
def decoder_reference(x1, x2, w_oihw, gamma, beta, concat=True, eps=EPS):
    N, Cin, H1, W1 = x1.shape
    H, W = x2.shape[2], x2.shape[3]
    hsrc = (jnp.arange(H) * H1) // H
    wsrc = (jnp.arange(W) * W1) // W
    u = x1[:, :, hsrc[:, None], wsrc[None, :]]
    y = jax.lax.conv_general_dilated(
        u, w_oihw, window_strides=(1, 1), padding=((2, 2), (2, 2)),
        dimension_numbers=("NCHW", "OIHW", "NCHW"))
    mean = jnp.mean(y, axis=(0, 2, 3), keepdims=True)
    var = jnp.mean((y - mean) ** 2, axis=(0, 2, 3), keepdims=True)
    yn = (y - mean) / jnp.sqrt(var + eps) * gamma.reshape(1, -1, 1, 1) \
        + beta.reshape(1, -1, 1, 1)
    yr = jnp.maximum(yn, 0.0)
    return jnp.concatenate([x2, yr], axis=1) if concat else yr


if __name__ == "__main__":
    key = jax.random.PRNGKey(0)
    k1, k2, k3 = jax.random.split(key, 3)

    N, Cin, Cout = 2, 4, 8
    x1 = jax.random.normal(k1, (N, Cin, 8, 8), jnp.float32)      # low-res features
    x2 = jax.random.normal(k2, (N, Cout, 16, 16), jnp.float32)   # skip connection

    layer = DecoderLayerPallas(Cin, Cout, kernel_size=5, key=k3)
    out = layer(x1, x2, concat=True)
    out = jax.block_until_ready(out)

    assert out.shape == (N, Cout + Cout, 16, 16), out.shape
    assert bool(jnp.all(jnp.isfinite(out)))

    ref = decoder_reference(x1, x2, layer.w, layer.gamma, layer.beta, concat=True)
    err = float(jnp.max(jnp.abs(out - ref)))
    # Tolerance allows for MXU default-precision f32 matmul (bf16 passes).
    assert err < 2e-2, f"max abs err vs reference = {err}"
    print("KERNEL_OK")
</pallas_src>

<mosaic_0001>
module attributes {stable_mosaic.version = 11 : i64} {
  func.func @kernel(%arg0: i32, %arg1: memref<8x100xf32, #tpu.memory_space<vmem>>, %arg2: memref<1x320xf32, #tpu.memory_space<vmem>>, %arg3: memref<1x4x420xf32, #tpu.memory_space<vmem>>, %arg4: memref<1x8x320xf32, #tpu.memory_space<vmem>>, %arg5: memref<8x1xf32, #tpu.memory_space<vmem>>, %arg6: memref<8x1xf32, #tpu.memory_space<vmem>>, %arg7: memref<8x320xf32, #tpu.memory_space<vmem>>) attributes {dimension_semantics = [#tpu.dimension_semantics<arbitrary>], iteration_bounds = array<i64: 2>, scalar_prefetch = 0 : i64, scratch_operands = 1 : i64, tpu.core_type = #tpu.core_type<tc>, window_params = [{pipeline_mode = #tpu.pipeline_mode<synchronous>, transform_indices = @transform_0, window_bounds = array<i64: 8, 100>}, {pipeline_mode = #tpu.pipeline_mode<synchronous>, transform_indices = @transform_1, window_bounds = array<i64: 1, 320>}, {transform_indices = @transform_2, window_bounds = array<i64: 1, 4, 420>}, {transform_indices = @transform_3, window_bounds = array<i64: 1, 8, 320>}, {pipeline_mode = #tpu.pipeline_mode<synchronous>, transform_indices = @transform_4, window_bounds = array<i64: 8, 1>}, {pipeline_mode = #tpu.pipeline_mode<synchronous>, transform_indices = @transform_5, window_bounds = array<i64: 8, 1>}]} {
    %c0_i32 = arith.constant 0 : i32
    %0 = arith.cmpi eq, %arg0, %c0_i32 : i32
    %1 = arith.extui %0 : i1 to i32
    %c0_i32_0 = arith.constant 0 : i32
    %2 = arith.cmpi ne, %1, %c0_i32_0 : i32
    scf.if %2 {
      %cst_225 = arith.constant 0.000000e+00 : f32
      %194 = vector.broadcast %cst_225 : f32 to vector<8x1xf32>
      %c0_226 = arith.constant 0 : index
      %c0_227 = arith.constant 0 : index
      %195 = vector.load %arg5[%c0_226, %c0_227] : memref<8x1xf32, #tpu.memory_space<vmem>>, vector<8x1xf32>
      tpu.vector_store %arg5[%c0_226, %c0_227], %194 {strides = array<i32>} : memref<8x1xf32, #tpu.memory_space<vmem>>, vector<8x1xf32>,
      %cst_228 = arith.constant 0.000000e+00 : f32
      %196 = vector.broadcast %cst_228 : f32 to vector<8x1xf32>
      %c0_229 = arith.constant 0 : index
      %c0_230 = arith.constant 0 : index
      %197 = vector.load %arg6[%c0_229, %c0_230] : memref<8x1xf32, #tpu.memory_space<vmem>>, vector<8x1xf32>
      tpu.vector_store %arg6[%c0_229, %c0_230], %196 {strides = array<i32>} : memref<8x1xf32, #tpu.memory_space<vmem>>, vector<8x1xf32>,
    } else {
    }
    %c0 = arith.constant 0 : index
    %c0_1 = arith.constant 0 : index
    %c0_2 = arith.constant 0 : index
    %3 = vector.load %arg3[%c0, %c0_1, %c0_2] : memref<1x4x420xf32, #tpu.memory_space<vmem>>, vector<1x4x320xf32>
    %4 = vector.shape_cast %3 : vector<1x4x320xf32> to vector<4x320xf32>
    %c0_3 = arith.constant 0 : index
    %c0_4 = arith.constant 0 : index
    %5 = vector.load %arg1[%c0_3, %c0_4] : memref<8x100xf32, #tpu.memory_space<vmem>>, vector<8x4xf32>
    %cst = arith.constant dense<0.000000e+00> : vector<8x320xf32>
    %6 = tpu.matmul %5, %4, %cst {dimension_numbers = #tpu.dot_dimension_numbers<[1], [0], [0], [1], [0, 0, 1, 1], [], []>} : vector<8x4xf32>, vector<4x320xf32>, vector<8x320xf32> -> vector<8x320xf32>
    %c0_5 = arith.constant 0 : index
    %c0_6 = arith.constant 0 : index
    %7 = vector.load %arg7[%c0_5, %c0_6] : memref<8x320xf32, #tpu.memory_space<vmem>>, vector<8x320xf32>
    tpu.vector_store %arg7[%c0_5, %c0_6], %6 {strides = array<i32>} : memref<8x320xf32, #tpu.memory_space<vmem>>, vector<8x320xf32>,
    %c0_7 = arith.constant 0 : index
    %c0_8 = arith.constant 0 : index
    %c1 = arith.constant 1 : index
    %8 = vector.load %arg3[%c0_7, %c0_8, %c1] : memref<1x4x420xf32, #tpu.memory_space<vmem>>, vector<1x4x320xf32>
    %9 = vector.shape_cast %8 : vector<1x4x320xf32> to vector<4x320xf32>
    %c0_9 = arith.constant 0 : index
    %c4 = arith.constant 4 : index
    %10 = vector.load %arg1[%c0_9, %c4] : memref<8x100xf32, #tpu.memory_space<vmem>>, vector<8x4xf32>
    %cst_10 = arith.constant dense<0.000000e+00> : vector<8x320xf32>
    %11 = tpu.matmul %10, %9, %cst_10 {dimension_numbers = #tpu.dot_dimension_numbers<[1], [0], [0], [1], [0, 0, 1, 1], [], []>} : vector<8x4xf32>, vector<4x320xf32>, vector<8x320xf32> -> vector<8x320xf32>
    %c0_11 = arith.constant 0 : index
    %c0_12 = arith.constant 0 : index
    %12 = vector.load %arg7[%c0_11, %c0_12] : memref<8x320xf32, #tpu.memory_space<vmem>>, vector<8x320xf32>
    %13 = arith.addf %12, %11 : vector<8x320xf32>
    %c0_13 = arith.constant 0 : index
    %c0_14 = arith.constant 0 : index
    %14 = vector.load %arg7[%c0_13, %c0_14] : memref<8x320xf32, #tpu.memory_space<vmem>>, vector<8x320xf32>
    tpu.vector_store %arg7[%c0_13, %c0_14], %13 {strides = array<i32>} : memref<8x320xf32, #tpu.memory_space<vmem>>, vector<8x320xf32>,
    %c0_15 = arith.constant 0 : index
    %c0_16 = arith.constant 0 : index
    %c2 = arith.constant 2 : index
    %15 = vector.load %arg3[%c0_15, %c0_16, %c2] : memref<1x4x420xf32, #tpu.memory_space<vmem>>, vector<1x4x320xf32>
    %16 = vector.shape_cast %15 : vector<1x4x320xf32> to vector<4x320xf32>
    %c0_17 = arith.constant 0 : index
    %c8 = arith.constant 8 : index
    %17 = vector.load %arg1[%c0_17, %c8] : memref<8x100xf32, #tpu.memory_space<vmem>>, vector<8x4xf32>
    %cst_18 = arith.constant dense<0.000000e+00> : vector<8x320xf32>
    %18 = tpu.matmul %17, %16, %cst_18 {dimension_numbers = #tpu.dot_dimension_numbers<[1], [0], [0], [1], [0, 0, 1, 1], [], []>} : vector<8x4xf32>, vector<4x320xf32>, vector<8x320xf32> -> vector<8x320xf32>
    %c0_19 = arith.constant 0 : index
    %c0_20 = arith.constant 0 : index
    %19 = vector.load %arg7[%c0_19, %c0_20] : memref<8x320xf32, #tpu.memory_space<vmem>>, vector<8x320xf32>
    %20 = arith.addf %19, %18 : vector<8x320xf32>
    %c0_21 = arith.constant 0 : index
    %c0_22 = arith.constant 0 : index
    %21 = vector.load %arg7[%c0_21, %c0_22] : memref<8x320xf32, #tpu.memory_space<vmem>>, vector<8x320xf32>
    tpu.vector_store %arg7[%c0_21, %c0_22], %20 {strides = array<i32>} : memref<8x320xf32, #tpu.memory_space<vmem>>, vector<8x320xf32>,
    %c0_23 = arith.constant 0 : index
    %c0_24 = arith.constant 0 : index
    %c3 = arith.constant 3 : index
    %22 = vector.load %arg3[%c0_23, %c0_24, %c3] : memref<1x4x420xf32, #tpu.memory_space<vmem>>, vector<1x4x320xf32>
    %23 = vector.shape_cast %22 : vector<1x4x320xf32> to vector<4x320xf32>
    %c0_25 = arith.constant 0 : index
    %c12 = arith.constant 12 : index
    %24 = vector.load %arg1[%c0_25, %c12] : memref<8x100xf32, #tpu.memory_space<vmem>>, vector<8x4xf32>
    %cst_26 = arith.constant dense<0.000000e+00> : vector<8x320xf32>
    %25 = tpu.matmul %24, %23, %cst_26 {dimension_numbers = #tpu.dot_dimension_numbers<[1], [0], [0], [1], [0, 0, 1, 1], [], []>} : vector<8x4xf32>, vector<4x320xf32>, vector<8x320xf32> -> vector<8x320xf32>
    %c0_27 = arith.constant 0 : index
    %c0_28 = arith.constant 0 : index
    %26 = vector.load %arg7[%c0_27, %c0_28] : memref<8x320xf32, #tpu.memory_space<vmem>>, vector<8x320xf32>
    %27 = arith.addf %26, %25 : vector<8x320xf32>
    %c0_29 = arith.constant 0 : index
    %c0_30 = arith.constant 0 : index
    %28 = vector.load %arg7[%c0_29, %c0_30] : memref<8x320xf32, #tpu.memory_space<vmem>>, vector<8x320xf32>
    tpu.vector_store %arg7[%c0_29, %c0_30], %27 {strides = array<i32>} : memref<8x320xf32, #tpu.memory_space<vmem>>, vector<8x320xf32>,
    %c0_31 = arith.constant 0 : index
    %c0_32 = arith.constant 0 : index
    %c4_33 = arith.constant 4 : index
    %29 = vector.load %arg3[%c0_31, %c0_32, %c4_33] : memref<1x4x420xf32, #tpu.memory_space<vmem>>, vector<1x4x320xf32>
    %30 = vector.shape_cast %29 : vector<1x4x320xf32> to vector<4x320xf32>
    %c0_34 = arith.constant 0 : index
    %c16 = arith.constant 16 : index
    %31 = vector.load %arg1[%c0_34, %c16] : memref<8x100xf32, #tpu.memory_space<vmem>>, vector<8x4xf32>
    %cst_35 = arith.constant dense<0.000000e+00> : vector<8x320xf32>
    %32 = tpu.matmul %31, %30, %cst_35 {dimension_numbers = #tpu.dot_dimension_numbers<[1], [0], [0], [1], [0, 0, 1, 1], [], []>} : vector<8x4xf32>, vector<4x320xf32>, vector<8x320xf32> -> vector<8x320xf32>
    %c0_36 = arith.constant 0 : index
    %c0_37 = arith.constant 0 : index
    %33 = vector.load %arg7[%c0_36, %c0_37] : memref<8x320xf32, #tpu.memory_space<vmem>>, vector<8x320xf32>
    %34 = arith.addf %33, %32 : vector<8x320xf32>
    %c0_38 = arith.constant 0 : index
    %c0_39 = arith.constant 0 : index
    %35 = vector.load %arg7[%c0_38, %c0_39] : memref<8x320xf32, #tpu.memory_space<vmem>>, vector<8x320xf32>
    tpu.vector_store %arg7[%c0_38, %c0_39], %34 {strides = array<i32>} : memref<8x320xf32, #tpu.memory_space<vmem>>, vector<8x320xf32>,
    %c0_40 = arith.constant 0 : index
    %c0_41 = arith.constant 0 : index
    %c20 = arith.constant 20 : index
    %36 = vector.load %arg3[%c0_40, %c0_41, %c20] : memref<1x4x420xf32, #tpu.memory_space<vmem>>, vector<1x4x320xf32>
    %37 = vector.shape_cast %36 : vector<1x4x320xf32> to vector<4x320xf32>
    %c0_42 = arith.constant 0 : index
    %c20_43 = arith.constant 20 : index
    %38 = vector.load %arg1[%c0_42, %c20_43] : memref<8x100xf32, #tpu.memory_space<vmem>>, vector<8x4xf32>
    %cst_44 = arith.constant dense<0.000000e+00> : vector<8x320xf32>
    %39 = tpu.matmul %38, %37, %cst_44 {dimension_numbers = #tpu.dot_dimension_numbers<[1], [0], [0], [1], [0, 0, 1, 1], [], []>} : vector<8x4xf32>, vector<4x320xf32>, vector<8x320xf32> -> vector<8x320xf32>
    %c0_45 = arith.constant 0 : index
    %c0_46 = arith.constant 0 : index
    %40 = vector.load %arg7[%c0_45, %c0_46] : memref<8x320xf32, #tpu.memory_space<vmem>>, vector<8x320xf32>
    %41 = arith.addf %40, %39 : vector<8x320xf32>
    %c0_47 = arith.constant 0 : index
    %c0_48 = arith.constant 0 : index
    %42 = vector.load %arg7[%c0_47, %c0_48] : memref<8x320xf32, #tpu.memory_space<vmem>>, vector<8x320xf32>
    tpu.vector_store %arg7[%c0_47, %c0_48], %41 {strides = array<i32>} : memref<8x320xf32, #tpu.memory_space<vmem>>, vector<8x320xf32>,
    %c0_49 = arith.constant 0 : index
    %c0_50 = arith.constant 0 : index
    %c21 = arith.constant 21 : index
    %43 = vector.load %arg3[%c0_49, %c0_50, %c21] : memref<1x4x420xf32, #tpu.memory_space<vmem>>, vector<1x4x320xf32>
    %44 = vector.shape_cast %43 : vector<1x4x320xf32> to vector<4x320xf32>
    %c0_51 = arith.constant 0 : index
    %c24 = arith.constant 24 : index
    %45 = vector.load %arg1[%c0_51, %c24] : memref<8x100xf32, #tpu.memory_space<vmem>>, vector<8x4xf32>
    %cst_52 = arith.constant dense<0.000000e+00> : vector<8x320xf32>
    %46 = tpu.matmul %45, %44, %cst_52 {dimension_numbers = #tpu.dot_dimension_numbers<[1], [0], [0], [1], [0, 0, 1, 1], [], []>} : vector<8x4xf32>, vector<4x320xf32>, vector<8x320xf32> -> vector<8x320xf32>
    %c0_53 = arith.constant 0 : index
    %c0_54 = arith.constant 0 : index
    %47 = vector.load %arg7[%c0_53, %c0_54] : memref<8x320xf32, #tpu.memory_space<vmem>>, vector<8x320xf32>
    %48 = arith.addf %47, %46 : vector<8x320xf32>
    %c0_55 = arith.constant 0 : index
    %c0_56 = arith.constant 0 : index
    %49 = vector.load %arg7[%c0_55, %c0_56] : memref<8x320xf32, #tpu.memory_space<vmem>>, vector<8x320xf32>
    tpu.vector_store %arg7[%c0_55, %c0_56], %48 {strides = array<i32>} : memref<8x320xf32, #tpu.memory_space<vmem>>, vector<8x320xf32>,
    %c0_57 = arith.constant 0 : index
    %c0_58 = arith.constant 0 : index
    %c22 = arith.constant 22 : index
    %50 = vector.load %arg3[%c0_57, %c0_58, %c22] : memref<1x4x420xf32, #tpu.memory_space<vmem>>, vector<1x4x320xf32>
    %51 = vector.shape_cast %50 : vector<1x4x320xf32> to vector<4x320xf32>
    %c0_59 = arith.constant 0 : index
    %c28 = arith.constant 28 : index
    %52 = vector.load %arg1[%c0_59, %c28] : memref<8x100xf32, #tpu.memory_space<vmem>>, vector<8x4xf32>
    %cst_60 = arith.constant dense<0.000000e+00> : vector<8x320xf32>
    %53 = tpu.matmul %52, %51, %cst_60 {dimension_numbers = #tpu.dot_dimension_numbers<[1], [0], [0], [1], [0, 0, 1, 1], [], []>} : vector<8x4xf32>, vector<4x320xf32>, vector<8x320xf32> -> vector<8x320xf32>
    %c0_61 = arith.constant 0 : index
    %c0_62 = arith.constant 0 : index
    %54 = vector.load %arg7[%c0_61, %c0_62] : memref<8x320xf32, #tpu.memory_space<vmem>>, vector<8x320xf32>
    %55 = arith.addf %54, %53 : vector<8x320xf32>
    %c0_63 = arith.constant 0 : index
    %c0_64 = arith.constant 0 : index
    %56 = vector.load %arg7[%c0_63, %c0_64] : memref<8x320xf32, #tpu.memory_space<vmem>>, vector<8x320xf32>
    tpu.vector_store %arg7[%c0_63, %c0_64], %55 {strides = array<i32>} : memref<8x320xf32, #tpu.memory_space<vmem>>, vector<8x320xf32>,
    %c0_65 = arith.constant 0 : index
    %c0_66 = arith.constant 0 : index
    %c23 = arith.constant 23 : index
    %57 = vector.load %arg3[%c0_65, %c0_66, %c23] : memref<1x4x420xf32, #tpu.memory_space<vmem>>, vector<1x4x320xf32>
    %58 = vector.shape_cast %57 : vector<1x4x320xf32> to vector<4x320xf32>
    %c0_67 = arith.constant 0 : index
    %c32 = arith.constant 32 : index
    %59 = vector.load %arg1[%c0_67, %c32] : memref<8x100xf32, #tpu.memory_space<vmem>>, vector<8x4xf32>
    %cst_68 = arith.constant dense<0.000000e+00> : vector<8x320xf32>
    %60 = tpu.matmul %59, %58, %cst_68 {dimension_numbers = #tpu.dot_dimension_numbers<[1], [0], [0], [1], [0, 0, 1, 1], [], []>} : vector<8x4xf32>, vector<4x320xf32>, vector<8x320xf32> -> vector<8x320xf32>
    %c0_69 = arith.constant 0 : index
    %c0_70 = arith.constant 0 : index
    %61 = vector.load %arg7[%c0_69, %c0_70] : memref<8x320xf32, #tpu.memory_space<vmem>>, vector<8x320xf32>
    %62 = arith.addf %61, %60 : vector<8x320xf32>
    %c0_71 = arith.constant 0 : index
    %c0_72 = arith.constant 0 : index
    %63 = vector.load %arg7[%c0_71, %c0_72] : memref<8x320xf32, #tpu.memory_space<vmem>>, vector<8x320xf32>
    tpu.vector_store %arg7[%c0_71, %c0_72], %62 {strides = array<i32>} : memref<8x320xf32, #tpu.memory_space<vmem>>, vector<8x320xf32>,
    %c0_73 = arith.constant 0 : index
    %c0_74 = arith.constant 0 : index
    %c24_75 = arith.constant 24 : index
    %64 = vector.load %arg3[%c0_73, %c0_74, %c24_75] : memref<1x4x420xf32, #tpu.memory_space<vmem>>, vector<1x4x320xf32>
    %65 = vector.shape_cast %64 : vector<1x4x320xf32> to vector<4x320xf32>
    %c0_76 = arith.constant 0 : index
    %c36 = arith.constant 36 : index
    %66 = vector.load %arg1[%c0_76, %c36] : memref<8x100xf32, #tpu.memory_space<vmem>>, vector<8x4xf32>
    %cst_77 = arith.constant dense<0.000000e+00> : vector<8x320xf32>
    %67 = tpu.matmul %66, %65, %cst_77 {dimension_numbers = #tpu.dot_dimension_numbers<[1], [0], [0], [1], [0, 0, 1, 1], [], []>} : vector<8x4xf32>, vector<4x320xf32>, vector<8x320xf32> -> vector<8x320xf32>
    %c0_78 = arith.constant 0 : index
    %c0_79 = arith.constant 0 : index
    %68 = vector.load %arg7[%c0_78, %c0_79] : memref<8x320xf32, #tpu.memory_space<vmem>>, vector<8x320xf32>
    %69 = arith.addf %68, %67 : vector<8x320xf32>
    %c0_80 = arith.constant 0 : index
    %c0_81 = arith.constant 0 : index
    %70 = vector.load %arg7[%c0_80, %c0_81] : memref<8x320xf32, #tpu.memory_space<vmem>>, vector<8x320xf32>
    tpu.vector_store %arg7[%c0_80, %c0_81], %69 {strides = array<i32>} : memref<8x320xf32, #tpu.memory_space<vmem>>, vector<8x320xf32>,
    %c0_82 = arith.constant 0 : index
    %c0_83 = arith.constant 0 : index
    %c40 = arith.constant 40 : index
    %71 = vector.load %arg3[%c0_82, %c0_83, %c40] : memref<1x4x420xf32, #tpu.memory_space<vmem>>, vector<1x4x320xf32>
    %72 = vector.shape_cast %71 : vector<1x4x320xf32> to vector<4x320xf32>
    %c0_84 = arith.constant 0 : index
    %c40_85 = arith.constant 40 : index
    %73 = vector.load %arg1[%c0_84, %c40_85] : memref<8x100xf32, #tpu.memory_space<vmem>>, vector<8x4xf32>
    %cst_86 = arith.constant dense<0.000000e+00> : vector<8x320xf32>
    %74 = tpu.matmul %73, %72, %cst_86 {dimension_numbers = #tpu.dot_dimension_numbers<[1], [0], [0], [1], [0, 0, 1, 1], [], []>} : vector<8x4xf32>, vector<4x320xf32>, vector<8x320xf32> -> vector<8x320xf32>
    %c0_87 = arith.constant 0 : index
    %c0_88 = arith.constant 0 : index
    %75 = vector.load %arg7[%c0_87, %c0_88] : memref<8x320xf32, #tpu.memory_space<vmem>>, vector<8x320xf32>
    %76 = arith.addf %75, %74 : vector<8x320xf32>
    %c0_89 = arith.constant 0 : index
    %c0_90 = arith.constant 0 : index
    %77 = vector.load %arg7[%c0_89, %c0_90] : memref<8x320xf32, #tpu.memory_space<vmem>>, vector<8x320xf32>
    tpu.vector_store %arg7[%c0_89, %c0_90], %76 {strides = array<i32>} : memref<8x320xf32, #tpu.memory_space<vmem>>, vector<8x320xf32>,
    %c0_91 = arith.constant 0 : index
    %c0_92 = arith.constant 0 : index
    %c41 = arith.constant 41 : index
    %78 = vector.load %arg3[%c0_91, %c0_92, %c41] : memref<1x4x420xf32, #tpu.memory_space<vmem>>, vector<1x4x320xf32>
    %79 = vector.shape_cast %78 : vector<1x4x320xf32> to vector<4x320xf32>
    %c0_93 = arith.constant 0 : index
    %c44 = arith.constant 44 : index
    %80 = vector.load %arg1[%c0_93, %c44] : memref<8x100xf32, #tpu.memory_space<vmem>>, vector<8x4xf32>
    %cst_94 = arith.constant dense<0.000000e+00> : vector<8x320xf32>
    %81 = tpu.matmul %80, %79, %cst_94 {dimension_numbers = #tpu.dot_dimension_numbers<[1], [0], [0], [1], [0, 0, 1, 1], [], []>} : vector<8x4xf32>, vector<4x320xf32>, vector<8x320xf32> -> vector<8x320xf32>
    %c0_95 = arith.constant 0 : index
    %c0_96 = arith.constant 0 : index
    %82 = vector.load %arg7[%c0_95, %c0_96] : memref<8x320xf32, #tpu.memory_space<vmem>>, vector<8x320xf32>
    %83 = arith.addf %82, %81 : vector<8x320xf32>
    %c0_97 = arith.constant 0 : index
    %c0_98 = arith.constant 0 : index
    %84 = vector.load %arg7[%c0_97, %c0_98] : memref<8x320xf32, #tpu.memory_space<vmem>>, vector<8x320xf32>
    tpu.vector_store %arg7[%c0_97, %c0_98], %83 {strides = array<i32>} : memref<8x320xf32, #tpu.memory_space<vmem>>, vector<8x320xf32>,
    %c0_99 = arith.constant 0 : index
    %c0_100 = arith.constant 0 : index
    %c42 = arith.constant 42 : index
    %85 = vector.load %arg3[%c0_99, %c0_100, %c42] : memref<1x4x420xf32, #tpu.memory_space<vmem>>, vector<1x4x320xf32>
    %86 = vector.shape_cast %85 : vector<1x4x320xf32> to vector<4x320xf32>
    %c0_101 = arith.constant 0 : index
    %c48 = arith.constant 48 : index
    %87 = vector.load %arg1[%c0_101, %c48] : memref<8x100xf32, #tpu.memory_space<vmem>>, vector<8x4xf32>
    %cst_102 = arith.constant dense<0.000000e+00> : vector<8x320xf32>
    %88 = tpu.matmul %87, %86, %cst_102 {dimension_numbers = #tpu.dot_dimension_numbers<[1], [0], [0], [1], [0, 0, 1, 1], [], []>} : vector<8x4xf32>, vector<4x320xf32>, vector<8x320xf32> -> vector<8x320xf32>
    %c0_103 = arith.constant 0 : index
    %c0_104 = arith.constant 0 : index
    %89 = vector.load %arg7[%c0_103, %c0_104] : memref<8x320xf32, #tpu.memory_space<vmem>>, vector<8x320xf32>
    %90 = arith.addf %89, %88 : vector<8x320xf32>
    %c0_105 = arith.constant 0 : index
    %c0_106 = arith.constant 0 : index
    %91 = vector.load %arg7[%c0_105, %c0_106] : memref<8x320xf32, #tpu.memory_space<vmem>>, vector<8x320xf32>
    tpu.vector_store %arg7[%c0_105, %c0_106], %90 {strides = array<i32>} : memref<8x320xf32, #tpu.memory_space<vmem>>, vector<8x320xf32>,
    %c0_107 = arith.constant 0 : index
    %c0_108 = arith.constant 0 : index
    %c43 = arith.constant 43 : index
    %92 = vector.load %arg3[%c0_107, %c0_108, %c43] : memref<1x4x420xf32, #tpu.memory_space<vmem>>, vector<1x4x320xf32>
    %93 = vector.shape_cast %92 : vector<1x4x320xf32> to vector<4x320xf32>
    %c0_109 = arith.constant 0 : index
    %c52 = arith.constant 52 : index
    %94 = vector.load %arg1[%c0_109, %c52] : memref<8x100xf32, #tpu.memory_space<vmem>>, vector<8x4xf32>
    %cst_110 = arith.constant dense<0.000000e+00> : vector<8x320xf32>
    %95 = tpu.matmul %94, %93, %cst_110 {dimension_numbers = #tpu.dot_dimension_numbers<[1], [0], [0], [1], [0, 0, 1, 1], [], []>} : vector<8x4xf32>, vector<4x320xf32>, vector<8x320xf32> -> vector<8x320xf32>
    %c0_111 = arith.constant 0 : index
    %c0_112 = arith.constant 0 : index
    %96 = vector.load %arg7[%c0_111, %c0_112] : memref<8x320xf32, #tpu.memory_space<vmem>>, vector<8x320xf32>
    %97 = arith.addf %96, %95 : vector<8x320xf32>
    %c0_113 = arith.constant 0 : index
    %c0_114 = arith.constant 0 : index
    %98 = vector.load %arg7[%c0_113, %c0_114] : memref<8x320xf32, #tpu.memory_space<vmem>>, vector<8x320xf32>
    tpu.vector_store %arg7[%c0_113, %c0_114], %97 {strides = array<i32>} : memref<8x320xf32, #tpu.memory_space<vmem>>, vector<8x320xf32>,
    %c0_115 = arith.constant 0 : index
    %c0_116 = arith.constant 0 : index
    %c44_117 = arith.constant 44 : index
    %99 = vector.load %arg3[%c0_115, %c0_116, %c44_117] : memref<1x4x420xf32, #tpu.memory_space<vmem>>, vector<1x4x320xf32>
    %100 = vector.shape_cast %99 : vector<1x4x320xf32> to vector<4x320xf32>
    %c0_118 = arith.constant 0 : index
    %c56 = arith.constant 56 : index
    %101 = vector.load %arg1[%c0_118, %c56] : memref<8x100xf32, #tpu.memory_space<vmem>>, vector<8x4xf32>
    %cst_119 = arith.constant dense<0.000000e+00> : vector<8x320xf32>
    %102 = tpu.matmul %101, %100, %cst_119 {dimension_numbers = #tpu.dot_dimension_numbers<[1], [0], [0], [1], [0, 0, 1, 1], [], []>} : vector<8x4xf32>, vector<4x320xf32>, vector<8x320xf32> -> vector<8x320xf32>
    %c0_120 = arith.constant 0 : index
    %c0_121 = arith.constant 0 : index
    %103 = vector.load %arg7[%c0_120, %c0_121] : memref<8x320xf32, #tpu.memory_space<vmem>>, vector<8x320xf32>
    %104 = arith.addf %103, %102 : vector<8x320xf32>
    %c0_122 = arith.constant 0 : index
    %c0_123 = arith.constant 0 : index
    %105 = vector.load %arg7[%c0_122, %c0_123] : memref<8x320xf32, #tpu.memory_space<vmem>>, vector<8x320xf32>
    tpu.vector_store %arg7[%c0_122, %c0_123], %104 {strides = array<i32>} : memref<8x320xf32, #tpu.memory_space<vmem>>, vector<8x320xf32>,
    %c0_124 = arith.constant 0 : index
    %c0_125 = arith.constant 0 : index
    %c60 = arith.constant 60 : index
    %106 = vector.load %arg3[%c0_124, %c0_125, %c60] : memref<1x4x420xf32, #tpu.memory_space<vmem>>, vector<1x4x320xf32>
    %107 = vector.shape_cast %106 : vector<1x4x320xf32> to vector<4x320xf32>
    %c0_126 = arith.constant 0 : index
    %c60_127 = arith.constant 60 : index
    %108 = vector.load %arg1[%c0_126, %c60_127] : memref<8x100xf32, #tpu.memory_space<vmem>>, vector<8x4xf32>
    %cst_128 = arith.constant dense<0.000000e+00> : vector<8x320xf32>
    %109 = tpu.matmul %108, %107, %cst_128 {dimension_numbers = #tpu.dot_dimension_numbers<[1], [0], [0], [1], [0, 0, 1, 1], [], []>} : vector<8x4xf32>, vector<4x320xf32>, vector<8x320xf32> -> vector<8x320xf32>
    %c0_129 = arith.constant 0 : index
    %c0_130 = arith.constant 0 : index
    %110 = vector.load %arg7[%c0_129, %c0_130] : memref<8x320xf32, #tpu.memory_space<vmem>>, vector<8x320xf32>
    %111 = arith.addf %110, %109 : vector<8x320xf32>
    %c0_131 = arith.constant 0 : index
    %c0_132 = arith.constant 0 : index
    %112 = vector.load %arg7[%c0_131, %c0_132] : memref<8x320xf32, #tpu.memory_space<vmem>>, vector<8x320xf32>
    tpu.vector_store %arg7[%c0_131, %c0_132], %111 {strides = array<i32>} : memref<8x320xf32, #tpu.memory_space<vmem>>, vector<8x320xf32>,
    %c0_133 = arith.constant 0 : index
    %c0_134 = arith.constant 0 : index
    %c61 = arith.constant 61 : index
    %113 = vector.load %arg3[%c0_133, %c0_134, %c61] : memref<1x4x420xf32, #tpu.memory_space<vmem>>, vector<1x4x320xf32>
    %114 = vector.shape_cast %113 : vector<1x4x320xf32> to vector<4x320xf32>
    %c0_135 = arith.constant 0 : index
    %c64 = arith.constant 64 : index
    %115 = vector.load %arg1[%c0_135, %c64] : memref<8x100xf32, #tpu.memory_space<vmem>>, vector<8x4xf32>
    %cst_136 = arith.constant dense<0.000000e+00> : vector<8x320xf32>
    %116 = tpu.matmul %115, %114, %cst_136 {dimension_numbers = #tpu.dot_dimension_numbers<[1], [0], [0], [1], [0, 0, 1, 1], [], []>} : vector<8x4xf32>, vector<4x320xf32>, vector<8x320xf32> -> vector<8x320xf32>
    %c0_137 = arith.constant 0 : index
    %c0_138 = arith.constant 0 : index
    %117 = vector.load %arg7[%c0_137, %c0_138] : memref<8x320xf32, #tpu.memory_space<vmem>>, vector<8x320xf32>
    %118 = arith.addf %117, %116 : vector<8x320xf32>
    %c0_139 = arith.constant 0 : index
    %c0_140 = arith.constant 0 : index
    %119 = vector.load %arg7[%c0_139, %c0_140] : memref<8x320xf32, #tpu.memory_space<vmem>>, vector<8x320xf32>
    tpu.vector_store %arg7[%c0_139, %c0_140], %118 {strides = array<i32>} : memref<8x320xf32, #tpu.memory_space<vmem>>, vector<8x320xf32>,
    %c0_141 = arith.constant 0 : index
    %c0_142 = arith.constant 0 : index
    %c62 = arith.constant 62 : index
    %120 = vector.load %arg3[%c0_141, %c0_142, %c62] : memref<1x4x420xf32, #tpu.memory_space<vmem>>, vector<1x4x320xf32>
    %121 = vector.shape_cast %120 : vector<1x4x320xf32> to vector<4x320xf32>
    %c0_143 = arith.constant 0 : index
    %c68 = arith.constant 68 : index
    %122 = vector.load %arg1[%c0_143, %c68] : memref<8x100xf32, #tpu.memory_space<vmem>>, vector<8x4xf32>
    %cst_144 = arith.constant dense<0.000000e+00> : vector<8x320xf32>
    %123 = tpu.matmul %122, %121, %cst_144 {dimension_numbers = #tpu.dot_dimension_numbers<[1], [0], [0], [1], [0, 0, 1, 1], [], []>} : vector<8x4xf32>, vector<4x320xf32>, vector<8x320xf32> -> vector<8x320xf32>
    %c0_145 = arith.constant 0 : index
    %c0_146 = arith.constant 0 : index
    %124 = vector.load %arg7[%c0_145, %c0_146] : memref<8x320xf32, #tpu.memory_space<vmem>>, vector<8x320xf32>
    %125 = arith.addf %124, %123 : vector<8x320xf32>
    %c0_147 = arith.constant 0 : index
    %c0_148 = arith.constant 0 : index
    %126 = vector.load %arg7[%c0_147, %c0_148] : memref<8x320xf32, #tpu.memory_space<vmem>>, vector<8x320xf32>
    tpu.vector_store %arg7[%c0_147, %c0_148], %125 {strides = array<i32>} : memref<8x320xf32, #tpu.memory_space<vmem>>, vector<8x320xf32>,
    %c0_149 = arith.constant 0 : index
    %c0_150 = arith.constant 0 : index
    %c63 = arith.constant 63 : index
    %127 = vector.load %arg3[%c0_149, %c0_150, %c63] : memref<1x4x420xf32, #tpu.memory_space<vmem>>, vector<1x4x320xf32>
    %128 = vector.shape_cast %127 : vector<1x4x320xf32> to vector<4x320xf32>
    %c0_151 = arith.constant 0 : index
    %c72 = arith.constant 72 : index
    %129 = vector.load %arg1[%c0_151, %c72] : memref<8x100xf32, #tpu.memory_space<vmem>>, vector<8x4xf32>
    %cst_152 = arith.constant dense<0.000000e+00> : vector<8x320xf32>
    %130 = tpu.matmul %129, %128, %cst_152 {dimension_numbers = #tpu.dot_dimension_numbers<[1], [0], [0], [1], [0, 0, 1, 1], [], []>} : vector<8x4xf32>, vector<4x320xf32>, vector<8x320xf32> -> vector<8x320xf32>
    %c0_153 = arith.constant 0 : index
    %c0_154 = arith.constant 0 : index
    %131 = vector.load %arg7[%c0_153, %c0_154] : memref<8x320xf32, #tpu.memory_space<vmem>>, vector<8x320xf32>
    %132 = arith.addf %131, %130 : vector<8x320xf32>
    %c0_155 = arith.constant 0 : index
    %c0_156 = arith.constant 0 : index
    %133 = vector.load %arg7[%c0_155, %c0_156] : memref<8x320xf32, #tpu.memory_space<vmem>>, vector<8x320xf32>
    tpu.vector_store %arg7[%c0_155, %c0_156], %132 {strides = array<i32>} : memref<8x320xf32, #tpu.memory_space<vmem>>, vector<8x320xf32>,
    %c0_157 = arith.constant 0 : index
    %c0_158 = arith.constant 0 : index
    %c64_159 = arith.constant 64 : index
    %134 = vector.load %arg3[%c0_157, %c0_158, %c64_159] : memref<1x4x420xf32, #tpu.memory_space<vmem>>, vector<1x4x320xf32>
    %135 = vector.shape_cast %134 : vector<1x4x320xf32> to vector<4x320xf32>
    %c0_160 = arith.constant 0 : index
    %c76 = arith.constant 76 : index
    %136 = vector.load %arg1[%c0_160, %c76] : memref<8x100xf32, #tpu.memory_space<vmem>>, vector<8x4xf32>
    %cst_161 = arith.constant dense<0.000000e+00> : vector<8x320xf32>
    %137 = tpu.matmul %136, %135, %cst_161 {dimension_numbers = #tpu.dot_dimension_numbers<[1], [0], [0], [1], [0, 0, 1, 1], [], []>} : vector<8x4xf32>, vector<4x320xf32>, vector<8x320xf32> -> vector<8x320xf32>
    %c0_162 = arith.constant 0 : index
    %c0_163 = arith.constant 0 : index
    %138 = vector.load %arg7[%c0_162, %c0_163] : memref<8x320xf32, #tpu.memory_space<vmem>>, vector<8x320xf32>
    %139 = arith.addf %138, %137 : vector<8x320xf32>
    %c0_164 = arith.constant 0 : index
    %c0_165 = arith.constant 0 : index
    %140 = vector.load %arg7[%c0_164, %c0_165] : memref<8x320xf32, #tpu.memory_space<vmem>>, vector<8x320xf32>
    tpu.vector_store %arg7[%c0_164, %c0_165], %139 {strides = array<i32>} : memref<8x320xf32, #tpu.memory_space<vmem>>, vector<8x320xf32>,
    %c0_166 = arith.constant 0 : index
    %c0_167 = arith.constant 0 : index
    %c80 = arith.constant 80 : index
    %141 = vector.load %arg3[%c0_166, %c0_167, %c80] : memref<1x4x420xf32, #tpu.memory_space<vmem>>, vector<1x4x320xf32>
    %142 = vector.shape_cast %141 : vector<1x4x320xf32> to vector<4x320xf32>
    %c0_168 = arith.constant 0 : index
    %c80_169 = arith.constant 80 : index
    %143 = vector.load %arg1[%c0_168, %c80_169] : memref<8x100xf32, #tpu.memory_space<vmem>>, vector<8x4xf32>
    %cst_170 = arith.constant dense<0.000000e+00> : vector<8x320xf32>
    %144 = tpu.matmul %143, %142, %cst_170 {dimension_numbers = #tpu.dot_dimension_numbers<[1], [0], [0], [1], [0, 0, 1, 1], [], []>} : vector<8x4xf32>, vector<4x320xf32>, vector<8x320xf32> -> vector<8x320xf32>
    %c0_171 = arith.constant 0 : index
    %c0_172 = arith.constant 0 : index
    %145 = vector.load %arg7[%c0_171, %c0_172] : memref<8x320xf32, #tpu.memory_space<vmem>>, vector<8x320xf32>
    %146 = arith.addf %145, %144 : vector<8x320xf32>
    %c0_173 = arith.constant 0 : index
    %c0_174 = arith.constant 0 : index
    %147 = vector.load %arg7[%c0_173, %c0_174] : memref<8x320xf32, #tpu.memory_space<vmem>>, vector<8x320xf32>
    tpu.vector_store %arg7[%c0_173, %c0_174], %146 {strides = array<i32>} : memref<8x320xf32, #tpu.memory_space<vmem>>, vector<8x320xf32>,
    %c0_175 = arith.constant 0 : index
    %c0_176 = arith.constant 0 : index
    %c81 = arith.constant 81 : index
    %148 = vector.load %arg3[%c0_175, %c0_176, %c81] : memref<1x4x420xf32, #tpu.memory_space<vmem>>, vector<1x4x320xf32>
    %149 = vector.shape_cast %148 : vector<1x4x320xf32> to vector<4x320xf32>
    %c0_177 = arith.constant 0 : index
    %c84 = arith.constant 84 : index
    %150 = vector.load %arg1[%c0_177, %c84] : memref<8x100xf32, #tpu.memory_space<vmem>>, vector<8x4xf32>
    %cst_178 = arith.constant dense<0.000000e+00> : vector<8x320xf32>
    %151 = tpu.matmul %150, %149, %cst_178 {dimension_numbers = #tpu.dot_dimension_numbers<[1], [0], [0], [1], [0, 0, 1, 1], [], []>} : vector<8x4xf32>, vector<4x320xf32>, vector<8x320xf32> -> vector<8x320xf32>
    %c0_179 = arith.constant 0 : index
    %c0_180 = arith.constant 0 : index
    %152 = vector.load %arg7[%c0_179, %c0_180] : memref<8x320xf32, #tpu.memory_space<vmem>>, vector<8x320xf32>
    %153 = arith.addf %152, %151 : vector<8x320xf32>
    %c0_181 = arith.constant 0 : index
    %c0_182 = arith.constant 0 : index
    %154 = vector.load %arg7[%c0_181, %c0_182] : memref<8x320xf32, #tpu.memory_space<vmem>>, vector<8x320xf32>
    tpu.vector_store %arg7[%c0_181, %c0_182], %153 {strides = array<i32>} : memref<8x320xf32, #tpu.memory_space<vmem>>, vector<8x320xf32>,
    %c0_183 = arith.constant 0 : index
    %c0_184 = arith.constant 0 : index
    %c82 = arith.constant 82 : index
    %155 = vector.load %arg3[%c0_183, %c0_184, %c82] : memref<1x4x420xf32, #tpu.memory_space<vmem>>, vector<1x4x320xf32>
    %156 = vector.shape_cast %155 : vector<1x4x320xf32> to vector<4x320xf32>
    %c0_185 = arith.constant 0 : index
    %c88 = arith.constant 88 : index
    %157 = vector.load %arg1[%c0_185, %c88] : memref<8x100xf32, #tpu.memory_space<vmem>>, vector<8x4xf32>
    %cst_186 = arith.constant dense<0.000000e+00> : vector<8x320xf32>
    %158 = tpu.matmul %157, %156, %cst_186 {dimension_numbers = #tpu.dot_dimension_numbers<[1], [0], [0], [1], [0, 0, 1, 1], [], []>} : vector<8x4xf32>, vector<4x320xf32>, vector<8x320xf32> -> vector<8x320xf32>
    %c0_187 = arith.constant 0 : index
    %c0_188 = arith.constant 0 : index
    %159 = vector.load %arg7[%c0_187, %c0_188] : memref<8x320xf32, #tpu.memory_space<vmem>>, vector<8x320xf32>
    %160 = arith.addf %159, %158 : vector<8x320xf32>
    %c0_189 = arith.constant 0 : index
    %c0_190 = arith.constant 0 : index
    %161 = vector.load %arg7[%c0_189, %c0_190] : memref<8x320xf32, #tpu.memory_space<vmem>>, vector<8x320xf32>
    tpu.vector_store %arg7[%c0_189, %c0_190], %160 {strides = array<i32>} : memref<8x320xf32, #tpu.memory_space<vmem>>, vector<8x320xf32>,
    %c0_191 = arith.constant 0 : index
    %c0_192 = arith.constant 0 : index
    %c83 = arith.constant 83 : index
    %162 = vector.load %arg3[%c0_191, %c0_192, %c83] : memref<1x4x420xf32, #tpu.memory_space<vmem>>, vector<1x4x320xf32>
    %163 = vector.shape_cast %162 : vector<1x4x320xf32> to vector<4x320xf32>
    %c0_193 = arith.constant 0 : index
    %c92 = arith.constant 92 : index
    %164 = vector.load %arg1[%c0_193, %c92] : memref<8x100xf32, #tpu.memory_space<vmem>>, vector<8x4xf32>
    %cst_194 = arith.constant dense<0.000000e+00> : vector<8x320xf32>
    %165 = tpu.matmul %164, %163, %cst_194 {dimension_numbers = #tpu.dot_dimension_numbers<[1], [0], [0], [1], [0, 0, 1, 1], [], []>} : vector<8x4xf32>, vector<4x320xf32>, vector<8x320xf32> -> vector<8x320xf32>
    %c0_195 = arith.constant 0 : index
    %c0_196 = arith.constant 0 : index
    %166 = vector.load %arg7[%c0_195, %c0_196] : memref<8x320xf32, #tpu.memory_space<vmem>>, vector<8x320xf32>
    %167 = arith.addf %166, %165 : vector<8x320xf32>
    %c0_197 = arith.constant 0 : index
    %c0_198 = arith.constant 0 : index
    %168 = vector.load %arg7[%c0_197, %c0_198] : memref<8x320xf32, #tpu.memory_space<vmem>>, vector<8x320xf32>
    tpu.vector_store %arg7[%c0_197, %c0_198], %167 {strides = array<i32>} : memref<8x320xf32, #tpu.memory_space<vmem>>, vector<8x320xf32>,
    %c0_199 = arith.constant 0 : index
    %c0_200 = arith.constant 0 : index
    %c84_201 = arith.constant 84 : index
    %169 = vector.load %arg3[%c0_199, %c0_200, %c84_201] : memref<1x4x420xf32, #tpu.memory_space<vmem>>, vector<1x4x320xf32>
    %170 = vector.shape_cast %169 : vector<1x4x320xf32> to vector<4x320xf32>
    %c0_202 = arith.constant 0 : index
    %c96 = arith.constant 96 : index
    %171 = vector.load %arg1[%c0_202, %c96] : memref<8x100xf32, #tpu.memory_space<vmem>>, vector<8x4xf32>
    %cst_203 = arith.constant dense<0.000000e+00> : vector<8x320xf32>
    %172 = tpu.matmul %171, %170, %cst_203 {dimension_numbers = #tpu.dot_dimension_numbers<[1], [0], [0], [1], [0, 0, 1, 1], [], []>} : vector<8x4xf32>, vector<4x320xf32>, vector<8x320xf32> -> vector<8x320xf32>
    %c0_204 = arith.constant 0 : index
    %c0_205 = arith.constant 0 : index
    %173 = vector.load %arg7[%c0_204, %c0_205] : memref<8x320xf32, #tpu.memory_space<vmem>>, vector<8x320xf32>
    %174 = arith.addf %173, %172 : vector<8x320xf32>
    %c0_206 = arith.constant 0 : index
    %c0_207 = arith.constant 0 : index
    %175 = vector.load %arg7[%c0_206, %c0_207] : memref<8x320xf32, #tpu.memory_space<vmem>>, vector<8x320xf32>
    tpu.vector_store %arg7[%c0_206, %c0_207], %174 {strides = array<i32>} : memref<8x320xf32, #tpu.memory_space<vmem>>, vector<8x320xf32>,
    %c0_208 = arith.constant 0 : index
    %c0_209 = arith.constant 0 : index
    %176 = vector.load %arg7[%c0_208, %c0_209] : memref<8x320xf32, #tpu.memory_space<vmem>>, vector<8x320xf32>
    %c0_210 = arith.constant 0 : index
    %c0_211 = arith.constant 0 : index
    %177 = vector.load %arg2[%c0_210, %c0_211] : memref<1x320xf32, #tpu.memory_space<vmem>>, vector<1x320xf32>
    %178 = vector.broadcast %177 : vector<1x320xf32> to vector<8x320xf32>
    %179 = arith.mulf %176, %178 : vector<8x320xf32>
    %c0_212 = arith.constant 0 : index
    %c0_213 = arith.constant 0 : index
    %c0_214 = arith.constant 0 : index
    %180 = vector.load %arg4[%c0_212, %c0_213, %c0_214] : memref<1x8x320xf32, #tpu.memory_space<vmem>>, vector<1x8x320xf32>
    %181 = vector.shape_cast %180 : vector<1x8x320xf32> to vector<8x320xf32>
    %182 = vector.shape_cast %179 : vector<8x320xf32> to vector<1x8x320xf32>
    tpu.vector_store %arg4[%c0_212, %c0_213, %c0_214], %182 {strides = array<i32>} : memref<1x8x320xf32, #tpu.memory_space<vmem>>, vector<1x8x320xf32>,
    %c0_215 = arith.constant 0 : index
    %c0_216 = arith.constant 0 : index
    %183 = vector.load %arg5[%c0_215, %c0_216] : memref<8x1xf32, #tpu.memory_space<vmem>>, vector<8x1xf32>
    %cst_217 = arith.constant dense<0.000000e+00> : vector<8xf32>
    %184 = vector.multi_reduction <add>, %179, %cst_217 [1] : vector<8x320xf32> to vector<8xf32>
    %185 = vector.shape_cast %184 : vector<8xf32> to vector<8x1xf32>
    %186 = arith.addf %183, %185 : vector<8x1xf32>
    %c0_218 = arith.constant 0 : index
    %c0_219 = arith.constant 0 : index
    %187 = vector.load %arg5[%c0_218, %c0_219] : memref<8x1xf32, #tpu.memory_space<vmem>>, vector<8x1xf32>
    tpu.vector_store %arg5[%c0_218, %c0_219], %186 {strides = array<i32>} : memref<8x1xf32, #tpu.memory_space<vmem>>, vector<8x1xf32>,
    %c0_220 = arith.constant 0 : index
    %c0_221 = arith.constant 0 : index
    %188 = vector.load %arg6[%c0_220, %c0_221] : memref<8x1xf32, #tpu.memory_space<vmem>>, vector<8x1xf32>
    %189 = arith.mulf %179, %179 : vector<8x320xf32>
    %cst_222 = arith.constant dense<0.000000e+00> : vector<8xf32>
    %190 = vector.multi_reduction <add>, %189, %cst_222 [1] : vector<8x320xf32> to vector<8xf32>
    %191 = vector.shape_cast %190 : vector<8xf32> to vector<8x1xf32>
    %192 = arith.addf %188, %191 : vector<8x1xf32>
    %c0_223 = arith.constant 0 : index
    %c0_224 = arith.constant 0 : index
    %193 = vector.load %arg6[%c0_223, %c0_224] : memref<8x1xf32, #tpu.memory_space<vmem>>, vector<8x1xf32>
    tpu.vector_store %arg6[%c0_223, %c0_224], %192 {strides = array<i32>} : memref<8x1xf32, #tpu.memory_space<vmem>>, vector<8x1xf32>,
    return
  }
  func.func @transform_0(%arg0: i32) -> (i32, i32) {
    %c0_i32 = arith.constant 0 : i32
    %c0_i32_0 = arith.constant 0 : i32
    %c0_i32_1 = arith.constant 0 : i32
    return %c0_i32, %c0_i32_0 : i32, i32
  }
  func.func @transform_1(%arg0: i32) -> (i32, i32) {
    %c0_i32 = arith.constant 0 : i32
    %c0_i32_0 = arith.constant 0 : i32
    %c0_i32_1 = arith.constant 0 : i32
    return %c0_i32, %c0_i32_0 : i32, i32
  }
  func.func @transform_2(%arg0: i32) -> (i32, i32, i32) {
    %c0_i32 = arith.constant 0 : i32
    %c0_i32_0 = arith.constant 0 : i32
    %c0_i32_1 = arith.constant 0 : i32
    return %arg0, %c0_i32, %c0_i32_0 : i32, i32, i32
  }
  func.func @transform_3(%arg0: i32) -> (i32, i32, i32) {
    %c0_i32 = arith.constant 0 : i32
    %c0_i32_0 = arith.constant 0 : i32
    %c0_i32_1 = arith.constant 0 : i32
    return %arg0, %c0_i32, %c0_i32_0 : i32, i32, i32
  }
  func.func @transform_4(%arg0: i32) -> (i32, i32) {
    %c0_i32 = arith.constant 0 : i32
    %c0_i32_0 = arith.constant 0 : i32
    %c0_i32_1 = arith.constant 0 : i32
    return %c0_i32, %c0_i32_0 : i32, i32
  }
  func.func @transform_5(%arg0: i32) -> (i32, i32) {
    %c0_i32 = arith.constant 0 : i32
    %c0_i32_0 = arith.constant 0 : i32
    %c0_i32_1 = arith.constant 0 : i32
    return %c0_i32, %c0_i32_0 : i32, i32
  }
}

module attributes {stable_mosaic.version = 11 : i64} {
  func.func @kernel(%arg0: i32, %arg1: i32, %arg2: memref<8x1x1xf32, #tpu.memory_space<vmem>>, %arg3: memref<8x1x1xf32, #tpu.memory_space<vmem>>, %arg4: memref<1x8x16x20xf32, #tpu.memory_space<vmem>>, %arg5: memref<1x8x16x16xf32, #tpu.memory_space<vmem>>, %arg6: memref<1x16x16x16xf32, #tpu.memory_space<vmem>>) attributes {dimension_semantics = [#tpu.dimension_semantics<parallel>, #tpu.dimension_semantics<parallel>], iteration_bounds = array<i64: 2, 1>, scalar_prefetch = 0 : i64, scratch_operands = 0 : i64, tpu.core_type = #tpu.core_type<tc>, window_params = [{pipeline_mode = #tpu.pipeline_mode<synchronous>, transform_indices = @transform_0, window_bounds = array<i64: 8, 1, 1>}, {pipeline_mode = #tpu.pipeline_mode<synchronous>, transform_indices = @transform_1, window_bounds = array<i64: 8, 1, 1>}, {transform_indices = @transform_2, window_bounds = array<i64: 1, 8, 16, 20>}, {transform_indices = @transform_3, window_bounds = array<i64: 1, 8, 16, 16>}, {transform_indices = @transform_4, window_bounds = array<i64: 1, 16, 16, 16>}]} {
    %c0 = arith.constant 0 : index
    %c0_0 = arith.constant 0 : index
    %c0_1 = arith.constant 0 : index
    %c0_2 = arith.constant 0 : index
    %0 = vector.load %arg4[%c0, %c0_0, %c0_1, %c0_2] : memref<1x8x16x20xf32, #tpu.memory_space<vmem>>, vector<1x8x16x16xf32>
    %1 = vector.shape_cast %0 : vector<1x8x16x16xf32> to vector<8x16x16xf32>
    %c0_3 = arith.constant 0 : index
    %c0_4 = arith.constant 0 : index
    %c0_5 = arith.constant 0 : index
    %2 = vector.load %arg2[%c0_3, %c0_4, %c0_5] : memref<8x1x1xf32, #tpu.memory_space<vmem>>, vector<8x1x1xf32>
    %3 = vector.broadcast %2 : vector<8x1x1xf32> to vector<8x16x16xf32>
    %4 = arith.mulf %1, %3 : vector<8x16x16xf32>
    %c0_6 = arith.constant 0 : index
    %c0_7 = arith.constant 0 : index
    %c0_8 = arith.constant 0 : index
    %5 = vector.load %arg3[%c0_6, %c0_7, %c0_8] : memref<8x1x1xf32, #tpu.memory_space<vmem>>, vector<8x1x1xf32>
    %6 = vector.broadcast %5 : vector<8x1x1xf32> to vector<8x16x16xf32>
    %7 = arith.addf %4, %6 : vector<8x16x16xf32>
    %cst = arith.constant 0.000000e+00 : f32
    %8 = vector.broadcast %cst : f32 to vector<8x16x16xf32>
    %9 = arith.maximumf %7, %8 : vector<8x16x16xf32>
    %c0_9 = arith.constant 0 : index
    %c0_10 = arith.constant 0 : index
    %c0_11 = arith.constant 0 : index
    %c0_12 = arith.constant 0 : index
    %10 = vector.load %arg5[%c0_9, %c0_10, %c0_11, %c0_12] : memref<1x8x16x16xf32, #tpu.memory_space<vmem>>, vector<1x8x16x16xf32>
    %11 = vector.shape_cast %10 : vector<1x8x16x16xf32> to vector<8x16x16xf32>
    %c0_13 = arith.constant 0 : index
    %c0_14 = arith.constant 0 : index
    %c0_15 = arith.constant 0 : index
    %c0_16 = arith.constant 0 : index
    %12 = vector.load %arg6[%c0_13, %c0_14, %c0_15, %c0_16] : memref<1x16x16x16xf32, #tpu.memory_space<vmem>>, vector<1x8x16x16xf32>
    %13 = vector.shape_cast %12 : vector<1x8x16x16xf32> to vector<8x16x16xf32>
    %14 = vector.shape_cast %11 : vector<8x16x16xf32> to vector<1x8x16x16xf32>
    tpu.vector_store %arg6[%c0_13, %c0_14, %c0_15, %c0_16], %14 {strides = array<i32>} : memref<1x16x16x16xf32, #tpu.memory_space<vmem>>, vector<1x8x16x16xf32>,
    %c0_17 = arith.constant 0 : index
    %c8 = arith.constant 8 : index
    %c0_18 = arith.constant 0 : index
    %c0_19 = arith.constant 0 : index
    %15 = vector.load %arg6[%c0_17, %c8, %c0_18, %c0_19] : memref<1x16x16x16xf32, #tpu.memory_space<vmem>>, vector<1x8x16x16xf32>
    %16 = vector.shape_cast %15 : vector<1x8x16x16xf32> to vector<8x16x16xf32>
    %17 = vector.shape_cast %9 : vector<8x16x16xf32> to vector<1x8x16x16xf32>
    tpu.vector_store %arg6[%c0_17, %c8, %c0_18, %c0_19], %17 {strides = array<i32>} : memref<1x16x16x16xf32, #tpu.memory_space<vmem>>, vector<1x8x16x16xf32>,
    return
  }
  func.func @transform_0(%arg0: i32, %arg1: i32) -> (i32, i32, i32) {
    %c0_i32 = arith.constant 0 : i32
    %c0_i32_0 = arith.constant 0 : i32
    %c0_i32_1 = arith.constant 0 : i32
    %c0_i32_2 = arith.constant 0 : i32
    return %c0_i32, %c0_i32_0, %c0_i32_1 : i32, i32, i32
  }
  func.func @transform_1(%arg0: i32, %arg1: i32) -> (i32, i32, i32) {
    %c0_i32 = arith.constant 0 : i32
    %c0_i32_0 = arith.constant 0 : i32
    %c0_i32_1 = arith.constant 0 : i32
    %c0_i32_2 = arith.constant 0 : i32
    return %c0_i32, %c0_i32_0, %c0_i32_1 : i32, i32, i32
  }
  func.func @transform_2(%arg0: i32, %arg1: i32) -> (i32, i32, i32, i32) {
    %c0_i32 = arith.constant 0 : i32
    %c0_i32_0 = arith.constant 0 : i32
    %c0_i32_1 = arith.constant 0 : i32
    return %arg0, %c0_i32, %arg1, %c0_i32_0 : i32, i32, i32, i32
  }
  func.func @transform_3(%arg0: i32, %arg1: i32) -> (i32, i32, i32, i32) {
    %c0_i32 = arith.constant 0 : i32
    %c0_i32_0 = arith.constant 0 : i32
    %c0_i32_1 = arith.constant 0 : i32
    return %arg0, %c0_i32, %arg1, %c0_i32_0 : i32, i32, i32, i32
  }
  func.func @transform_4(%arg0: i32, %arg1: i32) -> (i32, i32, i32, i32) {
    %c0_i32 = arith.constant 0 : i32
    %c0_i32_0 = arith.constant 0 : i32
    %c0_i32_1 = arith.constant 0 : i32
    return %arg0, %c0_i32, %arg1, %c0_i32_0 : i32, i32, i32, i32
  }
}

</mosaic_0001>

<llo_original>
// kernel: decoder_forward.3
$region0: #{decoder_forward.3}
  #allocation0 [shape = 'u32[]', space=smem, size = 0x4, offset = 0x4, fixed_abs, tag = 'smem constant byte address 0x4 - core index']
  #allocation1 [shape = 'u32[144,128]{1,0:T(1,128)}', space=vmem, size = 0x12000, scoped, tag = 'internal scratch']
  %s0 = inlined_call_operand.vmem [shape: f32[8,1,1], index: 0, kind: input, shape index: {}]
  %s1 = inlined_call_operand.vmem [shape: f32[8,1,1], index: 1, kind: input, shape index: {}]
  %s2 = inlined_call_operand.vmem [shape: f32[2,8,16,20], index: 2, kind: input, shape index: {}]
  %s3 = inlined_call_operand.vmem [shape: f32[2,8,16,16], index: 3, kind: input, shape index: {}]
  %s4 = inlined_call_operand.hbm [shape: f32[2,16,16,16], index: 4, kind: output, shape index: {}]
  %s5 = sld [smem:[#allocation0]]
  $region49: #{decoder_forward.3} parent=0
    _
  %s7 = ssub.s32 1, %s5
  %s8 = scalar_select 0, %s7, %s5
  $region1: #{decoder_forward.3} parent=0
    #allocation2 [shape = 'u8[262144]{0}', space=vmem, size = 0x40000, scoped, tag = 'output window, operand 0']
    #allocation3 [shape = 's32[2]{0}', space=sflag, size = 0x8, scoped, tag = 'scoped memory for decoder_forward.3']
    %9 = vsyncpa [#allocation3], 0
    %s10 = scalar_lea.sflag [#allocation3], 1
    %11 = vsyncpa %s10, 0
    loop: start=0, step=1, limit=4
    $region2: #{decoder_forward.3} parent=1 // loop_pre_header
      _
    $region3: #{decoder_forward.3} parent=1 // loop_header
      %s13 = sphi 0, %s17
      %p14 = scmp.ge.s32.totalorder %s13, 4
      %s20 = sphi 0, %s32
      %s21 = sphi 0, %s28
      %s22 = sphi 0, %s20
      %s23 = sphi 0, %s21
      %s24 = sphi 0, %s22
      %s25 = sphi 0, %s23
      %s33 = sphi 0, %s33
      %s35 = sphi 0, %s33
      %s36 = sphi 0, %s35
      %s50 = sphi 0, %s36
      %s54 = sphi 0, %s54
      %s56 = sphi 0, %s54
      %s57 = sphi 0, %s56
      %s71 = sphi 0, %s57
      %s79 = sphi 0, %s81
      %s82 = sphi 0, %s79
      %s83 = sphi 0, %s82
      %s99 = sphi 0, %s83
      %s107 = sphi 0, %s109
      %s110 = sphi 0, %s107
      %s111 = sphi 0, %s110
      %s127 = sphi 0, %s111
      %s135 = sphi 0, %s137
      %s138 = sphi 0, %s135
      %s139 = sphi 0, %s138
      %s155 = sphi 0, %s139
    $region4: #{decoder_forward.3} parent=1 // loop_header_branch
      %16 = sbr.rel (%p14) target = $region8
    $region5: #{decoder_forward.3} parent=1 // loop_body
      %s18 = ssub.s32 %s13, 1
      %s19 = ssub.s32 %s13, 2
      %s26 = sadd.s32 1, %s21
      %p27 = scmp.ge.s32.totalorder %s26, 1
      %s28 = scalar_select %p27, 0, %s26
      %s29 = sadd.s32 1, %s20
      %s30 = scalar_select %p27, %s29, %s20
      %p31 = scmp.ge.s32.totalorder %s30, 2
      %s32 = scalar_select %p31, 0, %s30
      %s34 = sadd.s32 %s33, 1
      %p37 = scmp.eq.s32.totalorder %s13, 1
      %p38 = scmp.ne.s32.totalorder %s33, %s35
      %p39 = scmp.eq.s32.totalorder %s13, 0
      %p40 = por %p38, %p39
      %p41 = scmp.ne.s32.totalorder %s33, %s35
      %p42 = scmp.eq.s32.totalorder %s18, 1
      %p43 = por %p41, %p42
      %p44 = scmp.ne.s32.totalorder %s35, %s36
      %p45 = scmp.eq.s32.totalorder %s18, 0
      %p46 = por %p44, %p45
      %p47 = scmp.ne.s32.totalorder %s35, %s36
      %p48 = scmp.eq.s32.totalorder %s19, 1
      %p49 = por %p47, %p48
      %p51 = scmp.ne.s32.totalorder %s36, %s50
      %p52 = scmp.eq.s32.totalorder %s19, 0
      %p53 = por %p51, %p52
      %s55 = sadd.s32 %s54, 1
      %p58 = scmp.eq.s32.totalorder %s13, 1
      %p59 = scmp.ne.s32.totalorder %s54, %s56
      %p60 = scmp.eq.s32.totalorder %s13, 0
      %p61 = por %p59, %p60
      %p62 = scmp.ne.s32.totalorder %s54, %s56
      %p63 = scmp.eq.s32.totalorder %s18, 1
      %p64 = por %p62, %p63
      %p65 = scmp.ne.s32.totalorder %s56, %s57
      %p66 = scmp.eq.s32.totalorder %s18, 0
      %p67 = por %p65, %p66
      %p68 = scmp.ne.s32.totalorder %s56, %s57
      %p69 = scmp.eq.s32.totalorder %s19, 1
      %p70 = por %p68, %p69
      %p72 = scmp.ne.s32.totalorder %s57, %s71
      %p73 = scmp.eq.s32.totalorder %s19, 0
      %p74 = por %p72, %p73
      %s75 = ssub.s32 %s20, %s32
      %s76 = ssub.s32 %s21, %s28
      %s77 = sor.u32 %s75, %s76
      %p78 = scmp.eq.s32.totalorder %s77, 0
      %s80 = sadd.s32 %s79, 1
      %s81 = scalar_select %p78, %s79, %s80
      %p84 = pneg %p78
      %p85 = scmp.eq.s32.totalorder %s13, 1
      %p86 = por %p84, %p85
      %p87 = scmp.ne.s32.totalorder %s79, %s82
      %p88 = scmp.eq.s32.totalorder %s13, 0
      %p89 = por %p87, %p88
      %p90 = scmp.ne.s32.totalorder %s79, %s82
      %p91 = scmp.eq.s32.totalorder %s18, 1
      %p92 = por %p90, %p91
      %p93 = scmp.ne.s32.totalorder %s82, %s83
      %p94 = scmp.eq.s32.totalorder %s18, 0
      %p95 = por %p93, %p94
      %p96 = scmp.ne.s32.totalorder %s82, %s83
      %p97 = scmp.eq.s32.totalorder %s19, 1
      %p98 = por %p96, %p97
      %p100 = scmp.ne.s32.totalorder %s83, %s99
      %p101 = scmp.eq.s32.totalorder %s19, 0
      %p102 = por %p100, %p101
      %s103 = ssub.s32 %s20, %s32
      %s104 = ssub.s32 %s21, %s28
      %s105 = sor.u32 %s103, %s104
      %p106 = scmp.eq.s32.totalorder %s105, 0
      %s108 = sadd.s32 %s107, 1
      %s109 = scalar_select %p106, %s107, %s108
      %p112 = pneg %p106
      %p113 = scmp.eq.s32.totalorder %s13, 1
      %p114 = por %p112, %p113
      %p115 = scmp.ne.s32.totalorder %s107, %s110
      %p116 = scmp.eq.s32.totalorder %s13, 0
      %p117 = por %p115, %p116
      %p118 = scmp.ne.s32.totalorder %s107, %s110
      %p119 = scmp.eq.s32.totalorder %s18, 1
      %p120 = por %p118, %p119
      %p121 = scmp.ne.s32.totalorder %s110, %s111
      %p122 = scmp.eq.s32.totalorder %s18, 0
      %p123 = por %p121, %p122
      %p124 = scmp.ne.s32.totalorder %s110, %s111
      %p125 = scmp.eq.s32.totalorder %s19, 1
      %p126 = por %p124, %p125
      %p128 = scmp.ne.s32.totalorder %s111, %s127
      %p129 = scmp.eq.s32.totalorder %s19, 0
      %p130 = por %p128, %p129
      %s131 = ssub.s32 %s20, %s32
      %s132 = ssub.s32 %s21, %s28
      %s133 = sor.u32 %s131, %s132
      %p134 = scmp.eq.s32.totalorder %s133, 0
      %s136 = sadd.s32 %s135, 1
      %s137 = scalar_select %p134, %s135, %s136
      %p140 = pneg %p134
      %p141 = scmp.eq.s32.totalorder %s13, 1
      %p142 = por %p140, %p141
      %p143 = scmp.ne.s32.totalorder %s135, %s138
      %p144 = scmp.eq.s32.totalorder %s13, 0
      %p145 = por %p143, %p144
      %p146 = scmp.ne.s32.totalorder %s135, %s138
      %p147 = scmp.eq.s32.totalorder %s18, 1
      %p148 = por %p146, %p147
      %p149 = scmp.ne.s32.totalorder %s138, %s139
      %p150 = scmp.eq.s32.totalorder %s18, 0
      %p151 = por %p149, %p150
      %p152 = scmp.ne.s32.totalorder %s138, %s139
      %p153 = scmp.eq.s32.totalorder %s19, 1
      %p154 = por %p152, %p153
      %p156 = scmp.ne.s32.totalorder %s139, %s155
      %p157 = scmp.eq.s32.totalorder %s19, 0
      %p158 = por %p156, %p157
      %p159 = scmp.le.s32.totalorder 1, %s13
      %p160 = scmp.lt.s32.totalorder %s13, 3
      %p161 = pnand %p159, %p160
      %p162 = pneg %p161
      // Predicated region
      $region9: #{decoder_forward.3} parent=5 // pred_check
        _
      $region10: #{decoder_forward.3} parent=5 // pred_check_branch
        %164 = sbr.rel (%p161) target = $region12
      $region11: #{decoder_forward.3} parent=5 // pred_region
        %s165 = ssub.s32 %s13, 1
        // Predicated region
        $region13: #{decoder_forward.3} parent=11 // pred_check
          %p166 = pneg %p46
        $region14: #{decoder_forward.3} parent=11 // pred_check_branch
          %168 = sbr.rel (%p166) target = $region16
        $region15: #{decoder_forward.3} parent=11 // pred_region
          _
        $region16: #{decoder_forward.3} parent=11 // pred_fallthru
          _
        // Predicated region
        $region17: #{decoder_forward.3} parent=11 // pred_check
          %p169 = pneg %p67
        $region18: #{decoder_forward.3} parent=11 // pred_check_branch
          %171 = sbr.rel (%p169) target = $region20
        $region19: #{decoder_forward.3} parent=11 // pred_region
          _
        $region20: #{decoder_forward.3} parent=11 // pred_fallthru
          _
      $region12: #{decoder_forward.3} parent=5 // pred_fallthru
        _
      %p172 = scmp.lt.s32.totalorder %s13, 2
      // Predicated region
      $region21: #{decoder_forward.3} parent=5 // pred_check
        %p173 = pneg %p172
      $region22: #{decoder_forward.3} parent=5 // pred_check_branch
        %175 = sbr.rel (%p173) target = $region24
      $region23: #{decoder_forward.3} parent=5 // pred_region
        // Predicated region
        $region25: #{decoder_forward.3} parent=23 // pred_check
          %p176 = pneg %p89
        $region26: #{decoder_forward.3} parent=23 // pred_check_branch
          %178 = sbr.rel (%p176) target = $region28
        $region27: #{decoder_forward.3} parent=23 // pred_region
          %s179 = smul.u32 2, %s21
          %p180 = scmp.lt.s32.totalorder %s20, 1
          %s181 = scalar_select %p180, %s20, 1
          %p182 = scmp.lt.s32.totalorder %s179, 1
          %s183 = scalar_select %p182, %s179, 1
          %s184 = smul.addr %s181, 16
          %s185 = sadd.s32 %s183, %s184
          %s186 = smul.addr %s185, 8
          %s187 = scalar_lea.vmem %s2, %s186
          %s188 = smul.u32 2, %s21
        $region28: #{decoder_forward.3} parent=23 // pred_fallthru
          _
        // Predicated region
        $region29: #{decoder_forward.3} parent=23 // pred_check
          %p189 = pneg %p117
        $region30: #{decoder_forward.3} parent=23 // pred_check_branch
          %191 = sbr.rel (%p189) target = $region32
        $region31: #{decoder_forward.3} parent=23 // pred_region
          %s192 = smul.u32 2, %s21
          %p193 = scmp.lt.s32.totalorder %s20, 1
          %s194 = scalar_select %p193, %s20, 1
          %p195 = scmp.lt.s32.totalorder %s192, 1
          %s196 = scalar_select %p195, %s192, 1
          %s197 = smul.addr %s194, 16
          %s198 = sadd.s32 %s196, %s197
          %s199 = smul.addr %s198, 8
          %s200 = scalar_lea.vmem %s3, %s199
          %s201 = smul.u32 2, %s21
        $region32: #{decoder_forward.3} parent=23 // pred_fallthru
          _
      $region24: #{decoder_forward.3} parent=5 // pred_fallthru
        _
      %p202 = scmp.le.s32.totalorder 1, %s13
      %p203 = scmp.lt.s32.totalorder %s13, 3
      %p204 = pnand %p202, %p203
      %p205 = pneg %p204
      // Predicated region
      $region33: #{decoder_forward.3} parent=5 // pred_check
        _
      $region34: #{decoder_forward.3} parent=5 // pred_check_branch
        %207 = sbr.rel (%p204) target = $region36
      $region35: #{decoder_forward.3} parent=5 // pred_region
        %s208 = ssub.s32 %s13, 1
        %p209 = pneg %p46
        %p210 = pneg %p43
        %p211 = pneg %p67
        %p212 = pneg %p64
        %s213 = smul.u32 2, %s23
        %p214 = scmp.lt.s32.totalorder %s22, 1
        %s215 = scalar_select %p214, %s22, 1
        %p216 = scmp.lt.s32.totalorder %s213, 1
        %s217 = scalar_select %p216, %s213, 1
        %s218 = smul.addr %s215, 16
        %s219 = sadd.s32 %s217, %s218
        %s220 = smul.addr %s219, 8
        %s221 = scalar_lea.vmem %s2, %s220
        %p222 = pneg %p95
        %p223 = pneg %p92
        %s224 = smul.u32 2, %s23
        %p225 = scmp.lt.s32.totalorder %s22, 1
        %s226 = scalar_select %p225, %s22, 1
        %p227 = scmp.lt.s32.totalorder %s224, 1
        %s228 = scalar_select %p227, %s224, 1
        %s229 = smul.addr %s226, 16
        %s230 = sadd.s32 %s228, %s229
        %s231 = smul.addr %s230, 8
        %s232 = scalar_lea.vmem %s3, %s231
        %p233 = pneg %p123
        %p234 = pneg %p120
        %p235 = pneg %p151
        %p236 = pneg %p148
        %s237 = sand.u32 %s138, 1
        %s238 = scalar_lea.sflag [#allocation3], %s237
        %s239 = sand.u32 %s138, 1
        %s240 = smul.addr %s239, 256
        %s241 = scalar_lea.vmem [#allocation2], %s240
        %s242 = smul.u32 2, %s23
        %p243 = scmp.lt.s32.totalorder %s22, 1
        %s244 = scalar_select %p243, %s22, 1
        %p245 = scmp.lt.s32.totalorder %s242, 1
        %s246 = scalar_select %p245, %s242, 1
        %s247 = smul.addr %s244, 16
        %s248 = sadd.s32 %s246, %s247
        %s249 = smul.addr %s248, 8
        %s250 = scalar_lea.vmem %s2, %s249
        %s251 = smul.u32 2, %s23
        %s252 = smul.u32 2, %s23
        %p253 = scmp.lt.s32.totalorder %s22, 1
        %s254 = scalar_select %p253, %s22, 1
        %p255 = scmp.lt.s32.totalorder %s252, 1
        %s256 = scalar_select %p255, %s252, 1
        %s257 = smul.addr %s254, 16
        %s258 = sadd.s32 %s256, %s257
        %s259 = smul.addr %s258, 8
        %s260 = scalar_lea.vmem %s3, %s259
        %s261 = smul.u32 2, %s23
        %s262 = smul.u32 2, %s23
        %v263 = vld [vmem:[%s250] sm:$0xff]
        %v264 = vld [vmem:[%s250 + $0x8] sm:$0xff]
        %v265 = vld [vmem:[%s250 + $0x10] sm:$0xff]
        %v266 = vld [vmem:[%s250 + $0x18] sm:$0xff]
        %v267 = vld [vmem:[%s250 + $0x20] sm:$0xff]
        %v268 = vld [vmem:[%s250 + $0x28] sm:$0xff]
        %v269 = vld [vmem:[%s250 + $0x30] sm:$0xff]
        %v270 = vld [vmem:[%s250 + $0x38] sm:$0xff]
        %v271 = vld [vmem:[%s250 + $0x40] sm:$0xff]
        %v272 = vld [vmem:[%s250 + $0x48] sm:$0xff]
        %v273 = vld [vmem:[%s250 + $0x50] sm:$0xff]
        %v274 = vld [vmem:[%s250 + $0x58] sm:$0xff]
        %v275 = vld [vmem:[%s250 + $0x60] sm:$0xff]
        %v276 = vld [vmem:[%s250 + $0x68] sm:$0xff]
        %v277 = vld [vmem:[%s250 + $0x70] sm:$0xff]
        %v278 = vld [vmem:[%s250 + $0x78] sm:$0xff]
        %v279 = vld [vmem:[%s0] sm:$0x1]
        %v280 = vld [vmem:[%s0 + $0x1] sm:$0x1]
        %v281 = vld [vmem:[%s0 + $0x2] sm:$0x1]
        %v282 = vld [vmem:[%s0 + $0x3] sm:$0x1]
        %v283 = vld [vmem:[%s0 + $0x4] sm:$0x1]
        %v284 = vld [vmem:[%s0 + $0x5] sm:$0x1]
        %v285 = vld [vmem:[%s0 + $0x6] sm:$0x1]
        %v286 = vld [vmem:[%s0 + $0x7] sm:$0x1]
        %v295 = vlaneseq
        %v296 = vshrl.u32 %v295, 7
        %v297 = vsub.s32 0, %v296
        %v298 = vrot.slane %v279, %v297
        %v299 = vlaneseq
        %v300 = vshrl.u32 %v299, 7
        %v301 = vsub.s32 0, %v300
        %v302 = vrot.slane %v280, %v301
        %v303 = vlaneseq
        %v304 = vshrl.u32 %v303, 7
        %v305 = vsub.s32 0, %v304
        %v306 = vrot.slane %v281, %v305
        %v307 = vlaneseq
        %v308 = vshrl.u32 %v307, 7
        %v309 = vsub.s32 0, %v308
        %v310 = vrot.slane %v282, %v309
        %v311 = vlaneseq
        %v312 = vshrl.u32 %v311, 7
        %v313 = vsub.s32 0, %v312
        %v314 = vrot.slane %v283, %v313
        %v315 = vlaneseq
        %v316 = vshrl.u32 %v315, 7
        %v317 = vsub.s32 0, %v316
        %v318 = vrot.slane %v284, %v317
        %v319 = vlaneseq
        %v320 = vshrl.u32 %v319, 7
        %v321 = vsub.s32 0, %v320
        %v322 = vrot.slane %v285, %v321
        %v323 = vlaneseq
        %v324 = vshrl.u32 %v323, 7
        %v325 = vsub.s32 0, %v324
        %v326 = vrot.slane %v286, %v325
        %327 = vset.pattern.permute.xlu0 0
        %328 = vperm.xlu0 %327, %v298
        %v329 = vpop.permute.xlu0 %328
        %331 = vset.pattern.permute.xlu0 0
        %332 = vperm.xlu0 %331, %v302
        %v333 = vpop.permute.xlu0 %332
        %335 = vset.pattern.permute.xlu0 0
        %336 = vperm.xlu0 %335, %v306
        %v337 = vpop.permute.xlu0 %336
        %339 = vset.pattern.permute.xlu0 0
        %340 = vperm.xlu0 %339, %v310
        %v341 = vpop.permute.xlu0 %340
        %343 = vset.pattern.permute.xlu0 0
        %344 = vperm.xlu0 %343, %v314
        %v345 = vpop.permute.xlu0 %344
        %347 = vset.pattern.permute.xlu0 0
        %348 = vperm.xlu0 %347, %v318
        %v349 = vpop.permute.xlu0 %348
        %351 = vset.pattern.permute.xlu0 0
        %352 = vperm.xlu0 %351, %v322
        %v353 = vpop.permute.xlu0 %352
        %355 = vset.pattern.permute.xlu0 0
        %356 = vperm.xlu0 %355, %v326
        %v357 = vpop.permute.xlu0 %356
        %v359 = vmul.f32 %v263, %v329
        %v360 = vmul.f32 %v264, %v329
        %v361 = vmul.f32 %v265, %v333
        %v362 = vmul.f32 %v266, %v333
        %v363 = vmul.f32 %v267, %v337
        %v364 = vmul.f32 %v268, %v337
        %v365 = vmul.f32 %v269, %v341
        %v366 = vmul.f32 %v270, %v341
        %v367 = vmul.f32 %v271, %v345
        %v368 = vmul.f32 %v272, %v345
        %v369 = vmul.f32 %v273, %v349
        %v370 = vmul.f32 %v274, %v349
        %v371 = vmul.f32 %v275, %v353
        %v372 = vmul.f32 %v276, %v353
        %v373 = vmul.f32 %v277, %v357
        %v374 = vmul.f32 %v278, %v357
        %v375 = vld [vmem:[%s1] sm:$0x1]
        %v376 = vld [vmem:[%s1 + $0x1] sm:$0x1]
        %v377 = vld [vmem:[%s1 + $0x2] sm:$0x1]
        %v378 = vld [vmem:[%s1 + $0x3] sm:$0x1]
        %v379 = vld [vmem:[%s1 + $0x4] sm:$0x1]
        %v380 = vld [vmem:[%s1 + $0x5] sm:$0x1]
        %v381 = vld [vmem:[%s1 + $0x6] sm:$0x1]
        %v382 = vld [vmem:[%s1 + $0x7] sm:$0x1]
        %v391 = vlaneseq
        %v392 = vshrl.u32 %v391, 7
        %v393 = vsub.s32 0, %v392
        %v394 = vrot.slane %v375, %v393
        %v395 = vlaneseq
        %v396 = vshrl.u32 %v395, 7
        %v397 = vsub.s32 0, %v396
        %v398 = vrot.slane %v376, %v397
        %v399 = vlaneseq
        %v400 = vshrl.u32 %v399, 7
        %v401 = vsub.s32 0, %v400
        %v402 = vrot.slane %v377, %v401
        %v403 = vlaneseq
        %v404 = vshrl.u32 %v403, 7
        %v405 = vsub.s32 0, %v404
        %v406 = vrot.slane %v378, %v405
        %v407 = vlaneseq
        %v408 = vshrl.u32 %v407, 7
        %v409 = vsub.s32 0, %v408
        %v410 = vrot.slane %v379, %v409
        %v411 = vlaneseq
        %v412 = vshrl.u32 %v411, 7
        %v413 = vsub.s32 0, %v412
        %v414 = vrot.slane %v380, %v413
        %v415 = vlaneseq
        %v416 = vshrl.u32 %v415, 7
        %v417 = vsub.s32 0, %v416
        %v418 = vrot.slane %v381, %v417
        %v419 = vlaneseq
        %v420 = vshrl.u32 %v419, 7
        %v421 = vsub.s32 0, %v420
        %v422 = vrot.slane %v382, %v421
        %423 = vset.pattern.permute.xlu0 0
        %424 = vperm.xlu0 %423, %v394
        %v425 = vpop.permute.xlu0 %424
        %427 = vset.pattern.permute.xlu0 0
        %428 = vperm.xlu0 %427, %v398
        %v429 = vpop.permute.xlu0 %428
        %431 = vset.pattern.permute.xlu0 0
        %432 = vperm.xlu0 %431, %v402
        %v433 = vpop.permute.xlu0 %432
        %435 = vset.pattern.permute.xlu0 0
        %436 = vperm.xlu0 %435, %v406
        %v437 = vpop.permute.xlu0 %436
        %439 = vset.pattern.permute.xlu0 0
        %440 = vperm.xlu0 %439, %v410
        %v441 = vpop.permute.xlu0 %440
        %443 = vset.pattern.permute.xlu0 0
        %444 = vperm.xlu0 %443, %v414
        %v445 = vpop.permute.xlu0 %444
        %447 = vset.pattern.permute.xlu0 0
        %448 = vperm.xlu0 %447, %v418
        %v449 = vpop.permute.xlu0 %448
        %451 = vset.pattern.permute.xlu0 0
        %452 = vperm.xlu0 %451, %v422
        %v453 = vpop.permute.xlu0 %452
        %v455 = vadd.f32 %v359, %v425
        %v456 = vadd.f32 %v360, %v425
        %v457 = vadd.f32 %v361, %v429
        %v458 = vadd.f32 %v362, %v429
        %v459 = vadd.f32 %v363, %v433
        %v460 = vadd.f32 %v364, %v433
        %v461 = vadd.f32 %v365, %v437
        %v462 = vadd.f32 %v366, %v437
        %v463 = vadd.f32 %v367, %v441
        %v464 = vadd.f32 %v368, %v441
        %v465 = vadd.f32 %v369, %v445
        %v466 = vadd.f32 %v370, %v445
        %v467 = vadd.f32 %v371, %v449
        %v468 = vadd.f32 %v372, %v449
        %v469 = vadd.f32 %v373, %v453
        %v470 = vadd.f32 %v374, %v453
        %v471 = vmax.f32 %v455, 0.0
        %v472 = vmax.f32 %v456, 0.0
        %v473 = vmax.f32 %v457, 0.0
        %v474 = vmax.f32 %v458, 0.0
        %v475 = vmax.f32 %v459, 0.0
        %v476 = vmax.f32 %v460, 0.0
        %v477 = vmax.f32 %v461, 0.0
        %v478 = vmax.f32 %v462, 0.0
        %v479 = vmax.f32 %v463, 0.0
        %v480 = vmax.f32 %v464, 0.0
        %v481 = vmax.f32 %v465, 0.0
        %v482 = vmax.f32 %v466, 0.0
        %v483 = vmax.f32 %v467, 0.0
        %v484 = vmax.f32 %v468, 0.0
        %v485 = vmax.f32 %v469, 0.0
        %v486 = vmax.f32 %v470, 0.0
        %v487 = vld [vmem:[%s260] sm:$0xff]
        %v488 = vld [vmem:[%s260 + $0x8] sm:$0xff]
        %v489 = vld [vmem:[%s260 + $0x10] sm:$0xff]
        %v490 = vld [vmem:[%s260 + $0x18] sm:$0xff]
        %v491 = vld [vmem:[%s260 + $0x20] sm:$0xff]
        %v492 = vld [vmem:[%s260 + $0x28] sm:$0xff]
        %v493 = vld [vmem:[%s260 + $0x30] sm:$0xff]
        %v494 = vld [vmem:[%s260 + $0x38] sm:$0xff]
        %v495 = vld [vmem:[%s260 + $0x40] sm:$0xff]
        %v496 = vld [vmem:[%s260 + $0x48] sm:$0xff]
        %v497 = vld [vmem:[%s260 + $0x50] sm:$0xff]
        %v498 = vld [vmem:[%s260 + $0x58] sm:$0xff]
        %v499 = vld [vmem:[%s260 + $0x60] sm:$0xff]
        %v500 = vld [vmem:[%s260 + $0x68] sm:$0xff]
        %v501 = vld [vmem:[%s260 + $0x70] sm:$0xff]
        %v502 = vld [vmem:[%s260 + $0x78] sm:$0xff]
        %vm503 = vcmask 130048
        %504 = vst.msk [vmem:[%s241] sm:$0xff] %vm503, %v487
        %505 = vst.msk [vmem:[%s241 + $0x8] sm:$0xff] %vm503, %v488
        %506 = vst.msk [vmem:[%s241 + $0x10] sm:$0xff] %vm503, %v489
        %507 = vst.msk [vmem:[%s241 + $0x18] sm:$0xff] %vm503, %v490
        %508 = vst.msk [vmem:[%s241 + $0x20] sm:$0xff] %vm503, %v491
        %509 = vst.msk [vmem:[%s241 + $0x28] sm:$0xff] %vm503, %v492
        %510 = vst.msk [vmem:[%s241 + $0x30] sm:$0xff] %vm503, %v493
        %511 = vst.msk [vmem:[%s241 + $0x38] sm:$0xff] %vm503, %v494
        %512 = vst.msk [vmem:[%s241 + $0x40] sm:$0xff] %vm503, %v495
        %513 = vst.msk [vmem:[%s241 + $0x48] sm:$0xff] %vm503, %v496
        %514 = vst.msk [vmem:[%s241 + $0x50] sm:$0xff] %vm503, %v497
        %515 = vst.msk [vmem:[%s241 + $0x58] sm:$0xff] %vm503, %v498
        %516 = vst.msk [vmem:[%s241 + $0x60] sm:$0xff] %vm503, %v499
        %517 = vst.msk [vmem:[%s241 + $0x68] sm:$0xff] %vm503, %v500
        %518 = vst.msk [vmem:[%s241 + $0x70] sm:$0xff] %vm503, %v501
        %519 = vst.msk [vmem:[%s241 + $0x78] sm:$0xff] %vm503, %v502
        %s520 = scalar_lea.vmem %s241, 128 [#allocation2]
        %521 = vst.msk [vmem:[%s520] sm:$0xff] %vm503, %v471
        %522 = vst.msk [vmem:[%s520 + $0x8] sm:$0xff] %vm503, %v472
        %523 = vst.msk [vmem:[%s520 + $0x10] sm:$0xff] %vm503, %v473
        %524 = vst.msk [vmem:[%s520 + $0x18] sm:$0xff] %vm503, %v474
        %525 = vst.msk [vmem:[%s520 + $0x20] sm:$0xff] %vm503, %v475
        %526 = vst.msk [vmem:[%s520 + $0x28] sm:$0xff] %vm503, %v476
        %527 = vst.msk [vmem:[%s520 + $0x30] sm:$0xff] %vm503, %v477
        %528 = vst.msk [vmem:[%s520 + $0x38] sm:$0xff] %vm503, %v478
        %529 = vst.msk [vmem:[%s520 + $0x40] sm:$0xff] %vm503, %v479
        %530 = vst.msk [vmem:[%s520 + $0x48] sm:$0xff] %vm503, %v480
        %531 = vst.msk [vmem:[%s520 + $0x50] sm:$0xff] %vm503, %v481
        %532 = vst.msk [vmem:[%s520 + $0x58] sm:$0xff] %vm503, %v482
        %533 = vst.msk [vmem:[%s520 + $0x60] sm:$0xff] %vm503, %v483
        %534 = vst.msk [vmem:[%s520 + $0x68] sm:$0xff] %vm503, %v484
        %535 = vst.msk [vmem:[%s520 + $0x70] sm:$0xff] %vm503, %v485
        %536 = vst.msk [vmem:[%s520 + $0x78] sm:$0xff] %vm503, %v486
        %s537 = sand.u32 %s138, 1
        %s538 = scalar_lea.sflag [#allocation3], %s537
        %s539 = sand.u32 %s138, 1
        %s540 = smul.addr %s539, 256
        %s541 = scalar_lea.vmem [#allocation2], %s540
        // Predicated region
        $region37: #{decoder_forward.3} parent=35 // pred_check
          %p542 = pneg %p148
        $region38: #{decoder_forward.3} parent=35 // pred_check_branch
          %544 = sbr.rel (%p542) target = $region40
        $region39: #{decoder_forward.3} parent=35 // pred_region
          %s545 = smul.u32 2, %s23
          %s547 = ssub.s32 4096, 4096
          %548 = vsyncadd %s538, %s547
          %s549 = smul.addr %s22, 32
          %s550 = sadd.s32 %s545, %s549
          %s551 = smul.addr %s550, 128
          %s552 = scalar_lea.hbm %s4, %s551
          %s553 = sshll.u32 %s541, 4
          %s554 = int_to_ptr.vmem [resolvable:$true] %s553
          %559 = dma.vmem_to_hbm [thread:$0]  %s554, 4096, %s552, %s538, 128, 128, 8
        $region40: #{decoder_forward.3} parent=35 // pred_fallthru
          _
      $region36: #{decoder_forward.3} parent=5 // pred_fallthru
        _
      %p560 = scmp.le.s32.totalorder 2, %s13
      // Predicated region
      $region41: #{decoder_forward.3} parent=5 // pred_check
        %p561 = pneg %p560
      $region42: #{decoder_forward.3} parent=5 // pred_check_branch
        %563 = sbr.rel (%p561) target = $region44
      $region43: #{decoder_forward.3} parent=5 // pred_region
        %s564 = ssub.s32 %s13, 2
        // Predicated region
        $region45: #{decoder_forward.3} parent=43 // pred_check
          %p565 = pneg %p154
        $region46: #{decoder_forward.3} parent=43 // pred_check_branch
          %567 = sbr.rel (%p565) target = $region48
        $region47: #{decoder_forward.3} parent=43 // pred_region
          %s568 = sand.u32 %s139, 1
          %s569 = scalar_lea.sflag [#allocation3], %s568
          %s570 = sand.u32 %s139, 1
          %s571 = smul.addr %s570, 256
          %s572 = scalar_lea.vmem [#allocation2], %s571
          %573 = dma.done %s569, 4096
        $region48: #{decoder_forward.3} parent=43 // pred_fallthru
          _
      $region44: #{decoder_forward.3} parent=5 // pred_fallthru
        _
    $region6: #{decoder_forward.3} parent=1 // loop_footer
      %s17 = sadd.s32 1, %s13
    $region7: #{decoder_forward.3} parent=1 // loop_footer_branch
      %12 = sbr.rel target = $region3
    $region8: #{decoder_forward.3} parent=1 // loop_exit
      _
    %574 = vsyncpa [#allocation3], 1
    %s575 = scalar_lea.sflag [#allocation3], 1
    %576 = vsyncpa %s575, 1

// kernel: decoder_forward.2
$region0: #{decoder_forward.2}
  #allocation0 [shape = 'u32[]', space=smem, size = 0x4, offset = 0x4, fixed_abs, tag = 'smem constant byte address 0x4 - core index']
  #allocation1 [shape = 'u32[144,128]{1,0:T(1,128)}', space=vmem, size = 0x12000, scoped, tag = 'internal scratch']
  #allocation2 [shape = 'f32[8,320]{1,0:T(8,128)}', space=vmem, size = 0x3000, scoped, tag = 'scratch operand']
  %s0 = inlined_call_operand.vmem [shape: f32[8,100], index: 0, kind: input, shape index: {}]
  %s1 = inlined_call_operand.vmem [shape: f32[1,320], index: 1, kind: input, shape index: {}]
  %s2 = inlined_call_operand.vmem [shape: f32[2,4,420], index: 2, kind: input, shape index: {}]
  %s3 = inlined_call_operand.vmem [shape: f32[2,8,320], index: 3, kind: output, shape index: {0}]
  %s4 = inlined_call_operand.vmem [shape: f32[8,1], index: 4, kind: output, shape index: {1}]
  %s5 = inlined_call_operand.vmem [shape: f32[8,1], index: 5, kind: output, shape index: {2}]
  %6 = xla_tuple %s3, %s4, %s5
  %s7 = sld [smem:[#allocation0]]
  $region65: #{decoder_forward.2} parent=0
    _
  %s9 = ssub.s32 1, %s7
  %s10 = scalar_select 0, %s9, %s7
  loop: start=0, step=1, limit=4
  $region2: #{decoder_forward.2} parent=0 // loop_pre_header
    _
  $region3: #{decoder_forward.2} parent=0 // loop_header
    %s12 = sphi 0, %s16
    %p13 = scmp.ge.s32.totalorder %s12, 4
    %s20 = sphi 0, %s20
    %s22 = sphi 0, %s20
    %s23 = sphi 0, %s22
    %s37 = sphi 0, %s23
    %s41 = sphi 0, %s41
    %s43 = sphi 0, %s41
    %s44 = sphi 0, %s43
    %s58 = sphi 0, %s44
    %s64 = sphi 0, %s66
    %s67 = sphi 0, %s64
    %s68 = sphi 0, %s67
    %s84 = sphi 0, %s68
    %s90 = sphi 0, %s92
    %s93 = sphi 0, %s90
    %s94 = sphi 0, %s93
    %s110 = sphi 0, %s94
    %s114 = sphi 0, %s114
    %s116 = sphi 0, %s114
    %s117 = sphi 0, %s116
    %s131 = sphi 0, %s117
    %s135 = sphi 0, %s135
    %s137 = sphi 0, %s135
    %s138 = sphi 0, %s137
    %s152 = sphi 0, %s138
  $region4: #{decoder_forward.2} parent=0 // loop_header_branch
    %15 = sbr.rel (%p13) target = $region8
  $region5: #{decoder_forward.2} parent=0 // loop_body
    %s17 = ssub.s32 %s12, 1
    %s18 = ssub.s32 %s12, 2
    %s19 = sadd.s32 %s12, 1
    %s21 = sadd.s32 %s20, 1
    %p24 = scmp.eq.s32.totalorder %s12, 1
    %p25 = scmp.ne.s32.totalorder %s20, %s22
    %p26 = scmp.eq.s32.totalorder %s12, 0
    %p27 = por %p25, %p26
    %p28 = scmp.ne.s32.totalorder %s20, %s22
    %p29 = scmp.eq.s32.totalorder %s17, 1
    %p30 = por %p28, %p29
    %p31 = scmp.ne.s32.totalorder %s22, %s23
    %p32 = scmp.eq.s32.totalorder %s17, 0
    %p33 = por %p31, %p32
    %p34 = scmp.ne.s32.totalorder %s22, %s23
    %p35 = scmp.eq.s32.totalorder %s18, 1
    %p36 = por %p34, %p35
    %p38 = scmp.ne.s32.totalorder %s23, %s37
    %p39 = scmp.eq.s32.totalorder %s18, 0
    %p40 = por %p38, %p39
    %s42 = sadd.s32 %s41, 1
    %p45 = scmp.eq.s32.totalorder %s12, 1
    %p46 = scmp.ne.s32.totalorder %s41, %s43
    %p47 = scmp.eq.s32.totalorder %s12, 0
    %p48 = por %p46, %p47
    %p49 = scmp.ne.s32.totalorder %s41, %s43
    %p50 = scmp.eq.s32.totalorder %s17, 1
    %p51 = por %p49, %p50
    %p52 = scmp.ne.s32.totalorder %s43, %s44
    %p53 = scmp.eq.s32.totalorder %s17, 0
    %p54 = por %p52, %p53
    %p55 = scmp.ne.s32.totalorder %s43, %s44
    %p56 = scmp.eq.s32.totalorder %s18, 1
    %p57 = por %p55, %p56
    %p59 = scmp.ne.s32.totalorder %s44, %s58
    %p60 = scmp.eq.s32.totalorder %s18, 0
    %p61 = por %p59, %p60
    %s62 = ssub.s32 %s12, %s19
    %p63 = scmp.eq.s32.totalorder %s62, 0
    %s65 = sadd.s32 %s64, 1
    %s66 = scalar_select %p63, %s64, %s65
    %p69 = pneg %p63
    %p70 = scmp.eq.s32.totalorder %s12, 1
    %p71 = por %p69, %p70
    %p72 = scmp.ne.s32.totalorder %s64, %s67
    %p73 = scmp.eq.s32.totalorder %s12, 0
    %p74 = por %p72, %p73
    %p75 = scmp.ne.s32.totalorder %s64, %s67
    %p76 = scmp.eq.s32.totalorder %s17, 1
    %p77 = por %p75, %p76
    %p78 = scmp.ne.s32.totalorder %s67, %s68
    %p79 = scmp.eq.s32.totalorder %s17, 0
    %p80 = por %p78, %p79
    %p81 = scmp.ne.s32.totalorder %s67, %s68
    %p82 = scmp.eq.s32.totalorder %s18, 1
    %p83 = por %p81, %p82
    %p85 = scmp.ne.s32.totalorder %s68, %s84
    %p86 = scmp.eq.s32.totalorder %s18, 0
    %p87 = por %p85, %p86
    %s88 = ssub.s32 %s12, %s19
    %p89 = scmp.eq.s32.totalorder %s88, 0
    %s91 = sadd.s32 %s90, 1
    %s92 = scalar_select %p89, %s90, %s91
    %p95 = pneg %p89
    %p96 = scmp.eq.s32.totalorder %s12, 1
    %p97 = por %p95, %p96
    %p98 = scmp.ne.s32.totalorder %s90, %s93
    %p99 = scmp.eq.s32.totalorder %s12, 0
    %p100 = por %p98, %p99
    %p101 = scmp.ne.s32.totalorder %s90, %s93
    %p102 = scmp.eq.s32.totalorder %s17, 1
    %p103 = por %p101, %p102
    %p104 = scmp.ne.s32.totalorder %s93, %s94
    %p105 = scmp.eq.s32.totalorder %s17, 0
    %p106 = por %p104, %p105
    %p107 = scmp.ne.s32.totalorder %s93, %s94
    %p108 = scmp.eq.s32.totalorder %s18, 1
    %p109 = por %p107, %p108
    %p111 = scmp.ne.s32.totalorder %s94, %s110
    %p112 = scmp.eq.s32.totalorder %s18, 0
    %p113 = por %p111, %p112
    %s115 = sadd.s32 %s114, 1
    %p118 = scmp.eq.s32.totalorder %s12, 1
    %p119 = scmp.ne.s32.totalorder %s114, %s116
    %p120 = scmp.eq.s32.totalorder %s12, 0
    %p121 = por %p119, %p120
    %p122 = scmp.ne.s32.totalorder %s114, %s116
    %p123 = scmp.eq.s32.totalorder %s17, 1
    %p124 = por %p122, %p123
    %p125 = scmp.ne.s32.totalorder %s116, %s117
    %p126 = scmp.eq.s32.totalorder %s17, 0
    %p127 = por %p125, %p126
    %p128 = scmp.ne.s32.totalorder %s116, %s117
    %p129 = scmp.eq.s32.totalorder %s18, 1
    %p130 = por %p128, %p129
    %p132 = scmp.ne.s32.totalorder %s117, %s131
    %p133 = scmp.eq.s32.totalorder %s18, 0
    %p134 = por %p132, %p133
    %s136 = sadd.s32 %s135, 1
    %p139 = scmp.eq.s32.totalorder %s12, 1
    %p140 = scmp.ne.s32.totalorder %s135, %s137
    %p141 = scmp.eq.s32.totalorder %s12, 0
    %p142 = por %p140, %p141
    %p143 = scmp.ne.s32.totalorder %s135, %s137
    %p144 = scmp.eq.s32.totalorder %s17, 1
    %p145 = por %p143, %p144
    %p146 = scmp.ne.s32.totalorder %s137, %s138
    %p147 = scmp.eq.s32.totalorder %s17, 0
    %p148 = por %p146, %p147
    %p149 = scmp.ne.s32.totalorder %s137, %s138
    %p150 = scmp.eq.s32.totalorder %s18, 1
    %p151 = por %p149, %p150
    %p153 = scmp.ne.s32.totalorder %s138, %s152
    %p154 = scmp.eq.s32.totalorder %s18, 0
    %p155 = por %p153, %p154
    %p156 = scmp.le.s32.totalorder 1, %s12
    %p157 = scmp.lt.s32.totalorder %s12, 3
    %p158 = pnand %p156, %p157
    %p159 = pneg %p158
    // Predicated region
    $region9: #{decoder_forward.2} parent=5 // pred_check
      _
    $region10: #{decoder_forward.2} parent=5 // pred_check_branch
      %161 = sbr.rel (%p158) target = $region12
    $region11: #{decoder_forward.2} parent=5 // pred_region
      %s162 = ssub.s32 %s12, 1
      // Predicated region
      $region13: #{decoder_forward.2} parent=11 // pred_check
        %p163 = pneg %p33
      $region14: #{decoder_forward.2} parent=11 // pred_check_branch
        %165 = sbr.rel (%p163) target = $region16
      $region15: #{decoder_forward.2} parent=11 // pred_region
        _
      $region16: #{decoder_forward.2} parent=11 // pred_fallthru
        _
      // Predicated region
      $region17: #{decoder_forward.2} parent=11 // pred_check
        %p166 = pneg %p54
      $region18: #{decoder_forward.2} parent=11 // pred_check_branch
        %168 = sbr.rel (%p166) target = $region20
      $region19: #{decoder_forward.2} parent=11 // pred_region
        _
      $region20: #{decoder_forward.2} parent=11 // pred_fallthru
        _
    $region12: #{decoder_forward.2} parent=5 // pred_fallthru
      _
    %p169 = scmp.lt.s32.totalorder %s12, 2
    // Predicated region
    $region21: #{decoder_forward.2} parent=5 // pred_check
      %p170 = pneg %p169
    $region22: #{decoder_forward.2} parent=5 // pred_check_branch
      %172 = sbr.rel (%p170) target = $region24
    $region23: #{decoder_forward.2} parent=5 // pred_region
      // Predicated region
      $region25: #{decoder_forward.2} parent=23 // pred_check
        %p173 = pneg %p74
      $region26: #{decoder_forward.2} parent=23 // pred_check_branch
        %175 = sbr.rel (%p173) target = $region28
      $region27: #{decoder_forward.2} parent=23 // pred_region
        %p176 = scmp.lt.s32.totalorder %s12, 1
        %s177 = scalar_select %p176, %s12, 1
        %s178 = smul.addr %s177, 4
        %s179 = smul.addr %s178, 4
        %s180 = scalar_lea.vmem %s2, %s179
      $region28: #{decoder_forward.2} parent=23 // pred_fallthru
        _
    $region24: #{decoder_forward.2} parent=5 // pred_fallthru
      _
    %p181 = scmp.le.s32.totalorder 1, %s12
    %p182 = scmp.lt.s32.totalorder %s12, 3
    %p183 = pnand %p181, %p182
    %p184 = pneg %p183
    // Predicated region
    $region29: #{decoder_forward.2} parent=5 // pred_check
      _
    $region30: #{decoder_forward.2} parent=5 // pred_check_branch
      %186 = sbr.rel (%p183) target = $region32
    $region31: #{decoder_forward.2} parent=5 // pred_region
      %s187 = ssub.s32 %s12, 1
      %p188 = pneg %p33
      %p189 = pneg %p30
      %p190 = pneg %p54
      %p191 = pneg %p51
      %p192 = scmp.lt.s32.totalorder %s17, 1
      %s193 = scalar_select %p192, %s17, 1
      %s194 = smul.addr %s193, 4
      %s195 = smul.addr %s194, 4
      %s196 = scalar_lea.vmem %s2, %s195
      %p197 = pneg %p80
      %p198 = pneg %p77
      %p199 = pneg %p106
      %p200 = pneg %p103
      %p201 = scmp.lt.s32.totalorder %s17, 1
      %s202 = scalar_select %p201, %s17, 1
      %s203 = smul.addr %s202, 3
      %s204 = smul.addr %s203, 8
      %s205 = scalar_lea.vmem %s3, %s204
      %p206 = pneg %p127
      %p207 = pneg %p124
      %p208 = pneg %p148
      %p209 = pneg %p145
      %p210 = scmp.lt.s32.totalorder %s17, 1
      %s211 = scalar_select %p210, %s17, 1
      %s212 = smul.addr %s211, 4
      %s213 = smul.addr %s212, 4
      %s214 = scalar_lea.vmem %s2, %s213
      %p215 = scmp.lt.s32.totalorder %s17, 1
      %s216 = scalar_select %p215, %s17, 1
      %s217 = smul.addr %s216, 3
      %s218 = smul.addr %s217, 8
      %s219 = scalar_lea.vmem %s3, %s218
      %p220 = scmp.eq.s32.totalorder %s17, 0
      // Predicated region
      $region33: #{decoder_forward.2} parent=31 // pred_check
        %p221 = pneg %p220
      $region34: #{decoder_forward.2} parent=31 // pred_check_branch
        %223 = sbr.rel (%p221) target = $region36
      $region35: #{decoder_forward.2} parent=31 // pred_region
        %vm224 = vcmask 7168
        %225 = vst.msk [vmem:[%s4] sm:$0xff] %vm224, 0.0
        %226 = vst.msk [vmem:[%s5] sm:$0xff] %vm224, 0.0
      $region36: #{decoder_forward.2} parent=31 // pred_fallthru
        _
      %v227 = vld [vmem:[%s214] sm:$0xff]
      %v228 = vld [vmem:[%s214 + $0x8] sm:$0xf]
      %v229 = vld [vmem:[%s0] sm:$0xff]
      %v232 = vcombine.high %v227, %v227
      %vm233 = vcmask 31744
      %v235 = vsel %vm233, %v229, 0
      %vm237 = vcmask 1043456
      %v238 = vsel %vm237, %v227, 0
      %v240 = vsel %vm237, %v232, 0
      %v242 = vsel %vm237, %v228, 0
      %244 = vmatprep.subr.mxu0 %v240
      %245 = vmatpush1.msra.mxu0 %v238
      %246 = vmatprep.subr.mxu0 0.0
      %247 = vmatpush1.msra.mxu0 0.0
      %248 = vmatprep.subr.mxu0 0.0
      %249 = vmatpush1.msra.mxu0 0.0
      %250 = vmatprep.subr.mxu0 0.0
      %251 = vmatpush1.msra.mxu0 0.0
      %252 = vmatprep.subr.mxu0 0.0
      %253 = vmatpush1.msra.mxu0 0.0
      %254 = vmatprep.subr.mxu0 0.0
      %255 = vmatpush1.msra.mxu0 0.0
      %256 = vmatprep.subr.mxu0 0.0
      %257 = vmatpush1.msra.mxu0 0.0
      %258 = vmatprep.subr.mxu0 0.0
      %259 = vmatpush1.msra.mxu0 0.0
      %260 = vmatprep.subr.mxu0 0.0
      %261 = vmatpush1.msra.mxu0 0.0
      %262 = vmatprep.subr.mxu0 0.0
      %263 = vmatpush1.msra.mxu0 0.0
      %264 = vmatprep.subr.mxu0 0.0
      %265 = vmatpush1.msra.mxu0 0.0
      %266 = vmatprep.subr.mxu0 0.0
      %267 = vmatpush1.msra.mxu0 0.0
      %268 = vmatprep.subr.mxu0 0.0
      %269 = vmatpush1.msra.mxu0 0.0
      %270 = vmatprep.subr.mxu0 0.0
      %271 = vmatpush1.msra.mxu0 0.0
      %272 = vmatprep.subr.mxu0 0.0
      %273 = vmatpush1.msra.mxu0 0.0
      %274 = vmatprep.subr.mxu0 0.0
      %275 = vmatpush1.msra.mxu0 0.0
      %276 = vmatprep.subr.mxu0 0.0
      %277 = vmatpush1.msra.mxu0 0.0
      %278 = vmatprep.subr.mxu0 0.0
      %279 = vmatpush1.msra.mxu0 0.0
      %280 = vmatprep.subr.mxu0 0.0
      %281 = vmatpush1.msra.mxu0 0.0
      %282 = vmatprep.subr.mxu0 0.0
      %283 = vmatpush1.msra.mxu0 0.0
      %284 = vmatprep.subr.mxu0 0.0
      %285 = vmatpush1.msra.mxu0 0.0
      %286 = vmatprep.subr.mxu0 0.0
      %287 = vmatpush1.msra.mxu0 0.0
      %288 = vmatprep.subr.mxu0 0.0
      %289 = vmatpush1.msra.mxu0 0.0
      %290 = vmatprep.subr.mxu0 0.0
      %291 = vmatpush1.msra.mxu0 0.0
      %292 = vmatprep.subr.mxu0 0.0
      %293 = vmatpush1.msra.mxu0 0.0
      %294 = vmatprep.subr.mxu0 0.0
      %295 = vmatpush1.msra.mxu0 0.0
      %296 = vmatprep.subr.mxu0 0.0
      %297 = vmatpush1.msra.mxu0 0.0
      %298 = vmatprep.subr.mxu0 0.0
      %299 = vmatpush1.msra.mxu0 0.0
      %300 = vmatprep.subr.mxu0 0.0
      %301 = vmatpush1.msra.mxu0 0.0
      %302 = vmatprep.subr.mxu0 0.0
      %303 = vmatpush1.msra.mxu0 0.0
      %304 = vmatprep.subr.mxu0 0.0
      %305 = vmatpush1.msra.mxu0 0.0
      %306 = vmatprep.subr.mxu0 0.0
      %307 = vmatpush1.msra.mxu0 0.0
      %308 = vmatprep.mubr.f32.mxu0 0.0
      %309 = vmatmul.mubr.f32.gmra.mrb[0].mxu0 %v235
      %v310 = vpop.f32.mrb[0].mxu0
      %v311 = vadd.f32 0.0, %v310
      %v312 = vpop.f32.mrb[0].mxu0
      %v313 = vadd.f32 0.0, %v312
      %314 = vdwg.mxu0
      %315 = vmatprep.subr.mxu0 0.0
      %316 = vmatpush1.msra.mxu0 %v242
      %317 = vmatprep.subr.mxu0 0.0
      %318 = vmatpush1.msra.mxu0 0.0
      %319 = vmatprep.subr.mxu0 0.0
      %320 = vmatpush1.msra.mxu0 0.0
      %321 = vmatprep.subr.mxu0 0.0
      %322 = vmatpush1.msra.mxu0 0.0
      %323 = vmatprep.subr.mxu0 0.0
      %324 = vmatpush1.msra.mxu0 0.0
      %325 = vmatprep.subr.mxu0 0.0
      %326 = vmatpush1.msra.mxu0 0.0
      %327 = vmatprep.subr.mxu0 0.0
      %328 = vmatpush1.msra.mxu0 0.0
      %329 = vmatprep.subr.mxu0 0.0
      %330 = vmatpush1.msra.mxu0 0.0
      %331 = vmatprep.subr.mxu0 0.0
      %332 = vmatpush1.msra.mxu0 0.0
      %333 = vmatprep.subr.mxu0 0.0
      %334 = vmatpush1.msra.mxu0 0.0
      %335 = vmatprep.subr.mxu0 0.0
      %336 = vmatpush1.msra.mxu0 0.0
      %337 = vmatprep.subr.mxu0 0.0
      %338 = vmatpush1.msra.mxu0 0.0
      %339 = vmatprep.subr.mxu0 0.0
      %340 = vmatpush1.msra.mxu0 0.0
      %341 = vmatprep.subr.mxu0 0.0
      %342 = vmatpush1.msra.mxu0 0.0
      %343 = vmatprep.subr.mxu0 0.0
      %344 = vmatpush1.msra.mxu0 0.0
      %345 = vmatprep.subr.mxu0 0.0
      %346 = vmatpush1.msra.mxu0 0.0
      %347 = vmatprep.subr.mxu0 0.0
      %348 = vmatpush1.msra.mxu0 0.0
      %349 = vmatprep.subr.mxu0 0.0
      %350 = vmatpush1.msra.mxu0 0.0
      %351 = vmatprep.subr.mxu0 0.0
      %352 = vmatpush1.msra.mxu0 0.0
      %353 = vmatprep.subr.mxu0 0.0
      %354 = vmatpush1.msra.mxu0 0.0
      %355 = vmatprep.subr.mxu0 0.0
      %356 = vmatpush1.msra.mxu0 0.0
      %357 = vmatprep.subr.mxu0 0.0
      %358 = vmatpush1.msra.mxu0 0.0
      %359 = vmatprep.subr.mxu0 0.0
      %360 = vmatpush1.msra.mxu0 0.0
      %361 = vmatprep.subr.mxu0 0.0
      %362 = vmatpush1.msra.mxu0 0.0
      %363 = vmatprep.subr.mxu0 0.0
      %364 = vmatpush1.msra.mxu0 0.0
      %365 = vmatprep.subr.mxu0 0.0
      %366 = vmatpush1.msra.mxu0 0.0
      %367 = vmatprep.subr.mxu0 0.0
      %368 = vmatpush1.msra.mxu0 0.0
      %369 = vmatprep.subr.mxu0 0.0
      %370 = vmatpush1.msra.mxu0 0.0
      %371 = vmatprep.subr.mxu0 0.0
      %372 = vmatpush1.msra.mxu0 0.0
      %373 = vmatprep.subr.mxu0 0.0
      %374 = vmatpush1.msra.mxu0 0.0
      %375 = vmatprep.subr.mxu0 0.0
      %376 = vmatpush1.msra.mxu0 0.0
      %377 = vmatprep.subr.mxu0 0.0
      %378 = vmatpush1.msra.mxu0 0.0
      %379 = vmatprep.mubr.f32.mxu0 0.0
      %380 = vmatmul.mubr.f32.gmra.mrb[0].mxu0 %v235
      %v381 = vpop.f32.mrb[0].mxu0
      %v382 = vadd.f32 0.0, %v381
      %v383 = vpop.f32.mrb[0].mxu0
      %384 = vdwg.mxu0
      %385 = vst [vmem:[#allocation2] sm:$0xff] %v311
      %386 = vst [vmem:[#allocation2 + $0x8] sm:$0xff] %v313
      %vm387 = vcmask 523264
      %388 = vst.msk [vmem:[#allocation2 + $0x10] sm:$0xff] %vm387, %v382
      %v389 = vld [vmem:[%s214] sm:$0xff]
      %v390 = vld [vmem:[%s214 + $0x8] sm:$0xf]
      %v391 = vld [vmem:[%s0] sm:$0xff]
      %393 = vrot.lane.b32.xlu0 %v391, 124
      %v394 = vpop.permute.xlu0 %393
      %v397 = vcombine.high %v389, %v389
      %398 = vrot.lane.b32.xlu0 %v389, 127
      %v399 = vpop.permute.xlu0 %398
      %400 = vrot.lane.b32.xlu0 %v397, 127
      %v401 = vpop.permute.xlu0 %400
      %402 = vrot.lane.b32.xlu0 %v390, 127
      %v403 = vpop.permute.xlu0 %402
      %vm404 = vcmask 1039360
      %v405 = vsel %vm404, %v399, %v401
      %v406 = vsel %vm404, %v401, %v403
      %v407 = vsel %vm233, %v394, 0
      %v409 = vsel %vm237, %v405, 0
      %v411 = vsel %vm237, %v406, 0
      %v413 = vsel %vm237, %v403, 0
      %415 = vmatprep.subr.mxu0 %v411
      %416 = vmatpush1.msra.mxu0 %v409
      %417 = vmatprep.subr.mxu0 0.0
      %418 = vmatpush1.msra.mxu0 0.0
      %419 = vmatprep.subr.mxu0 0.0
      %420 = vmatpush1.msra.mxu0 0.0
      %421 = vmatprep.subr.mxu0 0.0
      %422 = vmatpush1.msra.mxu0 0.0
      %423 = vmatprep.subr.mxu0 0.0
      %424 = vmatpush1.msra.mxu0 0.0
      %425 = vmatprep.subr.mxu0 0.0
      %426 = vmatpush1.msra.mxu0 0.0
      %427 = vmatprep.subr.mxu0 0.0
      %428 = vmatpush1.msra.mxu0 0.0
      %429 = vmatprep.subr.mxu0 0.0
      %430 = vmatpush1.msra.mxu0 0.0
      %431 = vmatprep.subr.mxu0 0.0
      %432 = vmatpush1.msra.mxu0 0.0
      %433 = vmatprep.subr.mxu0 0.0
      %434 = vmatpush1.msra.mxu0 0.0
      %435 = vmatprep.subr.mxu0 0.0
      %436 = vmatpush1.msra.mxu0 0.0
      %437 = vmatprep.subr.mxu0 0.0
      %438 = vmatpush1.msra.mxu0 0.0
      %439 = vmatprep.subr.mxu0 0.0
      %440 = vmatpush1.msra.mxu0 0.0
      %441 = vmatprep.subr.mxu0 0.0
      %442 = vmatpush1.msra.mxu0 0.0
      %443 = vmatprep.subr.mxu0 0.0
      %444 = vmatpush1.msra.mxu0 0.0
      %445 = vmatprep.subr.mxu0 0.0
      %446 = vmatpush1.msra.mxu0 0.0
      %447 = vmatprep.subr.mxu0 0.0
      %448 = vmatpush1.msra.mxu0 0.0
      %449 = vmatprep.subr.mxu0 0.0
      %450 = vmatpush1.msra.mxu0 0.0
      %451 = vmatprep.subr.mxu0 0.0
      %452 = vmatpush1.msra.mxu0 0.0
      %453 = vmatprep.subr.mxu0 0.0
      %454 = vmatpush1.msra.mxu0 0.0
      %455 = vmatprep.subr.mxu0 0.0
      %456 = vmatpush1.msra.mxu0 0.0
      %457 = vmatprep.subr.mxu0 0.0
      %458 = vmatpush1.msra.mxu0 0.0
      %459 = vmatprep.subr.mxu0 0.0
      %460 = vmatpush1.msra.mxu0 0.0
      %461 = vmatprep.subr.mxu0 0.0
      %462 = vmatpush1.msra.mxu0 0.0
      %463 = vmatprep.subr.mxu0 0.0
      %464 = vmatpush1.msra.mxu0 0.0
      %465 = vmatprep.subr.mxu0 0.0
      %466 = vmatpush1.msra.mxu0 0.0
      %467 = vmatprep.subr.mxu0 0.0
      %468 = vmatpush1.msra.mxu0 0.0
      %469 = vmatprep.subr.mxu0 0.0
      %470 = vmatpush1.msra.mxu0 0.0
      %471 = vmatprep.subr.mxu0 0.0
      %472 = vmatpush1.msra.mxu0 0.0
      %473 = vmatprep.subr.mxu0 0.0
      %474 = vmatpush1.msra.mxu0 0.0
      %475 = vmatprep.subr.mxu0 0.0
      %476 = vmatpush1.msra.mxu0 0.0
      %477 = vmatprep.subr.mxu0 0.0
      %478 = vmatpush1.msra.mxu0 0.0
      %479 = vmatprep.mubr.f32.mxu0 0.0
      %480 = vmatmul.mubr.f32.gmra.mrb[0].mxu0 %v407
      %v481 = vpop.f32.mrb[0].mxu0
      %v482 = vadd.f32 0.0, %v481
      %v483 = vpop.f32.mrb[0].mxu0
      %v484 = vadd.f32 0.0, %v483
      %485 = vdwg.mxu0
      %486 = vmatprep.subr.mxu0 0.0
      %487 = vmatpush1.msra.mxu0 %v413
      %488 = vmatprep.subr.mxu0 0.0
      %489 = vmatpush1.msra.mxu0 0.0
      %490 = vmatprep.subr.mxu0 0.0
      %491 = vmatpush1.msra.mxu0 0.0
      %492 = vmatprep.subr.mxu0 0.0
      %493 = vmatpush1.msra.mxu0 0.0
      %494 = vmatprep.subr.mxu0 0.0
      %495 = vmatpush1.msra.mxu0 0.0
      %496 = vmatprep.subr.mxu0 0.0
      %497 = vmatpush1.msra.mxu0 0.0
      %498 = vmatprep.subr.mxu0 0.0
      %499 = vmatpush1.msra.mxu0 0.0
      %500 = vmatprep.subr.mxu0 0.0
      %501 = vmatpush1.msra.mxu0 0.0
      %502 = vmatprep.subr.mxu0 0.0
      %503 = vmatpush1.msra.mxu0 0.0
      %504 = vmatprep.subr.mxu0 0.0
      %505 = vmatpush1.msra.mxu0 0.0
      %506 = vmatprep.subr.mxu0 0.0
      %507 = vmatpush1.msra.mxu0 0.0
      %508 = vmatprep.subr.mxu0 0.0
      %509 = vmatpush1.msra.mxu0 0.0
      %510 = vmatprep.subr.mxu0 0.0
      %511 = vmatpush1.msra.mxu0 0.0
      %512 = vmatprep.subr.mxu0 0.0
      %513 = vmatpush1.msra.mxu0 0.0
      %514 = vmatprep.subr.mxu0 0.0
      %515 = vmatpush1.msra.mxu0 0.0
      %516 = vmatprep.subr.mxu0 0.0
      %517 = vmatpush1.msra.mxu0 0.0
      %518 = vmatprep.subr.mxu0 0.0
      %519 = vmatpush1.msra.mxu0 0.0
      %520 = vmatprep.subr.mxu0 0.0
      %521 = vmatpush1.msra.mxu0 0.0
      %522 = vmatprep.subr.mxu0 0.0
      %523 = vmatpush1.msra.mxu0 0.0
      %524 = vmatprep.subr.mxu0 0.0
      %525 = vmatpush1.msra.mxu0 0.0
      %526 = vmatprep.subr.mxu0 0.0
      %527 = vmatpush1.msra.mxu0 0.0
      %528 = vmatprep.subr.mxu0 0.0
      %529 = vmatpush1.msra.mxu0 0.0
      %530 = vmatprep.subr.mxu0 0.0
      %531 = vmatpush1.msra.mxu0 0.0
      %532 = vmatprep.subr.mxu0 0.0
      %533 = vmatpush1.msra.mxu0 0.0
      %534 = vmatprep.subr.mxu0 0.0
      %535 = vmatpush1.msra.mxu0 0.0
      %536 = vmatprep.subr.mxu0 0.0
      %537 = vmatpush1.msra.mxu0 0.0
      %538 = vmatprep.subr.mxu0 0.0
      %539 = vmatpush1.msra.mxu0 0.0
      %540 = vmatprep.subr.mxu0 0.0
      %541 = vmatpush1.msra.mxu0 0.0
      %542 = vmatprep.subr.mxu0 0.0
      %543 = vmatpush1.msra.mxu0 0.0
      %544 = vmatprep.subr.mxu0 0.0
      %545 = vmatpush1.msra.mxu0 0.0
      %546 = vmatprep.subr.mxu0 0.0
      %547 = vmatpush1.msra.mxu0 0.0
      %548 = vmatprep.subr.mxu0 0.0
      %549 = vmatpush1.msra.mxu0 0.0
      %550 = vmatprep.mubr.f32.mxu0 0.0
      %551 = vmatmul.mubr.f32.gmra.mrb[0].mxu0 %v407
      %v552 = vpop.f32.mrb[0].mxu0
      %v553 = vadd.f32 0.0, %v552
      %v554 = vpop.f32.mrb[0].mxu0
      %555 = vdwg.mxu0
      %v556 = vld [vmem:[#allocation2] sm:$0xff]
      %v557 = vld [vmem:[#allocation2 + $0x8] sm:$0xff]
      %v558 = vld [vmem:[#allocation2 + $0x10] sm:$0xff]
      %v559 = vadd.f32 %v556, %v482
      %v560 = vadd.f32 %v557, %v484
      %v561 = vadd.f32 %v558, %v553
      %562 = vst [vmem:[#allocation2] sm:$0xff] %v559
      %563 = vst [vmem:[#allocation2 + $0x8] sm:$0xff] %v560
      %564 = vst.msk [vmem:[#allocation2 + $0x10] sm:$0xff] %vm387, %v561
      %v565 = vld [vmem:[%s214] sm:$0xff]
      %v566 = vld [vmem:[%s214 + $0x8] sm:$0xf]
      %v567 = vld [vmem:[%s0] sm:$0xff]
      %569 = vrot.lane.b32.xlu0 %v567, 120
      %v570 = vpop.permute.xlu0 %569
      %v573 = vcombine.high %v565, %v565
      %574 = vrot.lane.b32.xlu0 %v565, 126
      %v575 = vpop.permute.xlu0 %574
      %576 = vrot.lane.b32.xlu0 %v573, 126
      %v577 = vpop.permute.xlu0 %576
      %578 = vrot.lane.b32.xlu0 %v566, 126
      %v579 = vpop.permute.xlu0 %578
      %vm580 = vcmask 1031168
      %v581 = vsel %vm580, %v575, %v577
      %v582 = vsel %vm580, %v577, %v579
      %v583 = vsel %vm233, %v570, 0
      %v585 = vsel %vm237, %v581, 0
      %v587 = vsel %vm237, %v582, 0
      %v589 = vsel %vm237, %v579, 0
      %591 = vmatprep.subr.mxu0 %v587
      %592 = vmatpush1.msra.mxu0 %v585
      %593 = vmatprep.subr.mxu0 0.0
      %594 = vmatpush1.msra.mxu0 0.0
      %595 = vmatprep.subr.mxu0 0.0
      %596 = vmatpush1.msra.mxu0 0.0
      %597 = vmatprep.subr.mxu0 0.0
      %598 = vmatpush1.msra.mxu0 0.0
      %599 = vmatprep.subr.mxu0 0.0
      %600 = vmatpush1.msra.mxu0 0.0
      %601 = vmatprep.subr.mxu0 0.0
      %602 = vmatpush1.msra.mxu0 0.0
      %603 = vmatprep.subr.mxu0 0.0
      %604 = vmatpush1.msra.mxu0 0.0
      %605 = vmatprep.subr.mxu0 0.0
      %606 = vmatpush1.msra.mxu0 0.0
      %607 = vmatprep.subr.mxu0 0.0
      %608 = vmatpush1.msra.mxu0 0.0
      %609 = vmatprep.subr.mxu0 0.0
      %610 = vmatpush1.msra.mxu0 0.0
      %611 = vmatprep.subr.mxu0 0.0
      %612 = vmatpush1.msra.mxu0 0.0
      %613 = vmatprep.subr.mxu0 0.0
      %614 = vmatpush1.msra.mxu0 0.0
      %615 = vmatprep.subr.mxu0 0.0
      %616 = vmatpush1.msra.mxu0 0.0
      %617 = vmatprep.subr.mxu0 0.0
      %618 = vmatpush1.msra.mxu0 0.0
      %619 = vmatprep.subr.mxu0 0.0
      %620 = vmatpush1.msra.mxu0 0.0
      %621 = vmatprep.subr.mxu0 0.0
      %622 = vmatpush1.msra.mxu0 0.0
      %623 = vmatprep.subr.mxu0 0.0
      %624 = vmatpush1.msra.mxu0 0.0
      %625 = vmatprep.subr.mxu0 0.0
      %626 = vmatpush1.msra.mxu0 0.0
      %627 = vmatprep.subr.mxu0 0.0
      %628 = vmatpush1.msra.mxu0 0.0
      %629 = vmatprep.subr.mxu0 0.0
      %630 = vmatpush1.msra.mxu0 0.0
      %631 = vmatprep.subr.mxu0 0.0
      %632 = vmatpush1.msra.mxu0 0.0
      %633 = vmatprep.subr.mxu0 0.0
      %634 = vmatpush1.msra.mxu0 0.0
      %635 = vmatprep.subr.mxu0 0.0
      %636 = vmatpush1.msra.mxu0 0.0
      %637 = vmatprep.subr.mxu0 0.0
      %638 = vmatpush1.msra.mxu0 0.0
      %639 = vmatprep.subr.mxu0 0.0
      %640 = vmatpush1.msra.mxu0 0.0
      %641 = vmatprep.subr.mxu0 0.0
      %642 = vmatpush1.msra.mxu0 0.0
      %643 = vmatprep.subr.mxu0 0.0
      %644 = vmatpush1.msra.mxu0 0.0
      %645 = vmatprep.subr.mxu0 0.0
      %646 = vmatpush1.msra.mxu0 0.0
      %647 = vmatprep.subr.mxu0 0.0
      %648 = vmatpush1.msra.mxu0 0.0
      %649 = vmatprep.subr.mxu0 0.0
      %650 = vmatpush1.msra.mxu0 0.0
      %651 = vmatprep.subr.mxu0 0.0
      %652 = vmatpush1.msra.mxu0 0.0
      %653 = vmatprep.subr.mxu0 0.0
      %654 = vmatpush1.msra.mxu0 0.0
      %655 = vmatprep.mubr.f32.mxu0 0.0
      %656 = vmatmul.mubr.f32.gmra.mrb[0].mxu0 %v583
      %v657 = vpop.f32.mrb[0].mxu0
      %v658 = vadd.f32 0.0, %v657
      %v659 = vpop.f32.mrb[0].mxu0
      %v660 = vadd.f32 0.0, %v659
      %661 = vdwg.mxu0
      %662 = vmatprep.subr.mxu0 0.0
      %663 = vmatpush1.msra.mxu0 %v589
      %664 = vmatprep.subr.mxu0 0.0
      %665 = vmatpush1.msra.mxu0 0.0
      %666 = vmatprep.subr.mxu0 0.0
      %667 = vmatpush1.msra.mxu0 0.0
      %668 = vmatprep.subr.mxu0 0.0
      %669 = vmatpush1.msra.mxu0 0.0
      %670 = vmatprep.subr.mxu0 0.0
      %671 = vmatpush1.msra.mxu0 0.0
      %672 = vmatprep.subr.mxu0 0.0
      %673 = vmatpush1.msra.mxu0 0.0
      %674 = vmatprep.subr.mxu0 0.0
      %675 = vmatpush1.msra.mxu0 0.0
      %676 = vmatprep.subr.mxu0 0.0
      %677 = vmatpush1.msra.mxu0 0.0
      %678 = vmatprep.subr.mxu0 0.0
      %679 = vmatpush1.msra.mxu0 0.0
      %680 = vmatprep.subr.mxu0 0.0
      %681 = vmatpush1.msra.mxu0 0.0
      %682 = vmatprep.subr.mxu0 0.0
      %683 = vmatpush1.msra.mxu0 0.0
      %684 = vmatprep.subr.mxu0 0.0
      %685 = vmatpush1.msra.mxu0 0.0
      %686 = vmatprep.subr.mxu0 0.0
      %687 = vmatpush1.msra.mxu0 0.0
      %688 = vmatprep.subr.mxu0 0.0
      %689 = vmatpush1.msra.mxu0 0.0
      %690 = vmatprep.subr.mxu0 0.0
      %691 = vmatpush1.msra.mxu0 0.0
      %692 = vmatprep.subr.mxu0 0.0
      %693 = vmatpush1.msra.mxu0 0.0
      %694 = vmatprep.subr.mxu0 0.0
      %695 = vmatpush1.msra.mxu0 0.0
      %696 = vmatprep.subr.mxu0 0.0
      %697 = vmatpush1.msra.mxu0 0.0
      %698 = vmatprep.subr.mxu0 0.0
      %699 = vmatpush1.msra.mxu0 0.0
      %700 = vmatprep.subr.mxu0 0.0
      %701 = vmatpush1.msra.mxu0 0.0
      %702 = vmatprep.subr.mxu0 0.0
      %703 = vmatpush1.msra.mxu0 0.0
      %704 = vmatprep.subr.mxu0 0.0
      %705 = vmatpush1.msra.mxu0 0.0
      %706 = vmatprep.subr.mxu0 0.0
      %707 = vmatpush1.msra.mxu0 0.0
      %708 = vmatprep.subr.mxu0 0.0
      %709 = vmatpush1.msra.mxu0 0.0
      %710 = vmatprep.subr.mxu0 0.0
      %711 = vmatpush1.msra.mxu0 0.0
      %712 = vmatprep.subr.mxu0 0.0
      %713 = vmatpush1.msra.mxu0 0.0
      %714 = vmatprep.subr.mxu0 0.0
      %715 = vmatpush1.msra.mxu0 0.0
      %716 = vmatprep.subr.mxu0 0.0
      %717 = vmatpush1.msra.mxu0 0.0
      %718 = vmatprep.subr.mxu0 0.0
      %719 = vmatpush1.msra.mxu0 0.0
      %720 = vmatprep.subr.mxu0 0.0
      %721 = vmatpush1.msra.mxu0 0.0
      %722 = vmatprep.subr.mxu0 0.0
      %723 = vmatpush1.msra.mxu0 0.0
      %724 = vmatprep.subr.mxu0 0.0
      %725 = vmatpush1.msra.mxu0 0.0
      %726 = vmatprep.mubr.f32.mxu0 0.0
      %727 = vmatmul.mubr.f32.gmra.mrb[0].mxu0 %v583
      %v728 = vpop.f32.mrb[0].mxu0
      %v729 = vadd.f32 0.0, %v728
      %v730 = vpop.f32.mrb[0].mxu0
      %731 = vdwg.mxu0
      %v732 = vld [vmem:[#allocation2] sm:$0xff]
      %v733 = vld [vmem:[#allocation2 + $0x8] sm:$0xff]
      %v734 = vld [vmem:[#allocation2 + $0x10] sm:$0xff]
      %v735 = vadd.f32 %v732, %v658
      %v736 = vadd.f32 %v733, %v660
      %v737 = vadd.f32 %v734, %v729
      %738 = vst [vmem:[#allocation2] sm:$0xff] %v735
      %739 = vst [vmem:[#allocation2 + $0x8] sm:$0xff] %v736
      %740 = vst.msk [vmem:[#allocation2 + $0x10] sm:$0xff] %vm387, %v737
      %v741 = vld [vmem:[%s214] sm:$0xff]
      %v742 = vld [vmem:[%s214 + $0x8] sm:$0xf]
      %v743 = vld [vmem:[%s0] sm:$0xff]
      %745 = vrot.lane.b32.xlu0 %v743, 116
      %v746 = vpop.permute.xlu0 %745
      %v749 = vcombine.high %v741, %v741
      %750 = vrot.lane.b32.xlu0 %v741, 125
      %v751 = vpop.permute.xlu0 %750
      %752 = vrot.lane.b32.xlu0 %v749, 125
      %v753 = vpop.permute.xlu0 %752
      %754 = vrot.lane.b32.xlu0 %v742, 125
      %v755 = vpop.permute.xlu0 %754
      %vm756 = vcmask 1022976
      %v757 = vsel %vm756, %v751, %v753
      %v758 = vsel %vm756, %v753, %v755
      %v759 = vsel %vm233, %v746, 0
      %v761 = vsel %vm237, %v757, 0
      %v763 = vsel %vm237, %v758, 0
      %v765 = vsel %vm237, %v755, 0
      %767 = vmatprep.subr.mxu0 %v763
      %768 = vmatpush1.msra.mxu0 %v761
      %769 = vmatprep.subr.mxu0 0.0
      %770 = vmatpush1.msra.mxu0 0.0
      %771 = vmatprep.subr.mxu0 0.0
      %772 = vmatpush1.msra.mxu0 0.0
      %773 = vmatprep.subr.mxu0 0.0
      %774 = vmatpush1.msra.mxu0 0.0
      %775 = vmatprep.subr.mxu0 0.0
      %776 = vmatpush1.msra.mxu0 0.0
      %777 = vmatprep.subr.mxu0 0.0
      %778 = vmatpush1.msra.mxu0 0.0
      %779 = vmatprep.subr.mxu0 0.0
      %780 = vmatpush1.msra.mxu0 0.0
      %781 = vmatprep.subr.mxu0 0.0
      %782 = vmatpush1.msra.mxu0 0.0
      %783 = vmatprep.subr.mxu0 0.0
      %784 = vmatpush1.msra.mxu0 0.0
      %785 = vmatprep.subr.mxu0 0.0
      %786 = vmatpush1.msra.mxu0 0.0
      %787 = vmatprep.subr.mxu0 0.0
      %788 = vmatpush1.msra.mxu0 0.0
      %789 = vmatprep.subr.mxu0 0.0
      %790 = vmatpush1.msra.mxu0 0.0
      %791 = vmatprep.subr.mxu0 0.0
      %792 = vmatpush1.msra.mxu0 0.0
      %793 = vmatprep.subr.mxu0 0.0
      %794 = vmatpush1.msra.mxu0 0.0
      %795 = vmatprep.subr.mxu0 0.0
      %796 = vmatpush1.msra.mxu0 0.0
      %797 = vmatprep.subr.mxu0 0.0
      %798 = vmatpush1.msra.mxu0 0.0
      %799 = vmatprep.subr.mxu0 0.0
      %800 = vmatpush1.msra.mxu0 0.0
      %801 = vmatprep.subr.mxu0 0.0
      %802 = vmatpush1.msra.mxu0 0.0
      %803 = vmatprep.subr.mxu0 0.0
      %804 = vmatpush1.msra.mxu0 0.0
      %805 = vmatprep.subr.mxu0 0.0
      %806 = vmatpush1.msra.mxu0 0.0
      %807 = vmatprep.subr.mxu0 0.0
      %808 = vmatpush1.msra.mxu0 0.0
      %809 = vmatprep.subr.mxu0 0.0
      %810 = vmatpush1.msra.mxu0 0.0
      %811 = vmatprep.subr.mxu0 0.0
      %812 = vmatpush1.msra.mxu0 0.0
      %813 = vmatprep.subr.mxu0 0.0
      %814 = vmatpush1.msra.mxu0 0.0
      %815 = vmatprep.subr.mxu0 0.0
      %816 = vmatpush1.msra.mxu0 0.0
      %817 = vmatprep.subr.mxu0 0.0
      %818 = vmatpush1.msra.mxu0 0.0
      %819 = vmatprep.subr.mxu0 0.0
      %820 = vmatpush1.msra.mxu0 0.0
      %821 = vmatprep.subr.mxu0 0.0
      %822 = vmatpush1.msra.mxu0 0.0
      %823 = vmatprep.subr.mxu0 0.0
      %824 = vmatpush1.msra.mxu0 0.0
      %825 = vmatprep.subr.mxu0 0.0
      %826 = vmatpush1.msra.mxu0 0.0
      %827 = vmatprep.subr.mxu0 0.0
      %828 = vmatpush1.msra.mxu0 0.0
      %829 = vmatprep.subr.mxu0 0.0
      %830 = vmatpush1.msra.mxu0 0.0
      %831 = vmatprep.mubr.f32.mxu0 0.0
      %832 = vmatmul.mubr.f32.gmra.mrb[0].mxu0 %v759
      %v833 = vpop.f32.mrb[0].mxu0
      %v834 = vadd.f32 0.0, %v833
      %v835 = vpop.f32.mrb[0].mxu0
      %v836 = vadd.f32 0.0, %v835
      %837 = vdwg.mxu0
      %838 = vmatprep.subr.mxu0 0.0
      %839 = vmatpush1.msra.mxu0 %v765
      %840 = vmatprep.subr.mxu0 0.0
      %841 = vmatpush1.msra.mxu0 0.0
      %842 = vmatprep.subr.mxu0 0.0
      %843 = vmatpush1.msra.mxu0 0.0
      %844 = vmatprep.subr.mxu0 0.0
      %845 = vmatpush1.msra.mxu0 0.0
      %846 = vmatprep.subr.mxu0 0.0
      %847 = vmatpush1.msra.mxu0 0.0
      %848 = vmatprep.subr.mxu0 0.0
      %849 = vmatpush1.msra.mxu0 0.0
      %850 = vmatprep.subr.mxu0 0.0
      %851 = vmatpush1.msra.mxu0 0.0
      %852 = vmatprep.subr.mxu0 0.0
      %853 = vmatpush1.msra.mxu0 0.0
      %854 = vmatprep.subr.mxu0 0.0
      %855 = vmatpush1.msra.mxu0 0.0
      %856 = vmatprep.subr.mxu0 0.0
      %857 = vmatpush1.msra.mxu0 0.0
      %858 = vmatprep.subr.mxu0 0.0
      %859 = vmatpush1.msra.mxu0 0.0
      %860 = vmatprep.subr.mxu0 0.0
      %861 = vmatpush1.msra.mxu0 0.0
      %862 = vmatprep.subr.mxu0 0.0
      %863 = vmatpush1.msra.mxu0 0.0
      %864 = vmatprep.subr.mxu0 0.0
      %865 = vmatpush1.msra.mxu0 0.0
      %866 = vmatprep.subr.mxu0 0.0
      %867 = vmatpush1.msra.mxu0 0.0
      %868 = vmatprep.subr.mxu0 0.0
      %869 = vmatpush1.msra.mxu0 0.0
      %870 = vmatprep.subr.mxu0 0.0
      %871 = vmatpush1.msra.mxu0 0.0
      %872 = vmatprep.subr.mxu0 0.0
      %873 = vmatpush1.msra.mxu0 0.0
      %874 = vmatprep.subr.mxu0 0.0
      %875 = vmatpush1.msra.mxu0 0.0
      %876 = vmatprep.subr.mxu0 0.0
      %877 = vmatpush1.msra.mxu0 0.0
      %878 = vmatprep.subr.mxu0 0.0
      %879 = vmatpush1.msra.mxu0 0.0
      %880 = vmatprep.subr.mxu0 0.0
      %881 = vmatpush1.msra.mxu0 0.0
      %882 = vmatprep.subr.mxu0 0.0
      %883 = vmatpush1.msra.mxu0 0.0
      %884 = vmatprep.subr.mxu0 0.0
      %885 = vmatpush1.msra.mxu0 0.0
      %886 = vmatprep.subr.mxu0 0.0
      %887 = vmatpush1.msra.mxu0 0.0
      %888 = vmatprep.subr.mxu0 0.0
      %889 = vmatpush1.msra.mxu0 0.0
      %890 = vmatprep.subr.mxu0 0.0
      %891 = vmatpush1.msra.mxu0 0.0
      %892 = vmatprep.subr.mxu0 0.0
      %893 = vmatpush1.msra.mxu0 0.0
      %894 = vmatprep.subr.mxu0 0.0
      %895 = vmatpush1.msra.mxu0 0.0
      %896 = vmatprep.subr.mxu0 0.0
      %897 = vmatpush1.msra.mxu0 0.0
      %898 = vmatprep.subr.mxu0 0.0
      %899 = vmatpush1.msra.mxu0 0.0
      %900 = vmatprep.subr.mxu0 0.0
      %901 = vmatpush1.msra.mxu0 0.0
      %902 = vmatprep.mubr.f32.mxu0 0.0
      %903 = vmatmul.mubr.f32.gmra.mrb[0].mxu0 %v759
      %v904 = vpop.f32.mrb[0].mxu0
      %v905 = vadd.f32 0.0, %v904
      %v906 = vpop.f32.mrb[0].mxu0
      %907 = vdwg.mxu0
      %v908 = vld [vmem:[#allocation2] sm:$0xff]
      %v909 = vld [vmem:[#allocation2 + $0x8] sm:$0xff]
      %v910 = vld [vmem:[#allocation2 + $0x10] sm:$0xff]
      %v911 = vadd.f32 %v908, %v834
      %v912 = vadd.f32 %v909, %v836
      %v913 = vadd.f32 %v910, %v905
      %914 = vst [vmem:[#allocation2] sm:$0xff] %v911
      %915 = vst [vmem:[#allocation2 + $0x8] sm:$0xff] %v912
      %916 = vst.msk [vmem:[#allocation2 + $0x10] sm:$0xff] %vm387, %v913
      %v917 = vld [vmem:[%s214] sm:$0xff]
      %v918 = vld [vmem:[%s214 + $0x8] sm:$0xf]
      %v919 = vld [vmem:[%s0] sm:$0xff]
      %921 = vrot.lane.b32.xlu0 %v919, 112
      %v922 = vpop.permute.xlu0 %921
      %v925 = vcombine.high %v917, %v917
      %926 = vrot.lane.b32.xlu0 %v917, 124
      %v927 = vpop.permute.xlu0 %926
      %928 = vrot.lane.b32.xlu0 %v925, 124
      %v929 = vpop.permute.xlu0 %928
      %930 = vrot.lane.b32.xlu0 %v918, 124
      %v931 = vpop.permute.xlu0 %930
      %vm932 = vcmask 1014784
      %v933 = vsel %vm932, %v927, %v929
      %v934 = vsel %vm932, %v929, %v931
      %v935 = vsel %vm233, %v922, 0
      %v937 = vsel %vm237, %v933, 0
      %v939 = vsel %vm237, %v934, 0
      %v941 = vsel %vm237, %v931, 0
      %943 = vmatprep.subr.mxu0 %v939
      %944 = vmatpush1.msra.mxu0 %v937
      %945 = vmatprep.subr.mxu0 0.0
      %946 = vmatpush1.msra.mxu0 0.0
      %947 = vmatprep.subr.mxu0 0.0
      %948 = vmatpush1.msra.mxu0 0.0
      %949 = vmatprep.subr.mxu0 0.0
      %950 = vmatpush1.msra.mxu0 0.0
      %951 = vmatprep.subr.mxu0 0.0
      %952 = vmatpush1.msra.mxu0 0.0
      %953 = vmatprep.subr.mxu0 0.0
      %954 = vmatpush1.msra.mxu0 0.0
      %955 = vmatprep.subr.mxu0 0.0
      %956 = vmatpush1.msra.mxu0 0.0
      %957 = vmatprep.subr.mxu0 0.0
      %958 = vmatpush1.msra.mxu0 0.0
      %959 = vmatprep.subr.mxu0 0.0
      %960 = vmatpush1.msra.mxu0 0.0
      %961 = vmatprep.subr.mxu0 0.0
      %962 = vmatpush1.msra.mxu0 0.0
      %963 = vmatprep.subr.mxu0 0.0
      %964 = vmatpush1.msra.mxu0 0.0
      %965 = vmatprep.subr.mxu0 0.0
      %966 = vmatpush1.msra.mxu0 0.0
      %967 = vmatprep.subr.mxu0 0.0
      %968 = vmatpush1.msra.mxu0 0.0
      %969 = vmatprep.subr.mxu0 0.0
      %970 = vmatpush1.msra.mxu0 0.0
      %971 = vmatprep.subr.mxu0 0.0
      %972 = vmatpush1.msra.mxu0 0.0
      %973 = vmatprep.subr.mxu0 0.0
      %974 = vmatpush1.msra.mxu0 0.0
      %975 = vmatprep.subr.mxu0 0.0
      %976 = vmatpush1.msra.mxu0 0.0
      %977 = vmatprep.subr.mxu0 0.0
      %978 = vmatpush1.msra.mxu0 0.0
      %979 = vmatprep.subr.mxu0 0.0
      %980 = vmatpush1.msra.mxu0 0.0
      %981 = vmatprep.subr.mxu0 0.0
      %982 = vmatpush1.msra.mxu0 0.0
      %983 = vmatprep.subr.mxu0 0.0
      %984 = vmatpush1.msra.mxu0 0.0
      %985 = vmatprep.subr.mxu0 0.0
      %986 = vmatpush1.msra.mxu0 0.0
      %987 = vmatprep.subr.mxu0 0.0
      %988 = vmatpush1.msra.mxu0 0.0
      %989 = vmatprep.subr.mxu0 0.0
      %990 = vmatpush1.msra.mxu0 0.0
      %991 = vmatprep.subr.mxu0 0.0
      %992 = vmatpush1.msra.mxu0 0.0
      %993 = vmatprep.subr.mxu0 0.0
      %994 = vmatpush1.msra.mxu0 0.0
      %995 = vmatprep.subr.mxu0 0.0
      %996 = vmatpush1.msra.mxu0 0.0
      %997 = vmatprep.subr.mxu0 0.0
      %998 = vmatpush1.msra.mxu0 0.0
      %999 = vmatprep.subr.mxu0 0.0
      %1000 = vmatpush1.msra.mxu0 0.0
      %1001 = vmatprep.subr.mxu0 0.0
      %1002 = vmatpush1.msra.mxu0 0.0
      %1003 = vmatprep.subr.mxu0 0.0
      %1004 = vmatpush1.msra.mxu0 0.0
      %1005 = vmatprep.subr.mxu0 0.0
      %1006 = vmatpush1.msra.mxu0 0.0
      %1007 = vmatprep.mubr.f32.mxu0 0.0
      %1008 = vmatmul.mubr.f32.gmra.mrb[0].mxu0 %v935
      %v1009 = vpop.f32.mrb[0].mxu0
      %v1010 = vadd.f32 0.0, %v1009
      %v1011 = vpop.f32.mrb[0].mxu0
      %v1012 = vadd.f32 0.0, %v1011
      %1013 = vdwg.mxu0
      %1014 = vmatprep.subr.mxu0 0.0
      %1015 = vmatpush1.msra.mxu0 %v941
      %1016 = vmatprep.subr.mxu0 0.0
      %1017 = vmatpush1.msra.mxu0 0.0
      %1018 = vmatprep.subr.mxu0 0.0
      %1019 = vmatpush1.msra.mxu0 0.0
      %1020 = vmatprep.subr.mxu0 0.0
      %1021 = vmatpush1.msra.mxu0 0.0
      %1022 = vmatprep.subr.mxu0 0.0
      %1023 = vmatpush1.msra.mxu0 0.0
      %1024 = vmatprep.subr.mxu0 0.0
      %1025 = vmatpush1.msra.mxu0 0.0
      %1026 = vmatprep.subr.mxu0 0.0
      %1027 = vmatpush1.msra.mxu0 0.0
      %1028 = vmatprep.subr.mxu0 0.0
      %1029 = vmatpush1.msra.mxu0 0.0
      %1030 = vmatprep.subr.mxu0 0.0
      %1031 = vmatpush1.msra.mxu0 0.0
      %1032 = vmatprep.subr.mxu0 0.0
      %1033 = vmatpush1.msra.mxu0 0.0
      %1034 = vmatprep.subr.mxu0 0.0
      %1035 = vmatpush1.msra.mxu0 0.0
      %1036 = vmatprep.subr.mxu0 0.0
      %1037 = vmatpush1.msra.mxu0 0.0
      %1038 = vmatprep.subr.mxu0 0.0
      %1039 = vmatpush1.msra.mxu0 0.0
      %1040 = vmatprep.subr.mxu0 0.0
      %1041 = vmatpush1.msra.mxu0 0.0
      %1042 = vmatprep.subr.mxu0 0.0
      %1043 = vmatpush1.msra.mxu0 0.0
      %1044 = vmatprep.subr.mxu0 0.0
      %1045 = vmatpush1.msra.mxu0 0.0
      %1046 = vmatprep.subr.mxu0 0.0
      %1047 = vmatpush1.msra.mxu0 0.0
      %1048 = vmatprep.subr.mxu0 0.0
      %1049 = vmatpush1.msra.mxu0 0.0
      %1050 = vmatprep.subr.mxu0 0.0
      %1051 = vmatpush1.msra.mxu0 0.0
      %1052 = vmatprep.subr.mxu0 0.0
      %1053 = vmatpush1.msra.mxu0 0.0
      %1054 = vmatprep.subr.mxu0 0.0
      %1055 = vmatpush1.msra.mxu0 0.0
      %1056 = vmatprep.subr.mxu0 0.0
      %1057 = vmatpush1.msra.mxu0 0.0
      %1058 = vmatprep.subr.mxu0 0.0
      %1059 = vmatpush1.msra.mxu0 0.0
      %1060 = vmatprep.subr.mxu0 0.0
      %1061 = vmatpush1.msra.mxu0 0.0
      %1062 = vmatprep.subr.mxu0 0.0
      %1063 = vmatpush1.msra.mxu0 0.0
      %1064 = vmatprep.subr.mxu0 0.0
      %1065 = vmatpush1.msra.mxu0 0.0
      %1066 = vmatprep.subr.mxu0 0.0
      %1067 = vmatpush1.msra.mxu0 0.0
      %1068 = vmatprep.subr.mxu0 0.0
      %1069 = vmatpush1.msra.mxu0 0.0
      %1070 = vmatprep.subr.mxu0 0.0
      %1071 = vmatpush1.msra.mxu0 0.0
      %1072 = vmatprep.subr.mxu0 0.0
      %1073 = vmatpush1.msra.mxu0 0.0
      %1074 = vmatprep.subr.mxu0 0.0
      %1075 = vmatpush1.msra.mxu0 0.0
      %1076 = vmatprep.subr.mxu0 0.0
      %1077 = vmatpush1.msra.mxu0 0.0
      %1078 = vmatprep.mubr.f32.mxu0 0.0
      %1079 = vmatmul.mubr.f32.gmra.mrb[0].mxu0 %v935
      %v1080 = vpop.f32.mrb[0].mxu0
      %v1081 = vadd.f32 0.0, %v1080
      %v1082 = vpop.f32.mrb[0].mxu0
      %1083 = vdwg.mxu0
      %v1084 = vld [vmem:[#allocation2] sm:$0xff]
      %v1085 = vld [vmem:[#allocation2 + $0x8] sm:$0xff]
      %v1086 = vld [vmem:[#allocation2 + $0x10] sm:$0xff]
      %v1087 = vadd.f32 %v1084, %v1010
      %v1088 = vadd.f32 %v1085, %v1012
      %v1089 = vadd.f32 %v1086, %v1081
      %1090 = vst [vmem:[#allocation2] sm:$0xff] %v1087
      %1091 = vst [vmem:[#allocation2 + $0x8] sm:$0xff] %v1088
      %1092 = vst.msk [vmem:[#allocation2 + $0x10] sm:$0xff] %vm387, %v1089
      %v1093 = vld [vmem:[%s214] sm:$0xff]
      %v1094 = vld [vmem:[%s214 + $0x8] sm:$0xf]
      %v1095 = vld [vmem:[%s0] sm:$0xff]
      %1097 = vrot.lane.b32.xlu0 %v1095, 108
      %v1098 = vpop.permute.xlu0 %1097
      %v1101 = vcombine.high %v1093, %v1093
      %1102 = vrot.lane.b32.xlu0 %v1093, 108
      %v1103 = vpop.permute.xlu0 %1102
      %1104 = vrot.lane.b32.xlu0 %v1101, 108
      %v1105 = vpop.permute.xlu0 %1104
      %1106 = vrot.lane.b32.xlu0 %v1094, 108
      %v1107 = vpop.permute.xlu0 %1106
      %vm1108 = vcmask 883712
      %v1109 = vsel %vm1108, %v1103, %v1105
      %v1110 = vsel %vm1108, %v1105, %v1107
      %v1111 = vsel %vm233, %v1098, 0
      %v1113 = vsel %vm237, %v1109, 0
      %v1115 = vsel %vm237, %v1110, 0
      %v1117 = vsel %vm237, %v1107, 0
      %1119 = vmatprep.subr.mxu0 %v1115
      %1120 = vmatpush1.msra.mxu0 %v1113
      %1121 = vmatprep.subr.mxu0 0.0
      %1122 = vmatpush1.msra.mxu0 0.0
      %1123 = vmatprep.subr.mxu0 0.0
      %1124 = vmatpush1.msra.mxu0 0.0
      %1125 = vmatprep.subr.mxu0 0.0
      %1126 = vmatpush1.msra.mxu0 0.0
      %1127 = vmatprep.subr.mxu0 0.0
      %1128 = vmatpush1.msra.mxu0 0.0
      %1129 = vmatprep.subr.mxu0 0.0
      %1130 = vmatpush1.msra.mxu0 0.0
      %1131 = vmatprep.subr.mxu0 0.0
      %1132 = vmatpush1.msra.mxu0 0.0
      %1133 = vmatprep.subr.mxu0 0.0
      %1134 = vmatpush1.msra.mxu0 0.0
      %1135 = vmatprep.subr.mxu0 0.0
      %1136 = vmatpush1.msra.mxu0 0.0
      %1137 = vmatprep.subr.mxu0 0.0
      %1138 = vmatpush1.msra.mxu0 0.0
      %1139 = vmatprep.subr.mxu0 0.0
      %1140 = vmatpush1.msra.mxu0 0.0
      %1141 = vmatprep.subr.mxu0 0.0
      %1142 = vmatpush1.msra.mxu0 0.0
      %1143 = vmatprep.subr.mxu0 0.0
      %1144 = vmatpush1.msra.mxu0 0.0
      %1145 = vmatprep.subr.mxu0 0.0
      %1146 = vmatpush1.msra.mxu0 0.0
      %1147 = vmatprep.subr.mxu0 0.0
      %1148 = vmatpush1.msra.mxu0 0.0
      %1149 = vmatprep.subr.mxu0 0.0
      %1150 = vmatpush1.msra.mxu0 0.0
      %1151 = vmatprep.subr.mxu0 0.0
      %1152 = vmatpush1.msra.mxu0 0.0
      %1153 = vmatprep.subr.mxu0 0.0
      %1154 = vmatpush1.msra.mxu0 0.0
      %1155 = vmatprep.subr.mxu0 0.0
      %1156 = vmatpush1.msra.mxu0 0.0
      %1157 = vmatprep.subr.mxu0 0.0
      %1158 = vmatpush1.msra.mxu0 0.0
      %1159 = vmatprep.subr.mxu0 0.0
      %1160 = vmatpush1.msra.mxu0 0.0
      %1161 = vmatprep.subr.mxu0 0.0
      %1162 = vmatpush1.msra.mxu0 0.0
      %1163 = vmatprep.subr.mxu0 0.0
      %1164 = vmatpush1.msra.mxu0 0.0
      %1165 = vmatprep.subr.mxu0 0.0
      %1166 = vmatpush1.msra.mxu0 0.0
      %1167 = vmatprep.subr.mxu0 0.0
      %1168 = vmatpush1.msra.mxu0 0.0
      %1169 = vmatprep.subr.mxu0 0.0
      %1170 = vmatpush1.msra.mxu0 0.0
      %1171 = vmatprep.subr.mxu0 0.0
      %1172 = vmatpush1.msra.mxu0 0.0
      %1173 = vmatprep.subr.mxu0 0.0
      %1174 = vmatpush1.msra.mxu0 0.0
      %1175 = vmatprep.subr.mxu0 0.0
      %1176 = vmatpush1.msra.mxu0 0.0
      %1177 = vmatprep.subr.mxu0 0.0
      %1178 = vmatpush1.msra.mxu0 0.0
      %1179 = vmatprep.subr.mxu0 0.0
      %1180 = vmatpush1.msra.mxu0 0.0
      %1181 = vmatprep.subr.mxu0 0.0
      %1182 = vmatpush1.msra.mxu0 0.0
      %1183 = vmatprep.mubr.f32.mxu0 0.0
      %1184 = vmatmul.mubr.f32.gmra.mrb[0].mxu0 %v1111
      %v1185 = vpop.f32.mrb[0].mxu0
      %v1186 = vadd.f32 0.0, %v1185
      %v1187 = vpop.f32.mrb[0].mxu0
      %v1188 = vadd.f32 0.0, %v1187
      %1189 = vdwg.mxu0
      %1190 = vmatprep.subr.mxu0 0.0
      %1191 = vmatpush1.msra.mxu0 %v1117
      %1192 = vmatprep.subr.mxu0 0.0
      %1193 = vmatpush1.msra.mxu0 0.0
      %1194 = vmatprep.subr.mxu0 0.0
      %1195 = vmatpush1.msra.mxu0 0.0
      %1196 = vmatprep.subr.mxu0 0.0
      %1197 = vmatpush1.msra.mxu0 0.0
      %1198 = vmatprep.subr.mxu0 0.0
      %1199 = vmatpush1.msra.mxu0 0.0
      %1200 = vmatprep.subr.mxu0 0.0
      %1201 = vmatpush1.msra.mxu0 0.0
      %1202 = vmatprep.subr.mxu0 0.0
      %1203 = vmatpush1.msra.mxu0 0.0
      %1204 = vmatprep.subr.mxu0 0.0
      %1205 = vmatpush1.msra.mxu0 0.0
      %1206 = vmatprep.subr.mxu0 0.0
      %1207 = vmatpush1.msra.mxu0 0.0
      %1208 = vmatprep.subr.mxu0 0.0
      %1209 = vmatpush1.msra.mxu0 0.0
      %1210 = vmatprep.subr.mxu0 0.0
      %1211 = vmatpush1.msra.mxu0 0.0
      %1212 = vmatprep.subr.mxu0 0.0
      %1213 = vmatpush1.msra.mxu0 0.0
      %1214 = vmatprep.subr.mxu0 0.0
      %1215 = vmatpush1.msra.mxu0 0.0
      %1216 = vmatprep.subr.mxu0 0.0
      %1217 = vmatpush1.msra.mxu0 0.0
      %1218 = vmatprep.subr.mxu0 0.0
      %1219 = vmatpush1.msra.mxu0 0.0
      %1220 = vmatprep.subr.mxu0 0.0
      %1221 = vmatpush1.msra.mxu0 0.0
      %1222 = vmatprep.subr.mxu0 0.0
      %1223 = vmatpush1.msra.mxu0 0.0
      %1224 = vmatprep.subr.mxu0 0.0
      %1225 = vmatpush1.msra.mxu0 0.0
      %1226 = vmatprep.subr.mxu0 0.0
      %1227 = vmatpush1.msra.mxu0 0.0
      %1228 = vmatprep.subr.mxu0 0.0
      %1229 = vmatpush1.msra.mxu0 0.0
      %1230 = vmatprep.subr.mxu0 0.0
      %1231 = vmatpush1.msra.mxu0 0.0
      %1232 = vmatprep.subr.mxu0 0.0
      %1233 = vmatpush1.msra.mxu0 0.0
      %1234 = vmatprep.subr.mxu0 0.0
      %1235 = vmatpush1.msra.mxu0 0.0
      %1236 = vmatprep.subr.mxu0 0.0
      %1237 = vmatpush1.msra.mxu0 0.0
      %1238 = vmatprep.subr.mxu0 0.0
      %1239 = vmatpush1.msra.mxu0 0.0
      %1240 = vmatprep.subr.mxu0 0.0
      %1241 = vmatpush1.msra.mxu0 0.0
      %1242 = vmatprep.subr.mxu0 0.0
      %1243 = vmatpush1.msra.mxu0 0.0
      %1244 = vmatprep.subr.mxu0 0.0
      %1245 = vmatpush1.msra.mxu0 0.0
      %1246 = vmatprep.subr.mxu0 0.0
      %1247 = vmatpush1.msra.mxu0 0.0
      %1248 = vmatprep.subr.mxu0 0.0
      %1249 = vmatpush1.msra.mxu0 0.0
      %1250 = vmatprep.subr.mxu0 0.0
      %1251 = vmatpush1.msra.mxu0 0.0
      %1252 = vmatprep.subr.mxu0 0.0
      %1253 = vmatpush1.msra.mxu0 0.0
      %1254 = vmatprep.mubr.f32.mxu0 0.0
      %1255 = vmatmul.mubr.f32.gmra.mrb[0].mxu0 %v1111
      %v1256 = vpop.f32.mrb[0].mxu0
      %v1257 = vadd.f32 0.0, %v1256
      %v1258 = vpop.f32.mrb[0].mxu0
      %1259 = vdwg.mxu0
      %v1260 = vld [vmem:[#allocation2] sm:$0xff]
      %v1261 = vld [vmem:[#allocation2 + $0x8] sm:$0xff]
      %v1262 = vld [vmem:[#allocation2 + $0x10] sm:$0xff]
      %v1263 = vadd.f32 %v1260, %v1186
      %v1264 = vadd.f32 %v1261, %v1188
      %v1265 = vadd.f32 %v1262, %v1257
      %1266 = vst [vmem:[#allocation2] sm:$0xff] %v1263
      %1267 = vst [vmem:[#allocation2 + $0x8] sm:$0xff] %v1264
      %1268 = vst.msk [vmem:[#allocation2 + $0x10] sm:$0xff] %vm387, %v1265
      %v1269 = vld [vmem:[%s214] sm:$0xff]
      %v1270 = vld [vmem:[%s214 + $0x8] sm:$0xf]
      %v1271 = vld [vmem:[%s0] sm:$0xff]
      %1273 = vrot.lane.b32.xlu0 %v1271, 104
      %v1274 = vpop.permute.xlu0 %1273
      %v1277 = vcombine.high %v1269, %v1269
      %1278 = vrot.lane.b32.xlu0 %v1269, 107
      %v1279 = vpop.permute.xlu0 %1278
      %1280 = vrot.lane.b32.xlu0 %v1277, 107
      %v1281 = vpop.permute.xlu0 %1280
      %1282 = vrot.lane.b32.xlu0 %v1270, 107
      %v1283 = vpop.permute.xlu0 %1282
      %vm1284 = vcmask 875520
      %v1285 = vsel %vm1284, %v1279, %v1281
      %v1286 = vsel %vm1284, %v1281, %v1283
      %v1287 = vsel %vm233, %v1274, 0
      %v1289 = vsel %vm237, %v1285, 0
      %v1291 = vsel %vm237, %v1286, 0
      %v1293 = vsel %vm237, %v1283, 0
      %1295 = vmatprep.subr.mxu0 %v1291
      %1296 = vmatpush1.msra.mxu0 %v1289
      %1297 = vmatprep.subr.mxu0 0.0
      %1298 = vmatpush1.msra.mxu0 0.0
      %1299 = vmatprep.subr.mxu0 0.0
      %1300 = vmatpush1.msra.mxu0 0.0
      %1301 = vmatprep.subr.mxu0 0.0
      %1302 = vmatpush1.msra.mxu0 0.0
      %1303 = vmatprep.subr.mxu0 0.0
      %1304 = vmatpush1.msra.mxu0 0.0
      %1305 = vmatprep.subr.mxu0 0.0
      %1306 = vmatpush1.msra.mxu0 0.0
      %1307 = vmatprep.subr.mxu0 0.0
      %1308 = vmatpush1.msra.mxu0 0.0
      %1309 = vmatprep.subr.mxu0 0.0
      %1310 = vmatpush1.msra.mxu0 0.0
      %1311 = vmatprep.subr.mxu0 0.0
      %1312 = vmatpush1.msra.mxu0 0.0
      %1313 = vmatprep.subr.mxu0 0.0
      %1314 = vmatpush1.msra.mxu0 0.0
      %1315 = vmatprep.subr.mxu0 0.0
      %1316 = vmatpush1.msra.mxu0 0.0
      %1317 = vmatprep.subr.mxu0 0.0
      %1318 = vmatpush1.msra.mxu0 0.0
      %1319 = vmatprep.subr.mxu0 0.0
      %1320 = vmatpush1.msra.mxu0 0.0
      %1321 = vmatprep.subr.mxu0 0.0
      %1322 = vmatpush1.msra.mxu0 0.0
      %1323 = vmatprep.subr.mxu0 0.0
      %1324 = vmatpush1.msra.mxu0 0.0
      %1325 = vmatprep.subr.mxu0 0.0
      %1326 = vmatpush1.msra.mxu0 0.0
      %1327 = vmatprep.subr.mxu0 0.0
      %1328 = vmatpush1.msra.mxu0 0.0
      %1329 = vmatprep.subr.mxu0 0.0
      %1330 = vmatpush1.msra.mxu0 0.0
      %1331 = vmatprep.subr.mxu0 0.0
      %1332 = vmatpush1.msra.mxu0 0.0
      %1333 = vmatprep.subr.mxu0 0.0
      %1334 = vmatpush1.msra.mxu0 0.0
      %1335 = vmatprep.subr.mxu0 0.0
      %1336 = vmatpush1.msra.mxu0 0.0
      %1337 = vmatprep.subr.mxu0 0.0
      %1338 = vmatpush1.msra.mxu0 0.0
      %1339 = vmatprep.subr.mxu0 0.0
      %1340 = vmatpush1.msra.mxu0 0.0
      %1341 = vmatprep.subr.mxu0 0.0
      %1342 = vmatpush1.msra.mxu0 0.0
      %1343 = vmatprep.subr.mxu0 0.0
      %1344 = vmatpush1.msra.mxu0 0.0
      %1345 = vmatprep.subr.mxu0 0.0
      %1346 = vmatpush1.msra.mxu0 0.0
      %1347 = vmatprep.subr.mxu0 0.0
      %1348 = vmatpush1.msra.mxu0 0.0
      %1349 = vmatprep.subr.mxu0 0.0
      %1350 = vmatpush1.msra.mxu0 0.0
      %1351 = vmatprep.subr.mxu0 0.0
      %1352 = vmatpush1.msra.mxu0 0.0
      %1353 = vmatprep.subr.mxu0 0.0
      %1354 = vmatpush1.msra.mxu0 0.0
      %1355 = vmatprep.subr.mxu0 0.0
      %1356 = vmatpush1.msra.mxu0 0.0
      %1357 = vmatprep.subr.mxu0 0.0
      %1358 = vmatpush1.msra.mxu0 0.0
      %1359 = vmatprep.mubr.f32.mxu0 0.0
      %1360 = vmatmul.mubr.f32.gmra.mrb[0].mxu0 %v1287
      %v1361 = vpop.f32.mrb[0].mxu0
      %v1362 = vadd.f32 0.0, %v1361
      %v1363 = vpop.f32.mrb[0].mxu0
      %v1364 = vadd.f32 0.0, %v1363
      %1365 = vdwg.mxu0
      %1366 = vmatprep.subr.mxu0 0.0
      %1367 = vmatpush1.msra.mxu0 %v1293
      %1368 = vmatprep.subr.mxu0 0.0
      %1369 = vmatpush1.msra.mxu0 0.0
      %1370 = vmatprep.subr.mxu0 0.0
      %1371 = vmatpush1.msra.mxu0 0.0
      %1372 = vmatprep.subr.mxu0 0.0
      %1373 = vmatpush1.msra.mxu0 0.0
      %1374 = vmatprep.subr.mxu0 0.0
      %1375 = vmatpush1.msra.mxu0 0.0
      %1376 = vmatprep.subr.mxu0 0.0
      %1377 = vmatpush1.msra.mxu0 0.0
      %1378 = vmatprep.subr.mxu0 0.0
      %1379 = vmatpush1.msra.mxu0 0.0
      %1380 = vmatprep.subr.mxu0 0.0
      %1381 = vmatpush1.msra.mxu0 0.0
      %1382 = vmatprep.subr.mxu0 0.0
      %1383 = vmatpush1.msra.mxu0 0.0
      %1384 = vmatprep.subr.mxu0 0.0
      %1385 = vmatpush1.msra.mxu0 0.0
      %1386 = vmatprep.subr.mxu0 0.0
      %1387 = vmatpush1.msra.mxu0 0.0
      %1388 = vmatprep.subr.mxu0 0.0
      %1389 = vmatpush1.msra.mxu0 0.0
      %1390 = vmatprep.subr.mxu0 0.0
      %1391 = vmatpush1.msra.mxu0 0.0
      %1392 = vmatprep.subr.mxu0 0.0
      %1393 = vmatpush1.msra.mxu0 0.0
      %1394 = vmatprep.subr.mxu0 0.0
      %1395 = vmatpush1.msra.mxu0 0.0
      %1396 = vmatprep.subr.mxu0 0.0
      %1397 = vmatpush1.msra.mxu0 0.0
      %1398 = vmatprep.subr.mxu0 0.0
      %1399 = vmatpush1.msra.mxu0 0.0
      %1400 = vmatprep.subr.mxu0 0.0
      %1401 = vmatpush1.msra.mxu0 0.0
      %1402 = vmatprep.subr.mxu0 0.0
      %1403 = vmatpush1.msra.mxu0 0.0
      %1404 = vmatprep.subr.mxu0 0.0
      %1405 = vmatpush1.msra.mxu0 0.0
      %1406 = vmatprep.subr.mxu0 0.0
      %1407 = vmatpush1.msra.mxu0 0.0
      %1408 = vmatprep.subr.mxu0 0.0
      %1409 = vmatpush1.msra.mxu0 0.0
      %1410 = vmatprep.subr.mxu0 0.0
      %1411 = vmatpush1.msra.mxu0 0.0
      %1412 = vmatprep.subr.mxu0 0.0
      %1413 = vmatpush1.msra.mxu0 0.0
      %1414 = vmatprep.subr.mxu0 0.0
      %1415 = vmatpush1.msra.mxu0 0.0
      %1416 = vmatprep.subr.mxu0 0.0
      %1417 = vmatpush1.msra.mxu0 0.0
      %1418 = vmatprep.subr.mxu0 0.0
      %1419 = vmatpush1.msra.mxu0 0.0
      %1420 = vmatprep.subr.mxu0 0.0
      %1421 = vmatpush1.msra.mxu0 0.0
      %1422 = vmatprep.subr.mxu0 0.0
      %1423 = vmatpush1.msra.mxu0 0.0
      %1424 = vmatprep.subr.mxu0 0.0
      %1425 = vmatpush1.msra.mxu0 0.0
      %1426 = vmatprep.subr.mxu0 0.0
      %1427 = vmatpush1.msra.mxu0 0.0
      %1428 = vmatprep.subr.mxu0 0.0
      %1429 = vmatpush1.msra.mxu0 0.0
      %1430 = vmatprep.mubr.f32.mxu0 0.0
      %1431 = vmatmul.mubr.f32.gmra.mrb[0].mxu0 %v1287
      %v1432 = vpop.f32.mrb[0].mxu0
      %v1433 = vadd.f32 0.0, %v1432
      %v1434 = vpop.f32.mrb[0].mxu0
      %1435 = vdwg.mxu0
      %v1436 = vld [vmem:[#allocation2] sm:$0xff]
      %v1437 = vld [vmem:[#allocation2 + $0x8] sm:$0xff]
      %v1438 = vld [vmem:[#allocation2 + $0x10] sm:$0xff]
      %v1439 = vadd.f32 %v1436, %v1362
      %v1440 = vadd.f32 %v1437, %v1364
      %v1441 = vadd.f32 %v1438, %v1433
      %1442 = vst [vmem:[#allocation2] sm:$0xff] %v1439
      %1443 = vst [vmem:[#allocation2 + $0x8] sm:$0xff] %v1440
      %1444 = vst.msk [vmem:[#allocation2 + $0x10] sm:$0xff] %vm387, %v1441
      %v1445 = vld [vmem:[%s214] sm:$0xff]
      %v1446 = vld [vmem:[%s214 + $0x8] sm:$0xf]
      %v1447 = vld [vmem:[%s0] sm:$0xff]
      %1449 = vrot.lane.b32.xlu0 %v1447, 100
      %v1450 = vpop.permute.xlu0 %1449
      %v1453 = vcombine.high %v1445, %v1445
      %1454 = vrot.lane.b32.xlu0 %v1445, 106
      %v1455 = vpop.permute.xlu0 %1454
      %1456 = vrot.lane.b32.xlu0 %v1453, 106
      %v1457 = vpop.permute.xlu0 %1456
      %1458 = vrot.lane.b32.xlu0 %v1446, 106
      %v1459 = vpop.permute.xlu0 %1458
      %vm1460 = vcmask 867328
      %v1461 = vsel %vm1460, %v1455, %v1457
      %v1462 = vsel %vm1460, %v1457, %v1459
      %v1463 = vsel %vm233, %v1450, 0
      %v1465 = vsel %vm237, %v1461, 0
      %v1467 = vsel %vm237, %v1462, 0
      %v1469 = vsel %vm237, %v1459, 0
      %1471 = vmatprep.subr.mxu0 %v1467
      %1472 = vmatpush1.msra.mxu0 %v1465
      %1473 = vmatprep.subr.mxu0 0.0
      %1474 = vmatpush1.msra.mxu0 0.0
      %1475 = vmatprep.subr.mxu0 0.0
      %1476 = vmatpush1.msra.mxu0 0.0
      %1477 = vmatprep.subr.mxu0 0.0
      %1478 = vmatpush1.msra.mxu0 0.0
      %1479 = vmatprep.subr.mxu0 0.0
      %1480 = vmatpush1.msra.mxu0 0.0
      %1481 = vmatprep.subr.mxu0 0.0
      %1482 = vmatpush1.msra.mxu0 0.0
      %1483 = vmatprep.subr.mxu0 0.0
      %1484 = vmatpush1.msra.mxu0 0.0
      %1485 = vmatprep.subr.mxu0 0.0
      %1486 = vmatpush1.msra.mxu0 0.0
      %1487 = vmatprep.subr.mxu0 0.0
      %1488 = vmatpush1.msra.mxu0 0.0
      %1489 = vmatprep.subr.mxu0 0.0
      %1490 = vmatpush1.msra.mxu0 0.0
      %1491 = vmatprep.subr.mxu0 0.0
      %1492 = vmatpush1.msra.mxu0 0.0
      %1493 = vmatprep.subr.mxu0 0.0
      %1494 = vmatpush1.msra.mxu0 0.0
      %1495 = vmatprep.subr.mxu0 0.0
      %1496 = vmatpush1.msra.mxu0 0.0
      %1497 = vmatprep.subr.mxu0 0.0
      %1498 = vmatpush1.msra.mxu0 0.0
      %1499 = vmatprep.subr.mxu0 0.0
      %1500 = vmatpush1.msra.mxu0 0.0
      %1501 = vmatprep.subr.mxu0 0.0
      %1502 = vmatpush1.msra.mxu0 0.0
      %1503 = vmatprep.subr.mxu0 0.0
      %1504 = vmatpush1.msra.mxu0 0.0
      %1505 = vmatprep.subr.mxu0 0.0
      %1506 = vmatpush1.msra.mxu0 0.0
      %1507 = vmatprep.subr.mxu0 0.0
      %1508 = vmatpush1.msra.mxu0 0.0
      %1509 = vmatprep.subr.mxu0 0.0
      %1510 = vmatpush1.msra.mxu0 0.0
      %1511 = vmatprep.subr.mxu0 0.0
      %1512 = vmatpush1.msra.mxu0 0.0
      %1513 = vmatprep.subr.mxu0 0.0
      %1514 = vmatpush1.msra.mxu0 0.0
      %1515 = vmatprep.subr.mxu0 0.0
      %1516 = vmatpush1.msra.mxu0 0.0
      %1517 = vmatprep.subr.mxu0 0.0
      %1518 = vmatpush1.msra.mxu0 0.0
      %1519 = vmatprep.subr.mxu0 0.0
      %1520 = vmatpush1.msra.mxu0 0.0
      %1521 = vmatprep.subr.mxu0 0.0
      %1522 = vmatpush1.msra.mxu0 0.0
      %1523 = vmatprep.subr.mxu0 0.0
      %1524 = vmatpush1.msra.mxu0 0.0
      %1525 = vmatprep.subr.mxu0 0.0
      %1526 = vmatpush1.msra.mxu0 0.0
      %1527 = vmatprep.subr.mxu0 0.0
      %1528 = vmatpush1.msra.mxu0 0.0
      %1529 = vmatprep.subr.mxu0 0.0
      %1530 = vmatpush1.msra.mxu0 0.0
      %1531 = vmatprep.subr.mxu0 0.0
      %1532 = vmatpush1.msra.mxu0 0.0
      %1533 = vmatprep.subr.mxu0 0.0
      %1534 = vmatpush1.msra.mxu0 0.0
      %1535 = vmatprep.mubr.f32.mxu0 0.0
      %1536 = vmatmul.mubr.f32.gmra.mrb[0].mxu0 %v1463
      %v1537 = vpop.f32.mrb[0].mxu0
      %v1538 = vadd.f32 0.0, %v1537
      %v1539 = vpop.f32.mrb[0].mxu0
      %v1540 = vadd.f32 0.0, %v1539
      %1541 = vdwg.mxu0
      %1542 = vmatprep.subr.mxu0 0.0
      %1543 = vmatpush1.msra.mxu0 %v1469
      %1544 = vmatprep.subr.mxu0 0.0
      %1545 = vmatpush1.msra.mxu0 0.0
      %1546 = vmatprep.subr.mxu0 0.0
      %1547 = vmatpush1.msra.mxu0 0.0
      %1548 = vmatprep.subr.mxu0 0.0
      %1549 = vmatpush1.msra.mxu0 0.0
      %1550 = vmatprep.subr.mxu0 0.0
      %1551 = vmatpush1.msra.mxu0 0.0
      %1552 = vmatprep.subr.mxu0 0.0
      %1553 = vmatpush1.msra.mxu0 0.0
      %1554 = vmatprep.subr.mxu0 0.0
      %1555 = vmatpush1.msra.mxu0 0.0
      %1556 = vmatprep.subr.mxu0 0.0
      %1557 = vmatpush1.msra.mxu0 0.0
      %1558 = vmatprep.subr.mxu0 0.0
      %1559 = vmatpush1.msra.mxu0 0.0
      %1560 = vmatprep.subr.mxu0 0.0
      %1561 = vmatpush1.msra.mxu0 0.0
      %1562 = vmatprep.subr.mxu0 0.0
      %1563 = vmatpush1.msra.mxu0 0.0
      %1564 = vmatprep.subr.mxu0 0.0
      %1565 = vmatpush1.msra.mxu0 0.0
      %1566 = vmatprep.subr.mxu0 0.0
      %1567 = vmatpush1.msra.mxu0 0.0
      %1568 = vmatprep.subr.mxu0 0.0
      %1569 = vmatpush1.msra.mxu0 0.0
      %1570 = vmatprep.subr.mxu0 0.0
      %1571 = vmatpush1.msra.mxu0 0.0
      %1572 = vmatprep.subr.mxu0 0.0
      %1573 = vmatpush1.msra.mxu0 0.0
      %1574 = vmatprep.subr.mxu0 0.0
      %1575 = vmatpush1.msra.mxu0 0.0
      %1576 = vmatprep.subr.mxu0 0.0
      %1577 = vmatpush1.msra.mxu0 0.0
      %1578 = vmatprep.subr.mxu0 0.0
      %1579 = vmatpush1.msra.mxu0 0.0
      %1580 = vmatprep.subr.mxu0 0.0
      %1581 = vmatpush1.msra.mxu0 0.0
      %1582 = vmatprep.subr.mxu0 0.0
      %1583 = vmatpush1.msra.mxu0 0.0
      %1584 = vmatprep.subr.mxu0 0.0
      %1585 = vmatpush1.msra.mxu0 0.0
      %1586 = vmatprep.subr.mxu0 0.0
      %1587 = vmatpush1.msra.mxu0 0.0
      %1588 = vmatprep.subr.mxu0 0.0
      %1589 = vmatpush1.msra.mxu0 0.0
      %1590 = vmatprep.subr.mxu0 0.0
      %1591 = vmatpush1.msra.mxu0 0.0
      %1592 = vmatprep.subr.mxu0 0.0
      %1593 = vmatpush1.msra.mxu0 0.0
      %1594 = vmatprep.subr.mxu0 0.0
      %1595 = vmatpush1.msra.mxu0 0.0
      %1596 = vmatprep.subr.mxu0 0.0
      %1597 = vmatpush1.msra.mxu0 0.0
      %1598 = vmatprep.subr.mxu0 0.0
      %1599 = vmatpush1.msra.mxu0 0.0
      %1600 = vmatprep.subr.mxu0 0.0
      %1601 = vmatpush1.msra.mxu0 0.0
      %1602 = vmatprep.subr.mxu0 0.0
      %1603 = vmatpush1.msra.mxu0 0.0
      %1604 = vmatprep.subr.mxu0 0.0
      %1605 = vmatpush1.msra.mxu0 0.0
      %1606 = vmatprep.mubr.f32.mxu0 0.0
      %1607 = vmatmul.mubr.f32.gmra.mrb[0].mxu0 %v1463
      %v1608 = vpop.f32.mrb[0].mxu0
      %v1609 = vadd.f32 0.0, %v1608
      %v1610 = vpop.f32.mrb[0].mxu0
      %1611 = vdwg.mxu0
      %v1612 = vld [vmem:[#allocation2] sm:$0xff]
      %v1613 = vld [vmem:[#allocation2 + $0x8] sm:$0xff]
      %v1614 = vld [vmem:[#allocation2 + $0x10] sm:$0xff]
      %v1615 = vadd.f32 %v1612, %v1538
      %v1616 = vadd.f32 %v1613, %v1540
      %v1617 = vadd.f32 %v1614, %v1609
      %1618 = vst [vmem:[#allocation2] sm:$0xff] %v1615
      %1619 = vst [vmem:[#allocation2 + $0x8] sm:$0xff] %v1616
      %1620 = vst.msk [vmem:[#allocation2 + $0x10] sm:$0xff] %vm387, %v1617
      %v1621 = vld [vmem:[%s214] sm:$0xff]
      %v1622 = vld [vmem:[%s214 + $0x8] sm:$0xf]
      %v1623 = vld [vmem:[%s0] sm:$0xff]
      %1625 = vrot.lane.b32.xlu0 %v1623, 96
      %v1626 = vpop.permute.xlu0 %1625
      %v1629 = vcombine.high %v1621, %v1621
      %1630 = vrot.lane.b32.xlu0 %v1621, 105
      %v1631 = vpop.permute.xlu0 %1630
      %1632 = vrot.lane.b32.xlu0 %v1629, 105
      %v1633 = vpop.permute.xlu0 %1632
      %1634 = vrot.lane.b32.xlu0 %v1622, 105
      %v1635 = vpop.permute.xlu0 %1634
      %vm1636 = vcmask 859136
      %v1637 = vsel %vm1636, %v1631, %v1633
      %v1638 = vsel %vm1636, %v1633, %v1635
      %v1639 = vsel %vm233, %v1626, 0
      %v1641 = vsel %vm237, %v1637, 0
      %v1643 = vsel %vm237, %v1638, 0
      %v1645 = vsel %vm237, %v1635, 0
      %1647 = vmatprep.subr.mxu0 %v1643
      %1648 = vmatpush1.msra.mxu0 %v1641
      %1649 = vmatprep.subr.mxu0 0.0
      %1650 = vmatpush1.msra.mxu0 0.0
      %1651 = vmatprep.subr.mxu0 0.0
      %1652 = vmatpush1.msra.mxu0 0.0
      %1653 = vmatprep.subr.mxu0 0.0
      %1654 = vmatpush1.msra.mxu0 0.0
      %1655 = vmatprep.subr.mxu0 0.0
      %1656 = vmatpush1.msra.mxu0 0.0
      %1657 = vmatprep.subr.mxu0 0.0
      %1658 = vmatpush1.msra.mxu0 0.0
      %1659 = vmatprep.subr.mxu0 0.0
      %1660 = vmatpush1.msra.mxu0 0.0
      %1661 = vmatprep.subr.mxu0 0.0
      %1662 = vmatpush1.msra.mxu0 0.0
      %1663 = vmatprep.subr.mxu0 0.0
      %1664 = vmatpush1.msra.mxu0 0.0
      %1665 = vmatprep.subr.mxu0 0.0
      %1666 = vmatpush1.msra.mxu0 0.0
      %1667 = vmatprep.subr.mxu0 0.0
      %1668 = vmatpush1.msra.mxu0 0.0
      %1669 = vmatprep.subr.mxu0 0.0
      %1670 = vmatpush1.msra.mxu0 0.0
      %1671 = vmatprep.subr.mxu0 0.0
      %1672 = vmatpush1.msra.mxu0 0.0
      %1673 = vmatprep.subr.mxu0 0.0
      %1674 = vmatpush1.msra.mxu0 0.0
      %1675 = vmatprep.subr.mxu0 0.0
      %1676 = vmatpush1.msra.mxu0 0.0
      %1677 = vmatprep.subr.mxu0 0.0
      %1678 = vmatpush1.msra.mxu0 0.0
      %1679 = vmatprep.subr.mxu0 0.0
      %1680 = vmatpush1.msra.mxu0 0.0
      %1681 = vmatprep.subr.mxu0 0.0
      %1682 = vmatpush1.msra.mxu0 0.0
      %1683 = vmatprep.subr.mxu0 0.0
      %1684 = vmatpush1.msra.mxu0 0.0
      %1685 = vmatprep.subr.mxu0 0.0
      %1686 = vmatpush1.msra.mxu0 0.0
      %1687 = vmatprep.subr.mxu0 0.0
      %1688 = vmatpush1.msra.mxu0 0.0
      %1689 = vmatprep.subr.mxu0 0.0
      %1690 = vmatpush1.msra.mxu0 0.0
      %1691 = vmatprep.subr.mxu0 0.0
      %1692 = vmatpush1.msra.mxu0 0.0
      %1693 = vmatprep.subr.mxu0 0.0
      %1694 = vmatpush1.msra.mxu0 0.0
      %1695 = vmatprep.subr.mxu0 0.0
      %1696 = vmatpush1.msra.mxu0 0.0
      %1697 = vmatprep.subr.mxu0 0.0
      %1698 = vmatpush1.msra.mxu0 0.0
      %1699 = vmatprep.subr.mxu0 0.0
      %1700 = vmatpush1.msra.mxu0 0.0
      %1701 = vmatprep.subr.mxu0 0.0
      %1702 = vmatpush1.msra.mxu0 0.0
      %1703 = vmatprep.subr.mxu0 0.0
      %1704 = vmatpush1.msra.mxu0 0.0
      %1705 = vmatprep.subr.mxu0 0.0
      %1706 = vmatpush1.msra.mxu0 0.0
      %1707 = vmatprep.subr.mxu0 0.0
      %1708 = vmatpush1.msra.mxu0 0.0
      %1709 = vmatprep.subr.mxu0 0.0
      %1710 = vmatpush1.msra.mxu0 0.0
      %1711 = vmatprep.mubr.f32.mxu0 0.0
      %1712 = vmatmul.mubr.f32.gmra.mrb[0].mxu0 %v1639
      %v1713 = vpop.f32.mrb[0].mxu0
      %v1714 = vadd.f32 0.0, %v1713
      %v1715 = vpop.f32.mrb[0].mxu0
      %v1716 = vadd.f32 0.0, %v1715
      %1717 = vdwg.mxu0
      %1718 = vmatprep.subr.mxu0 0.0
      %1719 = vmatpush1.msra.mxu0 %v1645
      %1720 = vmatprep.subr.mxu0 0.0
      %1721 = vmatpush1.msra.mxu0 0.0
      %1722 = vmatprep.subr.mxu0 0.0
      %1723 = vmatpush1.msra.mxu0 0.0
      %1724 = vmatprep.subr.mxu0 0.0
      %1725 = vmatpush1.msra.mxu0 0.0
      %1726 = vmatprep.subr.mxu0 0.0
      %1727 = vmatpush1.msra.mxu0 0.0
      %1728 = vmatprep.subr.mxu0 0.0
      %1729 = vmatpush1.msra.mxu0 0.0
      %1730 = vmatprep.subr.mxu0 0.0
      %1731 = vmatpush1.msra.mxu0 0.0
      %1732 = vmatprep.subr.mxu0 0.0
      %1733 = vmatpush1.msra.mxu0 0.0
      %1734 = vmatprep.subr.mxu0 0.0
      %1735 = vmatpush1.msra.mxu0 0.0
      %1736 = vmatprep.subr.mxu0 0.0
      %1737 = vmatpush1.msra.mxu0 0.0
      %1738 = vmatprep.subr.mxu0 0.0
      %1739 = vmatpush1.msra.mxu0 0.0
      %1740 = vmatprep.subr.mxu0 0.0
      %1741 = vmatpush1.msra.mxu0 0.0
      %1742 = vmatprep.subr.mxu0 0.0
      %1743 = vmatpush1.msra.mxu0 0.0
      %1744 = vmatprep.subr.mxu0 0.0
      %1745 = vmatpush1.msra.mxu0 0.0
      %1746 = vmatprep.subr.mxu0 0.0
      %1747 = vmatpush1.msra.mxu0 0.0
      %1748 = vmatprep.subr.mxu0 0.0
      %1749 = vmatpush1.msra.mxu0 0.0
      %1750 = vmatprep.subr.mxu0 0.0
      %1751 = vmatpush1.msra.mxu0 0.0
      %1752 = vmatprep.subr.mxu0 0.0
      %1753 = vmatpush1.msra.mxu0 0.0
      %1754 = vmatprep.subr.mxu0 0.0
      %1755 = vmatpush1.msra.mxu0 0.0
      %1756 = vmatprep.subr.mxu0 0.0
      %1757 = vmatpush1.msra.mxu0 0.0
      %1758 = vmatprep.subr.mxu0 0.0
      %1759 = vmatpush1.msra.mxu0 0.0
      %1760 = vmatprep.subr.mxu0 0.0
      %1761 = vmatpush1.msra.mxu0 0.0
      %1762 = vmatprep.subr.mxu0 0.0
      %1763 = vmatpush1.msra.mxu0 0.0
      %1764 = vmatprep.subr.mxu0 0.0
      %1765 = vmatpush1.msra.mxu0 0.0
      %1766 = vmatprep.subr.mxu0 0.0
      %1767 = vmatpush1.msra.mxu0 0.0
      %1768 = vmatprep.subr.mxu0 0.0
      %1769 = vmatpush1.msra.mxu0 0.0
      %1770 = vmatprep.subr.mxu0 0.0
      %1771 = vmatpush1.msra.mxu0 0.0
      %1772 = vmatprep.subr.mxu0 0.0
      %1773 = vmatpush1.msra.mxu0 0.0
      %1774 = vmatprep.subr.mxu0 0.0
      %1775 = vmatpush1.msra.mxu0 0.0
      %1776 = vmatprep.subr.mxu0 0.0
      %1777 = vmatpush1.msra.mxu0 0.0
      %1778 = vmatprep.subr.mxu0 0.0
      %1779 = vmatpush1.msra.mxu0 0.0
      %1780 = vmatprep.subr.mxu0 0.0
      %1781 = vmatpush1.msra.mxu0 0.0
      %1782 = vmatprep.mubr.f32.mxu0 0.0
      %1783 = vmatmul.mubr.f32.gmra.mrb[0].mxu0 %v1639
      %v1784 = vpop.f32.mrb[0].mxu0
      %v1785 = vadd.f32 0.0, %v1784
      %v1786 = vpop.f32.mrb[0].mxu0
      %1787 = vdwg.mxu0
      %v1788 = vld [vmem:[#allocation2] sm:$0xff]
      %v1789 = vld [vmem:[#allocation2 + $0x8] sm:$0xff]
      %v1790 = vld [vmem:[#allocation2 + $0x10] sm:$0xff]
      %v1791 = vadd.f32 %v1788, %v1714
      %v1792 = vadd.f32 %v1789, %v1716
      %v1793 = vadd.f32 %v1790, %v1785
      %1794 = vst [vmem:[#allocation2] sm:$0xff] %v1791
      %1795 = vst [vmem:[#allocation2 + $0x8] sm:$0xff] %v1792
      %1796 = vst.msk [vmem:[#allocation2 + $0x10] sm:$0xff] %vm387, %v1793
      %v1797 = vld [vmem:[%s214] sm:$0xff]
      %v1798 = vld [vmem:[%s214 + $0x8] sm:$0xf]
      %v1799 = vld [vmem:[%s0] sm:$0xff]
      %1801 = vrot.lane.b32.xlu0 %v1799, 92
      %v1802 = vpop.permute.xlu0 %1801
      %v1805 = vcombine.high %v1797, %v1797
      %1806 = vrot.lane.b32.xlu0 %v1797, 104
      %v1807 = vpop.permute.xlu0 %1806
      %1808 = vrot.lane.b32.xlu0 %v1805, 104
      %v1809 = vpop.permute.xlu0 %1808
      %1810 = vrot.lane.b32.xlu0 %v1798, 104
      %v1811 = vpop.permute.xlu0 %1810
      %vm1812 = vcmask 850944
      %v1813 = vsel %vm1812, %v1807, %v1809
      %v1814 = vsel %vm1812, %v1809, %v1811
      %v1815 = vsel %vm233, %v1802, 0
      %v1817 = vsel %vm237, %v1813, 0
      %v1819 = vsel %vm237, %v1814, 0
      %v1821 = vsel %vm237, %v1811, 0
      %1823 = vmatprep.subr.mxu0 %v1819
      %1824 = vmatpush1.msra.mxu0 %v1817
      %1825 = vmatprep.subr.mxu0 0.0
      %1826 = vmatpush1.msra.mxu0 0.0
      %1827 = vmatprep.subr.mxu0 0.0
      %1828 = vmatpush1.msra.mxu0 0.0
      %1829 = vmatprep.subr.mxu0 0.0
      %1830 = vmatpush1.msra.mxu0 0.0
      %1831 = vmatprep.subr.mxu0 0.0
      %1832 = vmatpush1.msra.mxu0 0.0
      %1833 = vmatprep.subr.mxu0 0.0
      %1834 = vmatpush1.msra.mxu0 0.0
      %1835 = vmatprep.subr.mxu0 0.0
      %1836 = vmatpush1.msra.mxu0 0.0
      %1837 = vmatprep.subr.mxu0 0.0
      %1838 = vmatpush1.msra.mxu0 0.0
      %1839 = vmatprep.subr.mxu0 0.0
      %1840 = vmatpush1.msra.mxu0 0.0
      %1841 = vmatprep.subr.mxu0 0.0
      %1842 = vmatpush1.msra.mxu0 0.0
      %1843 = vmatprep.subr.mxu0 0.0
      %1844 = vmatpush1.msra.mxu0 0.0
      %1845 = vmatprep.subr.mxu0 0.0
      %1846 = vmatpush1.msra.mxu0 0.0
      %1847 = vmatprep.subr.mxu0 0.0
      %1848 = vmatpush1.msra.mxu0 0.0
      %1849 = vmatprep.subr.mxu0 0.0
      %1850 = vmatpush1.msra.mxu0 0.0
      %1851 = vmatprep.subr.mxu0 0.0
      %1852 = vmatpush1.msra.mxu0 0.0
      %1853 = vmatprep.subr.mxu0 0.0
      %1854 = vmatpush1.msra.mxu0 0.0
      %1855 = vmatprep.subr.mxu0 0.0
      %1856 = vmatpush1.msra.mxu0 0.0
      %1857 = vmatprep.subr.mxu0 0.0
      %1858 = vmatpush1.msra.mxu0 0.0
      %1859 = vmatprep.subr.mxu0 0.0
      %1860 = vmatpush1.msra.mxu0 0.0
      %1861 = vmatprep.subr.mxu0 0.0
      %1862 = vmatpush1.msra.mxu0 0.0
      %1863 = vmatprep.subr.mxu0 0.0
      %1864 = vmatpush1.msra.mxu0 0.0
      %1865 = vmatprep.subr.mxu0 0.0
      %1866 = vmatpush1.msra.mxu0 0.0
      %1867 = vmatprep.subr.mxu0 0.0
      %1868 = vmatpush1.msra.mxu0 0.0
      %1869 = vmatprep.subr.mxu0 0.0
      %1870 = vmatpush1.msra.mxu0 0.0
      %1871 = vmatprep.subr.mxu0 0.0
      %1872 = vmatpush1.msra.mxu0 0.0
      %1873 = vmatprep.subr.mxu0 0.0
      %1874 = vmatpush1.msra.mxu0 0.0
      %1875 = vmatprep.subr.mxu0 0.0
      %1876 = vmatpush1.msra.mxu0 0.0
      %1877 = vmatprep.subr.mxu0 0.0
      %1878 = vmatpush1.msra.mxu0 0.0
      %1879 = vmatprep.subr.mxu0 0.0
      %1880 = vmatpush1.msra.mxu0 0.0
      %1881 = vmatprep.subr.mxu0 0.0
      %1882 = vmatpush1.msra.mxu0 0.0
      %1883 = vmatprep.subr.mxu0 0.0
      %1884 = vmatpush1.msra.mxu0 0.0
      %1885 = vmatprep.subr.mxu0 0.0
      %1886 = vmatpush1.msra.mxu0 0.0
      %1887 = vmatprep.mubr.f32.mxu0 0.0
      %1888 = vmatmul.mubr.f32.gmra.mrb[0].mxu0 %v1815
      %v1889 = vpop.f32.mrb[0].mxu0
      %v1890 = vadd.f32 0.0, %v1889
      %v1891 = vpop.f32.mrb[0].mxu0
      %v1892 = vadd.f32 0.0, %v1891
      %1893 = vdwg.mxu0
      %1894 = vmatprep.subr.mxu0 0.0
      %1895 = vmatpush1.msra.mxu0 %v1821
      %1896 = vmatprep.subr.mxu0 0.0
      %1897 = vmatpush1.msra.mxu0 0.0
      %1898 = vmatprep.subr.mxu0 0.0
      %1899 = vmatpush1.msra.mxu0 0.0
      %1900 = vmatprep.subr.mxu0 0.0
      %1901 = vmatpush1.msra.mxu0 0.0
      %1902 = vmatprep.subr.mxu0 0.0
      %1903 = vmatpush1.msra.mxu0 0.0
      %1904 = vmatprep.subr.mxu0 0.0
      %1905 = vmatpush1.msra.mxu0 0.0
      %1906 = vmatprep.subr.mxu0 0.0
      %1907 = vmatpush1.msra.mxu0 0.0
      %1908 = vmatprep.subr.mxu0 0.0
      %1909 = vmatpush1.msra.mxu0 0.0
      %1910 = vmatprep.subr.mxu0 0.0
      %1911 = vmatpush1.msra.mxu0 0.0
      %1912 = vmatprep.subr.mxu0 0.0
      %1913 = vmatpush1.msra.mxu0 0.0
      %1914 = vmatprep.subr.mxu0 0.0
      %1915 = vmatpush1.msra.mxu0 0.0
      %1916 = vmatprep.subr.mxu0 0.0
      %1917 = vmatpush1.msra.mxu0 0.0
      %1918 = vmatprep.subr.mxu0 0.0
      %1919 = vmatpush1.msra.mxu0 0.0
      %1920 = vmatprep.subr.mxu0 0.0
      %1921 = vmatpush1.msra.mxu0 0.0
      %1922 = vmatprep.subr.mxu0 0.0
      %1923 = vmatpush1.msra.mxu0 0.0
      %1924 = vmatprep.subr.mxu0 0.0
      %1925 = vmatpush1.msra.mxu0 0.0
      %1926 = vmatprep.subr.mxu0 0.0
      %1927 = vmatpush1.msra.mxu0 0.0
      %1928 = vmatprep.subr.mxu0 0.0
      %1929 = vmatpush1.msra.mxu0 0.0
      %1930 = vmatprep.subr.mxu0 0.0
      %1931 = vmatpush1.msra.mxu0 0.0
      %1932 = vmatprep.subr.mxu0 0.0
      %1933 = vmatpush1.msra.mxu0 0.0
      %1934 = vmatprep.subr.mxu0 0.0
      %1935 = vmatpush1.msra.mxu0 0.0
      %1936 = vmatprep.subr.mxu0 0.0
      %1937 = vmatpush1.msra.mxu0 0.0
      %1938 = vmatprep.subr.mxu0 0.0
      %1939 = vmatpush1.msra.mxu0 0.0
      %1940 = vmatprep.subr.mxu0 0.0
      %1941 = vmatpush1.msra.mxu0 0.0
      %1942 = vmatprep.subr.mxu0 0.0
      %1943 = vmatpush1.msra.mxu0 0.0
      %1944 = vmatprep.subr.mxu0 0.0
      %1945 = vmatpush1.msra.mxu0 0.0
      %1946 = vmatprep.subr.mxu0 0.0
      %1947 = vmatpush1.msra.mxu0 0.0
      %1948 = vmatprep.subr.mxu0 0.0
      %1949 = vmatpush1.msra.mxu0 0.0
      %1950 = vmatprep.subr.mxu0 0.0
      %1951 = vmatpush1.msra.mxu0 0.0
      %1952 = vmatprep.subr.mxu0 0.0
      %1953 = vmatpush1.msra.mxu0 0.0
      %1954 = vmatprep.subr.mxu0 0.0
      %1955 = vmatpush1.msra.mxu0 0.0
      %1956 = vmatprep.subr.mxu0 0.0
      %1957 = vmatpush1.msra.mxu0 0.0
      %1958 = vmatprep.mubr.f32.mxu0 0.0
      %1959 = vmatmul.mubr.f32.gmra.mrb[0].mxu0 %v1815
      %v1960 = vpop.f32.mrb[0].mxu0
      %v1961 = vadd.f32 0.0, %v1960
      %v1962 = vpop.f32.mrb[0].mxu0
      %1963 = vdwg.mxu0
      %v1964 = vld [vmem:[#allocation2] sm:$0xff]
      %v1965 = vld [vmem:[#allocation2 + $0x8] sm:$0xff]
      %v1966 = vld [vmem:[#allocation2 + $0x10] sm:$0xff]
      %v1967 = vadd.f32 %v1964, %v1890
      %v1968 = vadd.f32 %v1965, %v1892
      %v1969 = vadd.f32 %v1966, %v1961
      %1970 = vst [vmem:[#allocation2] sm:$0xff] %v1967
      %1971 = vst [vmem:[#allocation2 + $0x8] sm:$0xff] %v1968
      %1972 = vst.msk [vmem:[#allocation2 + $0x10] sm:$0xff] %vm387, %v1969
      %v1973 = vld [vmem:[%s214] sm:$0xff]
      %v1974 = vld [vmem:[%s214 + $0x8] sm:$0xf]
      %v1975 = vld [vmem:[%s0] sm:$0xff]
      %1977 = vrot.lane.b32.xlu0 %v1975, 88
      %v1978 = vpop.permute.xlu0 %1977
      %v1981 = vcombine.high %v1973, %v1973
      %1982 = vrot.lane.b32.xlu0 %v1973, 88
      %v1983 = vpop.permute.xlu0 %1982
      %1984 = vrot.lane.b32.xlu0 %v1981, 88
      %v1985 = vpop.permute.xlu0 %1984
      %1986 = vrot.lane.b32.xlu0 %v1974, 88
      %v1987 = vpop.permute.xlu0 %1986
      %vm1988 = vcmask 719872
      %v1989 = vsel %vm1988, %v1983, %v1985
      %v1990 = vsel %vm1988, %v1985, %v1987
      %v1991 = vsel %vm233, %v1978, 0
      %v1993 = vsel %vm237, %v1989, 0
      %v1995 = vsel %vm237, %v1990, 0
      %v1997 = vsel %vm237, %v1987, 0
      %1999 = vmatprep.subr.mxu0 %v1995
      %2000 = vmatpush1.msra.mxu0 %v1993
      %2001 = vmatprep.subr.mxu0 0.0
      %2002 = vmatpush1.msra.mxu0 0.0
      %2003 = vmatprep.subr.mxu0 0.0
      %2004 = vmatpush1.msra.mxu0 0.0
      %2005 = vmatprep.subr.mxu0 0.0
      %2006 = vmatpush1.msra.mxu0 0.0
      %2007 = vmatprep.subr.mxu0 0.0
      %2008 = vmatpush1.msra.mxu0 0.0
      %2009 = vmatprep.subr.mxu0 0.0
      %2010 = vmatpush1.msra.mxu0 0.0
      %2011 = vmatprep.subr.mxu0 0.0
      %2012 = vmatpush1.msra.mxu0 0.0
      %2013 = vmatprep.subr.mxu0 0.0
      %2014 = vmatpush1.msra.mxu0 0.0
      %2015 = vmatprep.subr.mxu0 0.0
      %2016 = vmatpush1.msra.mxu0 0.0
      %2017 = vmatprep.subr.mxu0 0.0
      %2018 = vmatpush1.msra.mxu0 0.0
      %2019 = vmatprep.subr.mxu0 0.0
      %2020 = vmatpush1.msra.mxu0 0.0
      %2021 = vmatprep.subr.mxu0 0.0
      %2022 = vmatpush1.msra.mxu0 0.0
      %2023 = vmatprep.subr.mxu0 0.0
      %2024 = vmatpush1.msra.mxu0 0.0
      %2025 = vmatprep.subr.mxu0 0.0
      %2026 = vmatpush1.msra.mxu0 0.0
      %2027 = vmatprep.subr.mxu0 0.0
      %2028 = vmatpush1.msra.mxu0 0.0
      %2029 = vmatprep.subr.mxu0 0.0
      %2030 = vmatpush1.msra.mxu0 0.0
      %2031 = vmatprep.subr.mxu0 0.0
      %2032 = vmatpush1.msra.mxu0 0.0
      %2033 = vmatprep.subr.mxu0 0.0
      %2034 = vmatpush1.msra.mxu0 0.0
      %2035 = vmatprep.subr.mxu0 0.0
      %2036 = vmatpush1.msra.mxu0 0.0
      %2037 = vmatprep.subr.mxu0 0.0
      %2038 = vmatpush1.msra.mxu0 0.0
      %2039 = vmatprep.subr.mxu0 0.0
      %2040 = vmatpush1.msra.mxu0 0.0
      %2041 = vmatprep.subr.mxu0 0.0
      %2042 = vmatpush1.msra.mxu0 0.0
      %2043 = vmatprep.subr.mxu0 0.0
      %2044 = vmatpush1.msra.mxu0 0.0
      %2045 = vmatprep.subr.mxu0 0.0
      %2046 = vmatpush1.msra.mxu0 0.0
      %2047 = vmatprep.subr.mxu0 0.0
      %2048 = vmatpush1.msra.mxu0 0.0
      %2049 = vmatprep.subr.mxu0 0.0
      %2050 = vmatpush1.msra.mxu0 0.0
      %2051 = vmatprep.subr.mxu0 0.0
      %2052 = vmatpush1.msra.mxu0 0.0
      %2053 = vmatprep.subr.mxu0 0.0
      %2054 = vmatpush1.msra.mxu0 0.0
      %2055 = vmatprep.subr.mxu0 0.0
      %2056 = vmatpush1.msra.mxu0 0.0
      %2057 = vmatprep.subr.mxu0 0.0
      %2058 = vmatpush1.msra.mxu0 0.0
      %2059 = vmatprep.subr.mxu0 0.0
      %2060 = vmatpush1.msra.mxu0 0.0
      %2061 = vmatprep.subr.mxu0 0.0
      %2062 = vmatpush1.msra.mxu0 0.0
      %2063 = vmatprep.mubr.f32.mxu0 0.0
      %2064 = vmatmul.mubr.f32.gmra.mrb[0].mxu0 %v1991
      %v2065 = vpop.f32.mrb[0].mxu0
      %v2066 = vadd.f32 0.0, %v2065
      %v2067 = vpop.f32.mrb[0].mxu0
      %v2068 = vadd.f32 0.0, %v2067
      %2069 = vdwg.mxu0
      %2070 = vmatprep.subr.mxu0 0.0
      %2071 = vmatpush1.msra.mxu0 %v1997
      %2072 = vmatprep.subr.mxu0 0.0
      %2073 = vmatpush1.msra.mxu0 0.0
      %2074 = vmatprep.subr.mxu0 0.0
      %2075 = vmatpush1.msra.mxu0 0.0
      %2076 = vmatprep.subr.mxu0 0.0
      %2077 = vmatpush1.msra.mxu0 0.0
      %2078 = vmatprep.subr.mxu0 0.0
      %2079 = vmatpush1.msra.mxu0 0.0
      %2080 = vmatprep.subr.mxu0 0.0
      %2081 = vmatpush1.msra.mxu0 0.0
      %2082 = vmatprep.subr.mxu0 0.0
      %2083 = vmatpush1.msra.mxu0 0.0
      %2084 = vmatprep.subr.mxu0 0.0
      %2085 = vmatpush1.msra.mxu0 0.0
      %2086 = vmatprep.subr.mxu0 0.0
      %2087 = vmatpush1.msra.mxu0 0.0
      %2088 = vmatprep.subr.mxu0 0.0
      %2089 = vmatpush1.msra.mxu0 0.0
      %2090 = vmatprep.subr.mxu0 0.0
      %2091 = vmatpush1.msra.mxu0 0.0
      %2092 = vmatprep.subr.mxu0 0.0
      %2093 = vmatpush1.msra.mxu0 0.0
      %2094 = vmatprep.subr.mxu0 0.0
      %2095 = vmatpush1.msra.mxu0 0.0
      %2096 = vmatprep.subr.mxu0 0.0
      %2097 = vmatpush1.msra.mxu0 0.0
      %2098 = vmatprep.subr.mxu0 0.0
      %2099 = vmatpush1.msra.mxu0 0.0
      %2100 = vmatprep.subr.mxu0 0.0
      %2101 = vmatpush1.msra.mxu0 0.0
      %2102 = vmatprep.subr.mxu0 0.0
      %2103 = vmatpush1.msra.mxu0 0.0
      %2104 = vmatprep.subr.mxu0 0.0
      %2105 = vmatpush1.msra.mxu0 0.0
      %2106 = vmatprep.subr.mxu0 0.0
      %2107 = vmatpush1.msra.mxu0 0.0
      %2108 = vmatprep.subr.mxu0 0.0
      %2109 = vmatpush1.msra.mxu0 0.0
      %2110 = vmatprep.subr.mxu0 0.0
      %2111 = vmatpush1.msra.mxu0 0.0
      %2112 = vmatprep.subr.mxu0 0.0
      %2113 = vmatpush1.msra.mxu0 0.0
      %2114 = vmatprep.subr.mxu0 0.0
      %2115 = vmatpush1.msra.mxu0 0.0
      %2116 = vmatprep.subr.mxu0 0.0
      %2117 = vmatpush1.msra.mxu0 0.0
      %2118 = vmatprep.subr.mxu0 0.0
      %2119 = vmatpush1.msra.mxu0 0.0
      %2120 = vmatprep.subr.mxu0 0.0
      %2121 = vmatpush1.msra.mxu0 0.0
      %2122 = vmatprep.subr.mxu0 0.0
      %2123 = vmatpush1.msra.mxu0 0.0
      %2124 = vmatprep.subr.mxu0 0.0
      %2125 = vmatpush1.msra.mxu0 0.0
      %2126 = vmatprep.subr.mxu0 0.0
      %2127 = vmatpush1.msra.mxu0 0.0
      %2128 = vmatprep.subr.mxu0 0.0
      %2129 = vmatpush1.msra.mxu0 0.0
      %2130 = vmatprep.subr.mxu0 0.0
      %2131 = vmatpush1.msra.mxu0 0.0
      %2132 = vmatprep.subr.mxu0 0.0
      %2133 = vmatpush1.msra.mxu0 0.0
      %2134 = vmatprep.mubr.f32.mxu0 0.0
      %2135 = vmatmul.mubr.f32.gmra.mrb[0].mxu0 %v1991
      %v2136 = vpop.f32.mrb[0].mxu0
      %v2137 = vadd.f32 0.0, %v2136
      %v2138 = vpop.f32.mrb[0].mxu0
      %2139 = vdwg.mxu0
      %v2140 = vld [vmem:[#allocation2] sm:$0xff]
      %v2141 = vld [vmem:[#allocation2 + $0x8] sm:$0xff]
      %v2142 = vld [vmem:[#allocation2 + $0x10] sm:$0xff]
      %v2143 = vadd.f32 %v2140, %v2066
      %v2144 = vadd.f32 %v2141, %v2068
      %v2145 = vadd.f32 %v2142, %v2137
      %2146 = vst [vmem:[#allocation2] sm:$0xff] %v2143
      %2147 = vst [vmem:[#allocation2 + $0x8] sm:$0xff] %v2144
      %2148 = vst.msk [vmem:[#allocation2 + $0x10] sm:$0xff] %vm387, %v2145
      %v2149 = vld [vmem:[%s214] sm:$0xff]
      %v2150 = vld [vmem:[%s214 + $0x8] sm:$0xf]
      %v2151 = vld [vmem:[%s0] sm:$0xff]
      %2153 = vrot.lane.b32.xlu0 %v2151, 84
      %v2154 = vpop.permute.xlu0 %2153
      %v2157 = vcombine.high %v2149, %v2149
      %2158 = vrot.lane.b32.xlu0 %v2149, 87
      %v2159 = vpop.permute.xlu0 %2158
      %2160 = vrot.lane.b32.xlu0 %v2157, 87
      %v2161 = vpop.permute.xlu0 %2160
      %2162 = vrot.lane.b32.xlu0 %v2150, 87
      %v2163 = vpop.permute.xlu0 %2162
      %vm2164 = vcmask 711680
      %v2165 = vsel %vm2164, %v2159, %v2161
      %v2166 = vsel %vm2164, %v2161, %v2163
      %v2167 = vsel %vm233, %v2154, 0
      %v2169 = vsel %vm237, %v2165, 0
      %v2171 = vsel %vm237, %v2166, 0
      %v2173 = vsel %vm237, %v2163, 0
      %2175 = vmatprep.subr.mxu0 %v2171
      %2176 = vmatpush1.msra.mxu0 %v2169
      %2177 = vmatprep.subr.mxu0 0.0
      %2178 = vmatpush1.msra.mxu0 0.0
      %2179 = vmatprep.subr.mxu0 0.0
      %2180 = vmatpush1.msra.mxu0 0.0
      %2181 = vmatprep.subr.mxu0 0.0
      %2182 = vmatpush1.msra.mxu0 0.0
      %2183 = vmatprep.subr.mxu0 0.0
      %2184 = vmatpush1.msra.mxu0 0.0
      %2185 = vmatprep.subr.mxu0 0.0
      %2186 = vmatpush1.msra.mxu0 0.0
      %2187 = vmatprep.subr.mxu0 0.0
      %2188 = vmatpush1.msra.mxu0 0.0
      %2189 = vmatprep.subr.mxu0 0.0
      %2190 = vmatpush1.msra.mxu0 0.0
      %2191 = vmatprep.subr.mxu0 0.0
      %2192 = vmatpush1.msra.mxu0 0.0
      %2193 = vmatprep.subr.mxu0 0.0
      %2194 = vmatpush1.msra.mxu0 0.0
      %2195 = vmatprep.subr.mxu0 0.0
      %2196 = vmatpush1.msra.mxu0 0.0
      %2197 = vmatprep.subr.mxu0 0.0
      %2198 = vmatpush1.msra.mxu0 0.0
      %2199 = vmatprep.subr.mxu0 0.0
      %2200 = vmatpush1.msra.mxu0 0.0
      %2201 = vmatprep.subr.mxu0 0.0
      %2202 = vmatpush1.msra.mxu0 0.0
      %2203 = vmatprep.subr.mxu0 0.0
      %2204 = vmatpush1.msra.mxu0 0.0
      %2205 = vmatprep.subr.mxu0 0.0
      %2206 = vmatpush1.msra.mxu0 0.0
      %2207 = vmatprep.subr.mxu0 0.0
      %2208 = vmatpush1.msra.mxu0 0.0
      %2209 = vmatprep.subr.mxu0 0.0
      %2210 = vmatpush1.msra.mxu0 0.0
      %2211 = vmatprep.subr.mxu0 0.0
      %2212 = vmatpush1.msra.mxu0 0.0
      %2213 = vmatprep.subr.mxu0 0.0
      %2214 = vmatpush1.msra.mxu0 0.0
      %2215 = vmatprep.subr.mxu0 0.0
      %2216 = vmatpush1.msra.mxu0 0.0
      %2217 = vmatprep.subr.mxu0 0.0
      %2218 = vmatpush1.msra.mxu0 0.0
      %2219 = vmatprep.subr.mxu0 0.0
      %2220 = vmatpush1.msra.mxu0 0.0
      %2221 = vmatprep.subr.mxu0 0.0
      %2222 = vmatpush1.msra.mxu0 0.0
      %2223 = vmatprep.subr.mxu0 0.0
      %2224 = vmatpush1.msra.mxu0 0.0
      %2225 = vmatprep.subr.mxu0 0.0
      %2226 = vmatpush1.msra.mxu0 0.0
      %2227 = vmatprep.subr.mxu0 0.0
      %2228 = vmatpush1.msra.mxu0 0.0
      %2229 = vmatprep.subr.mxu0 0.0
      %2230 = vmatpush1.msra.mxu0 0.0
      %2231 = vmatprep.subr.mxu0 0.0
      %2232 = vmatpush1.msra.mxu0 0.0
      %2233 = vmatprep.subr.mxu0 0.0
      %2234 = vmatpush1.msra.mxu0 0.0
      %2235 = vmatprep.subr.mxu0 0.0
      %2236 = vmatpush1.msra.mxu0 0.0
      %2237 = vmatprep.subr.mxu0 0.0
      %2238 = vmatpush1.msra.mxu0 0.0
      %2239 = vmatprep.mubr.f32.mxu0 0.0
      %2240 = vmatmul.mubr.f32.gmra.mrb[0].mxu0 %v2167
      %v2241 = vpop.f32.mrb[0].mxu0
      %v2242 = vadd.f32 0.0, %v2241
      %v2243 = vpop.f32.mrb[0].mxu0
      %v2244 = vadd.f32 0.0, %v2243
      %2245 = vdwg.mxu0
      %2246 = vmatprep.subr.mxu0 0.0
      %2247 = vmatpush1.msra.mxu0 %v2173
      %2248 = vmatprep.subr.mxu0 0.0
      %2249 = vmatpush1.msra.mxu0 0.0
      %2250 = vmatprep.subr.mxu0 0.0
      %2251 = vmatpush1.msra.mxu0 0.0
      %2252 = vmatprep.subr.mxu0 0.0
      %2253 = vmatpush1.msra.mxu0 0.0
      %2254 = vmatprep.subr.mxu0 0.0
      %2255 = vmatpush1.msra.mxu0 0.0
      %2256 = vmatprep.subr.mxu0 0.0
      %2257 = vmatpush1.msra.mxu0 0.0
      %2258 = vmatprep.subr.mxu0 0.0
      %2259 = vmatpush1.msra.mxu0 0.0
      %2260 = vmatprep.subr.mxu0 0.0
      %2261 = vmatpush1.msra.mxu0 0.0
      %2262 = vmatprep.subr.mxu0 0.0
      %2263 = vmatpush1.msra.mxu0 0.0
      %2264 = vmatprep.subr.mxu0 0.0
      %2265 = vmatpush1.msra.mxu0 0.0
      %2266 = vmatprep.subr.mxu0 0.0
      %2267 = vmatpush1.msra.mxu0 0.0
      %2268 = vmatprep.subr.mxu0 0.0
      %2269 = vmatpush1.msra.mxu0 0.0
      %2270 = vmatprep.subr.mxu0 0.0
      %2271 = vmatpush1.msra.mxu0 0.0
      %2272 = vmatprep.subr.mxu0 0.0
      %2273 = vmatpush1.msra.mxu0 0.0
      %2274 = vmatprep.subr.mxu0 0.0
      %2275 = vmatpush1.msra.mxu0 0.0
      %2276 = vmatprep.subr.mxu0 0.0
      %2277 = vmatpush1.msra.mxu0 0.0
      %2278 = vmatprep.subr.mxu0 0.0
      %2279 = vmatpush1.msra.mxu0 0.0
      %2280 = vmatprep.subr.mxu0 0.0
      %2281 = vmatpush1.msra.mxu0 0.0
      %2282 = vmatprep.subr.mxu0 0.0
      %2283 = vmatpush1.msra.mxu0 0.0
      %2284 = vmatprep.subr.mxu0 0.0
      %2285 = vmatpush1.msra.mxu0 0.0
      %2286 = vmatprep.subr.mxu0 0.0
      %2287 = vmatpush1.msra.mxu0 0.0
      %2288 = vmatprep.subr.mxu0 0.0
      %2289 = vmatpush1.msra.mxu0 0.0
      %2290 = vmatprep.subr.mxu0 0.0
      %2291 = vmatpush1.msra.mxu0 0.0
      %2292 = vmatprep.subr.mxu0 0.0
      %2293 = vmatpush1.msra.mxu0 0.0
      %2294 = vmatprep.subr.mxu0 0.0
      %2295 = vmatpush1.msra.mxu0 0.0
      %2296 = vmatprep.subr.mxu0 0.0
      %2297 = vmatpush1.msra.mxu0 0.0
      %2298 = vmatprep.subr.mxu0 0.0
      %2299 = vmatpush1.msra.mxu0 0.0
      %2300 = vmatprep.subr.mxu0 0.0
      %2301 = vmatpush1.msra.mxu0 0.0
      %2302 = vmatprep.subr.mxu0 0.0
      %2303 = vmatpush1.msra.mxu0 0.0
      %2304 = vmatprep.subr.mxu0 0.0
      %2305 = vmatpush1.msra.mxu0 0.0
      %2306 = vmatprep.subr.mxu0 0.0
      %2307 = vmatpush1.msra.mxu0 0.0
      %2308 = vmatprep.subr.mxu0 0.0
      %2309 = vmatpush1.msra.mxu0 0.0
      %2310 = vmatprep.mubr.f32.mxu0 0.0
      %2311 = vmatmul.mubr.f32.gmra.mrb[0].mxu0 %v2167
      %v2312 = vpop.f32.mrb[0].mxu0
      %v2313 = vadd.f32 0.0, %v2312
      %v2314 = vpop.f32.mrb[0].mxu0
      %2315 = vdwg.mxu0
      %v2316 = vld [vmem:[#allocation2] sm:$0xff]
      %v2317 = vld [vmem:[#allocation2 + $0x8] sm:$0xff]
      %v2318 = vld [vmem:[#allocation2 + $0x10] sm:$0xff]
      %v2319 = vadd.f32 %v2316, %v2242
      %v2320 = vadd.f32 %v2317, %v2244
      %v2321 = vadd.f32 %v2318, %v2313
      %2322 = vst [vmem:[#allocation2] sm:$0xff] %v2319
      %2323 = vst [vmem:[#allocation2 + $0x8] sm:$0xff] %v2320
      %2324 = vst.msk [vmem:[#allocation2 + $0x10] sm:$0xff] %vm387, %v2321
      %v2325 = vld [vmem:[%s214] sm:$0xff]
      %v2326 = vld [vmem:[%s214 + $0x8] sm:$0xf]
      %v2327 = vld [vmem:[%s0] sm:$0xff]
      %2329 = vrot.lane.b32.xlu0 %v2327, 80
      %v2330 = vpop.permute.xlu0 %2329
      %v2333 = vcombine.high %v2325, %v2325
      %2334 = vrot.lane.b32.xlu0 %v2325, 86
      %v2335 = vpop.permute.xlu0 %2334
      %2336 = vrot.lane.b32.xlu0 %v2333, 86
      %v2337 = vpop.permute.xlu0 %2336
      %2338 = vrot.lane.b32.xlu0 %v2326, 86
      %v2339 = vpop.permute.xlu0 %2338
      %vm2340 = vcmask 703488
      %v2341 = vsel %vm2340, %v2335, %v2337
      %v2342 = vsel %vm2340, %v2337, %v2339
      %v2343 = vsel %vm233, %v2330, 0
      %v2345 = vsel %vm237, %v2341, 0
      %v2347 = vsel %vm237, %v2342, 0
      %v2349 = vsel %vm237, %v2339, 0
      %2351 = vmatprep.subr.mxu0 %v2347
      %2352 = vmatpush1.msra.mxu0 %v2345
      %2353 = vmatprep.subr.mxu0 0.0
      %2354 = vmatpush1.msra.mxu0 0.0
      %2355 = vmatprep.subr.mxu0 0.0
      %2356 = vmatpush1.msra.mxu0 0.0
      %2357 = vmatprep.subr.mxu0 0.0
      %2358 = vmatpush1.msra.mxu0 0.0
      %2359 = vmatprep.subr.mxu0 0.0
      %2360 = vmatpush1.msra.mxu0 0.0
      %2361 = vmatprep.subr.mxu0 0.0
      %2362 = vmatpush1.msra.mxu0 0.0
      %2363 = vmatprep.subr.mxu0 0.0
      %2364 = vmatpush1.msra.mxu0 0.0
      %2365 = vmatprep.subr.mxu0 0.0
      %2366 = vmatpush1.msra.mxu0 0.0
      %2367 = vmatprep.subr.mxu0 0.0
      %2368 = vmatpush1.msra.mxu0 0.0
      %2369 = vmatprep.subr.mxu0 0.0
      %2370 = vmatpush1.msra.mxu0 0.0
      %2371 = vmatprep.subr.mxu0 0.0
      %2372 = vmatpush1.msra.mxu0 0.0
      %2373 = vmatprep.subr.mxu0 0.0
      %2374 = vmatpush1.msra.mxu0 0.0
      %2375 = vmatprep.subr.mxu0 0.0
      %2376 = vmatpush1.msra.mxu0 0.0
      %2377 = vmatprep.subr.mxu0 0.0
      %2378 = vmatpush1.msra.mxu0 0.0
      %2379 = vmatprep.subr.mxu0 0.0
      %2380 = vmatpush1.msra.mxu0 0.0
      %2381 = vmatprep.subr.mxu0 0.0
      %2382 = vmatpush1.msra.mxu0 0.0
      %2383 = vmatprep.subr.mxu0 0.0
      %2384 = vmatpush1.msra.mxu0 0.0
      %2385 = vmatprep.subr.mxu0 0.0
      %2386 = vmatpush1.msra.mxu0 0.0
      %2387 = vmatprep.subr.mxu0 0.0
      %2388 = vmatpush1.msra.mxu0 0.0
      %2389 = vmatprep.subr.mxu0 0.0
      %2390 = vmatpush1.msra.mxu0 0.0
      %2391 = vmatprep.subr.mxu0 0.0
      %2392 = vmatpush1.msra.mxu0 0.0
      %2393 = vmatprep.subr.mxu0 0.0
      %2394 = vmatpush1.msra.mxu0 0.0
      %2395 = vmatprep.subr.mxu0 0.0
      %2396 = vmatpush1.msra.mxu0 0.0
      %2397 = vmatprep.subr.mxu0 0.0
      %2398 = vmatpush1.msra.mxu0 0.0
      %2399 = vmatprep.subr.mxu0 0.0
      %2400 = vmatpush1.msra.mxu0 0.0
      %2401 = vmatprep.subr.mxu0 0.0
      %2402 = vmatpush1.msra.mxu0 0.0
      %2403 = vmatprep.subr.mxu0 0.0
      %2404 = vmatpush1.msra.mxu0 0.0
      %2405 = vmatprep.subr.mxu0 0.0
      %2406 = vmatpush1.msra.mxu0 0.0
      %2407 = vmatprep.subr.mxu0 0.0
      %2408 = vmatpush1.msra.mxu0 0.0
      %2409 = vmatprep.subr.mxu0 0.0
      %2410 = vmatpush1.msra.mxu0 0.0
      %2411 = vmatprep.subr.mxu0 0.0
      %2412 = vmatpush1.msra.mxu0 0.0
      %2413 = vmatprep.subr.mxu0 0.0
      %2414 = vmatpush1.msra.mxu0 0.0
      %2415 = vmatprep.mubr.f32.mxu0 0.0
      %2416 = vmatmul.mubr.f32.gmra.mrb[0].mxu0 %v2343
      %v2417 = vpop.f32.mrb[0].mxu0
      %v2418 = vadd.f32 0.0, %v2417
      %v2419 = vpop.f32.mrb[0].mxu0
      %v2420 = vadd.f32 0.0, %v2419
      %2421 = vdwg.mxu0
      %2422 = vmatprep.subr.mxu0 0.0
      %2423 = vmatpush1.msra.mxu0 %v2349
      %2424 = vmatprep.subr.mxu0 0.0
      %2425 = vmatpush1.msra.mxu0 0.0
      %2426 = vmatprep.subr.mxu0 0.0
      %2427 = vmatpush1.msra.mxu0 0.0
      %2428 = vmatprep.subr.mxu0 0.0
      %2429 = vmatpush1.msra.mxu0 0.0
      %2430 = vmatprep.subr.mxu0 0.0
      %2431 = vmatpush1.msra.mxu0 0.0
      %2432 = vmatprep.subr.mxu0 0.0
      %2433 = vmatpush1.msra.mxu0 0.0
      %2434 = vmatprep.subr.mxu0 0.0
      %2435 = vmatpush1.msra.mxu0 0.0
      %2436 = vmatprep.subr.mxu0 0.0
      %2437 = vmatpush1.msra.mxu0 0.0
      %2438 = vmatprep.subr.mxu0 0.0
      %2439 = vmatpush1.msra.mxu0 0.0
      %2440 = vmatprep.subr.mxu0 0.0
      %2441 = vmatpush1.msra.mxu0 0.0
      %2442 = vmatprep.subr.mxu0 0.0
      %2443 = vmatpush1.msra.mxu0 0.0
      %2444 = vmatprep.subr.mxu0 0.0
      %2445 = vmatpush1.msra.mxu0 0.0
      %2446 = vmatprep.subr.mxu0 0.0
      %2447 = vmatpush1.msra.mxu0 0.0
      %2448 = vmatprep.subr.mxu0 0.0
      %2449 = vmatpush1.msra.mxu0 0.0
      %2450 = vmatprep.subr.mxu0 0.0
      %2451 = vmatpush1.msra.mxu0 0.0
      %2452 = vmatprep.subr.mxu0 0.0
      %2453 = vmatpush1.msra.mxu0 0.0
      %2454 = vmatprep.subr.mxu0 0.0
      %2455 = vmatpush1.msra.mxu0 0.0
      %2456 = vmatprep.subr.mxu0 0.0
      %2457 = vmatpush1.msra.mxu0 0.0
      %2458 = vmatprep.subr.mxu0 0.0
      %2459 = vmatpush1.msra.mxu0 0.0
      %2460 = vmatprep.subr.mxu0 0.0
      %2461 = vmatpush1.msra.mxu0 0.0
      %2462 = vmatprep.subr.mxu0 0.0
      %2463 = vmatpush1.msra.mxu0 0.0
      %2464 = vmatprep.subr.mxu0 0.0
      %2465 = vmatpush1.msra.mxu0 0.0
      %2466 = vmatprep.subr.mxu0 0.0
      %2467 = vmatpush1.msra.mxu0 0.0
      %2468 = vmatprep.subr.mxu0 0.0
      %2469 = vmatpush1.msra.mxu0 0.0
      %2470 = vmatprep.subr.mxu0 0.0
      %2471 = vmatpush1.msra.mxu0 0.0
      %2472 = vmatprep.subr.mxu0 0.0
      %2473 = vmatpush1.msra.mxu0 0.0
      %2474 = vmatprep.subr.mxu0 0.0
      %2475 = vmatpush1.msra.mxu0 0.0
      %2476 = vmatprep.subr.mxu0 0.0
      %2477 = vmatpush1.msra.mxu0 0.0
      %2478 = vmatprep.subr.mxu0 0.0
      %2479 = vmatpush1.msra.mxu0 0.0
      %2480 = vmatprep.subr.mxu0 0.0
      %2481 = vmatpush1.msra.mxu0 0.0
      %2482 = vmatprep.subr.mxu0 0.0
      %2483 = vmatpush1.msra.mxu0 0.0
      %2484 = vmatprep.subr.mxu0 0.0
      %2485 = vmatpush1.msra.mxu0 0.0
      %2486 = vmatprep.mubr.f32.mxu0 0.0
      %2487 = vmatmul.mubr.f32.gmra.mrb[0].mxu0 %v2343
      %v2488 = vpop.f32.mrb[0].mxu0
      %v2489 = vadd.f32 0.0, %v2488
      %v2490 = vpop.f32.mrb[0].mxu0
      %2491 = vdwg.mxu0
      %v2492 = vld [vmem:[#allocation2] sm:$0xff]
      %v2493 = vld [vmem:[#allocation2 + $0x8] sm:$0xff]
      %v2494 = vld [vmem:[#allocation2 + $0x10] sm:$0xff]
      %v2495 = vadd.f32 %v2492, %v2418
      %v2496 = vadd.f32 %v2493, %v2420
      %v2497 = vadd.f32 %v2494, %v2489
      %2498 = vst [vmem:[#allocation2] sm:$0xff] %v2495
      %2499 = vst [vmem:[#allocation2 + $0x8] sm:$0xff] %v2496
      %2500 = vst.msk [vmem:[#allocation2 + $0x10] sm:$0xff] %vm387, %v2497
      %v2501 = vld [vmem:[%s214] sm:$0xff]
      %v2502 = vld [vmem:[%s214 + $0x8] sm:$0xf]
      %v2503 = vld [vmem:[%s0] sm:$0xff]
      %2505 = vrot.lane.b32.xlu0 %v2503, 76
      %v2506 = vpop.permute.xlu0 %2505
      %v2509 = vcombine.high %v2501, %v2501
      %2510 = vrot.lane.b32.xlu0 %v2501, 85
      %v2511 = vpop.permute.xlu0 %2510
      %2512 = vrot.lane.b32.xlu0 %v2509, 85
      %v2513 = vpop.permute.xlu0 %2512
      %2514 = vrot.lane.b32.xlu0 %v2502, 85
      %v2515 = vpop.permute.xlu0 %2514
      %vm2516 = vcmask 695296
      %v2517 = vsel %vm2516, %v2511, %v2513
      %v2518 = vsel %vm2516, %v2513, %v2515
      %v2519 = vsel %vm233, %v2506, 0
      %v2521 = vsel %vm237, %v2517, 0
      %v2523 = vsel %vm237, %v2518, 0
      %v2525 = vsel %vm237, %v2515, 0
      %2527 = vmatprep.subr.mxu0 %v2523
      %2528 = vmatpush1.msra.mxu0 %v2521
      %2529 = vmatprep.subr.mxu0 0.0
      %2530 = vmatpush1.msra.mxu0 0.0
      %2531 = vmatprep.subr.mxu0 0.0
      %2532 = vmatpush1.msra.mxu0 0.0
      %2533 = vmatprep.subr.mxu0 0.0
      %2534 = vmatpush1.msra.mxu0 0.0
      %2535 = vmatprep.subr.mxu0 0.0
      %2536 = vmatpush1.msra.mxu0 0.0
      %2537 = vmatprep.subr.mxu0 0.0
      %2538 = vmatpush1.msra.mxu0 0.0
      %2539 = vmatprep.subr.mxu0 0.0
      %2540 = vmatpush1.msra.mxu0 0.0
      %2541 = vmatprep.subr.mxu0 0.0
      %2542 = vmatpush1.msra.mxu0 0.0
      %2543 = vmatprep.subr.mxu0 0.0
      %2544 = vmatpush1.msra.mxu0 0.0
      %2545 = vmatprep.subr.mxu0 0.0
      %2546 = vmatpush1.msra.mxu0 0.0
      %2547 = vmatprep.subr.mxu0 0.0
      %2548 = vmatpush1.msra.mxu0 0.0
      %2549 = vmatprep.subr.mxu0 0.0
      %2550 = vmatpush1.msra.mxu0 0.0
      %2551 = vmatprep.subr.mxu0 0.0
      %2552 = vmatpush1.msra.mxu0 0.0
      %2553 = vmatprep.subr.mxu0 0.0
      %2554 = vmatpush1.msra.mxu0 0.0
      %2555 = vmatprep.subr.mxu0 0.0
      %2556 = vmatpush1.msra.mxu0 0.0
      %2557 = vmatprep.subr.mxu0 0.0
      %2558 = vmatpush1.msra.mxu0 0.0
      %2559 = vmatprep.subr.mxu0 0.0
      %2560 = vmatpush1.msra.mxu0 0.0
      %2561 = vmatprep.subr.mxu0 0.0
      %2562 = vmatpush1.msra.mxu0 0.0
      %2563 = vmatprep.subr.mxu0 0.0
      %2564 = vmatpush1.msra.mxu0 0.0
      %2565 = vmatprep.subr.mxu0 0.0
      %2566 = vmatpush1.msra.mxu0 0.0
      %2567 = vmatprep.subr.mxu0 0.0
      %2568 = vmatpush1.msra.mxu0 0.0
      %2569 = vmatprep.subr.mxu0 0.0
      %2570 = vmatpush1.msra.mxu0 0.0
      %2571 = vmatprep.subr.mxu0 0.0
      %2572 = vmatpush1.msra.mxu0 0.0
      %2573 = vmatprep.subr.mxu0 0.0
      %2574 = vmatpush1.msra.mxu0 0.0
      %2575 = vmatprep.subr.mxu0 0.0
      %2576 = vmatpush1.msra.mxu0 0.0
      %2577 = vmatprep.subr.mxu0 0.0
      %2578 = vmatpush1.msra.mxu0 0.0
      %2579 = vmatprep.subr.mxu0 0.0
      %2580 = vmatpush1.msra.mxu0 0.0
      %2581 = vmatprep.subr.mxu0 0.0
      %2582 = vmatpush1.msra.mxu0 0.0
      %2583 = vmatprep.subr.mxu0 0.0
      %2584 = vmatpush1.msra.mxu0 0.0
      %2585 = vmatprep.subr.mxu0 0.0
      %2586 = vmatpush1.msra.mxu0 0.0
      %2587 = vmatprep.subr.mxu0 0.0
      %2588 = vmatpush1.msra.mxu0 0.0
      %2589 = vmatprep.subr.mxu0 0.0
      %2590 = vmatpush1.msra.mxu0 0.0
      %2591 = vmatprep.mubr.f32.mxu0 0.0
      %2592 = vmatmul.mubr.f32.gmra.mrb[0].mxu0 %v2519
      %v2593 = vpop.f32.mrb[0].mxu0
      %v2594 = vadd.f32 0.0, %v2593
      %v2595 = vpop.f32.mrb[0].mxu0
      %v2596 = vadd.f32 0.0, %v2595
      %2597 = vdwg.mxu0
      %2598 = vmatprep.subr.mxu0 0.0
      %2599 = vmatpush1.msra.mxu0 %v2525
      %2600 = vmatprep.subr.mxu0 0.0
      %2601 = vmatpush1.msra.mxu0 0.0
      %2602 = vmatprep.subr.mxu0 0.0
      %2603 = vmatpush1.msra.mxu0 0.0
      %2604 = vmatprep.subr.mxu0 0.0
      %2605 = vmatpush1.msra.mxu0 0.0
      %2606 = vmatprep.subr.mxu0 0.0
      %2607 = vmatpush1.msra.mxu0 0.0
      %2608 = vmatprep.subr.mxu0 0.0
      %2609 = vmatpush1.msra.mxu0 0.0
      %2610 = vmatprep.subr.mxu0 0.0
      %2611 = vmatpush1.msra.mxu0 0.0
      %2612 = vmatprep.subr.mxu0 0.0
      %2613 = vmatpush1.msra.mxu0 0.0
      %2614 = vmatprep.subr.mxu0 0.0
      %2615 = vmatpush1.msra.mxu0 0.0
      %2616 = vmatprep.subr.mxu0 0.0
      %2617 = vmatpush1.msra.mxu0 0.0
      %2618 = vmatprep.subr.mxu0 0.0
      %2619 = vmatpush1.msra.mxu0 0.0
      %2620 = vmatprep.subr.mxu0 0.0
      %2621 = vmatpush1.msra.mxu0 0.0
      %2622 = vmatprep.subr.mxu0 0.0
      %2623 = vmatpush1.msra.mxu0 0.0
      %2624 = vmatprep.subr.mxu0 0.0
      %2625 = vmatpush1.msra.mxu0 0.0
      %2626 = vmatprep.subr.mxu0 0.0
      %2627 = vmatpush1.msra.mxu0 0.0
      %2628 = vmatprep.subr.mxu0 0.0
      %2629 = vmatpush1.msra.mxu0 0.0
      %2630 = vmatprep.subr.mxu0 0.0
      %2631 = vmatpush1.msra.mxu0 0.0
      %2632 = vmatprep.subr.mxu0 0.0
      %2633 = vmatpush1.msra.mxu0 0.0
      %2634 = vmatprep.subr.mxu0 0.0
      %2635 = vmatpush1.msra.mxu0 0.0
      %2636 = vmatprep.subr.mxu0 0.0
      %2637 = vmatpush1.msra.mxu0 0.0
      %2638 = vmatprep.subr.mxu0 0.0
      %2639 = vmatpush1.msra.mxu0 0.0
      %2640 = vmatprep.subr.mxu0 0.0
      %2641 = vmatpush1.msra.mxu0 0.0
      %2642 = vmatprep.subr.mxu0 0.0
      %2643 = vmatpush1.msra.mxu0 0.0
      %2644 = vmatprep.subr.mxu0 0.0
      %2645 = vmatpush1.msra.mxu0 0.0
      %2646 = vmatprep.subr.mxu0 0.0
      %2647 = vmatpush1.msra.mxu0 0.0
      %2648 = vmatprep.subr.mxu0 0.0
      %2649 = vmatpush1.msra.mxu0 0.0
      %2650 = vmatprep.subr.mxu0 0.0
      %2651 = vmatpush1.msra.mxu0 0.0
      %2652 = vmatprep.subr.mxu0 0.0
      %2653 = vmatpush1.msra.mxu0 0.0
      %2654 = vmatprep.subr.mxu0 0.0
      %2655 = vmatpush1.msra.mxu0 0.0
      %2656 = vmatprep.subr.mxu0 0.0
      %2657 = vmatpush1.msra.mxu0 0.0
      %2658 = vmatprep.subr.mxu0 0.0
      %2659 = vmatpush1.msra.mxu0 0.0
      %2660 = vmatprep.subr.mxu0 0.0
      %2661 = vmatpush1.msra.mxu0 0.0
      %2662 = vmatprep.mubr.f32.mxu0 0.0
      %2663 = vmatmul.mubr.f32.gmra.mrb[0].mxu0 %v2519
      %v2664 = vpop.f32.mrb[0].mxu0
      %v2665 = vadd.f32 0.0, %v2664
      %v2666 = vpop.f32.mrb[0].mxu0
      %2667 = vdwg.mxu0
      %v2668 = vld [vmem:[#allocation2] sm:$0xff]
      %v2669 = vld [vmem:[#allocation2 + $0x8] sm:$0xff]
      %v2670 = vld [vmem:[#allocation2 + $0x10] sm:$0xff]
      %v2671 = vadd.f32 %v2668, %v2594
      %v2672 = vadd.f32 %v2669, %v2596
      %v2673 = vadd.f32 %v2670, %v2665
      %2674 = vst [vmem:[#allocation2] sm:$0xff] %v2671
      %2675 = vst [vmem:[#allocation2 + $0x8] sm:$0xff] %v2672
      %2676 = vst.msk [vmem:[#allocation2 + $0x10] sm:$0xff] %vm387, %v2673
      %v2677 = vld [vmem:[%s214] sm:$0xff]
      %v2678 = vld [vmem:[%s214 + $0x8] sm:$0xf]
      %v2679 = vld [vmem:[%s0] sm:$0xff]
      %2681 = vrot.lane.b32.xlu0 %v2679, 72
      %v2682 = vpop.permute.xlu0 %2681
      %v2685 = vcombine.high %v2677, %v2677
      %2686 = vrot.lane.b32.xlu0 %v2677, 84
      %v2687 = vpop.permute.xlu0 %2686
      %2688 = vrot.lane.b32.xlu0 %v2685, 84
      %v2689 = vpop.permute.xlu0 %2688
      %2690 = vrot.lane.b32.xlu0 %v2678, 84
      %v2691 = vpop.permute.xlu0 %2690
      %vm2692 = vcmask 687104
      %v2693 = vsel %vm2692, %v2687, %v2689
      %v2694 = vsel %vm2692, %v2689, %v2691
      %v2695 = vsel %vm233, %v2682, 0
      %v2697 = vsel %vm237, %v2693, 0
      %v2699 = vsel %vm237, %v2694, 0
      %v2701 = vsel %vm237, %v2691, 0
      %2703 = vmatprep.subr.mxu0 %v2699
      %2704 = vmatpush1.msra.mxu0 %v2697
      %2705 = vmatprep.subr.mxu0 0.0
      %2706 = vmatpush1.msra.mxu0 0.0
      %2707 = vmatprep.subr.mxu0 0.0
      %2708 = vmatpush1.msra.mxu0 0.0
      %2709 = vmatprep.subr.mxu0 0.0
      %2710 = vmatpush1.msra.mxu0 0.0
      %2711 = vmatprep.subr.mxu0 0.0
      %2712 = vmatpush1.msra.mxu0 0.0
      %2713 = vmatprep.subr.mxu0 0.0
      %2714 = vmatpush1.msra.mxu0 0.0
      %2715 = vmatprep.subr.mxu0 0.0
      %2716 = vmatpush1.msra.mxu0 0.0
      %2717 = vmatprep.subr.mxu0 0.0
      %2718 = vmatpush1.msra.mxu0 0.0
      %2719 = vmatprep.subr.mxu0 0.0
      %2720 = vmatpush1.msra.mxu0 0.0
      %2721 = vmatprep.subr.mxu0 0.0
      %2722 = vmatpush1.msra.mxu0 0.0
      %2723 = vmatprep.subr.mxu0 0.0
      %2724 = vmatpush1.msra.mxu0 0.0
      %2725 = vmatprep.subr.mxu0 0.0
      %2726 = vmatpush1.msra.mxu0 0.0
      %2727 = vmatprep.subr.mxu0 0.0
      %2728 = vmatpush1.msra.mxu0 0.0
      %2729 = vmatprep.subr.mxu0 0.0
      %2730 = vmatpush1.msra.mxu0 0.0
      %2731 = vmatprep.subr.mxu0 0.0
      %2732 = vmatpush1.msra.mxu0 0.0
      %2733 = vmatprep.subr.mxu0 0.0
      %2734 = vmatpush1.msra.mxu0 0.0
      %2735 = vmatprep.subr.mxu0 0.0
      %2736 = vmatpush1.msra.mxu0 0.0
      %2737 = vmatprep.subr.mxu0 0.0
      %2738 = vmatpush1.msra.mxu0 0.0
      %2739 = vmatprep.subr.mxu0 0.0
      %2740 = vmatpush1.msra.mxu0 0.0
      %2741 = vmatprep.subr.mxu0 0.0
      %2742 = vmatpush1.msra.mxu0 0.0
      %2743 = vmatprep.subr.mxu0 0.0
      %2744 = vmatpush1.msra.mxu0 0.0
      %2745 = vmatprep.subr.mxu0 0.0
      %2746 = vmatpush1.msra.mxu0 0.0
      %2747 = vmatprep.subr.mxu0 0.0
      %2748 = vmatpush1.msra.mxu0 0.0
      %2749 = vmatprep.subr.mxu0 0.0
      %2750 = vmatpush1.msra.mxu0 0.0
      %2751 = vmatprep.subr.mxu0 0.0
      %2752 = vmatpush1.msra.mxu0 0.0
      %2753 = vmatprep.subr.mxu0 0.0
      %2754 = vmatpush1.msra.mxu0 0.0
      %2755 = vmatprep.subr.mxu0 0.0
      %2756 = vmatpush1.msra.mxu0 0.0
      %2757 = vmatprep.subr.mxu0 0.0
      %2758 = vmatpush1.msra.mxu0 0.0
      %2759 = vmatprep.subr.mxu0 0.0
      %2760 = vmatpush1.msra.mxu0 0.0
      %2761 = vmatprep.subr.mxu0 0.0
      %2762 = vmatpush1.msra.mxu0 0.0
      %2763 = vmatprep.subr.mxu0 0.0
      %2764 = vmatpush1.msra.mxu0 0.0
      %2765 = vmatprep.subr.mxu0 0.0
      %2766 = vmatpush1.msra.mxu0 0.0
      %2767 = vmatprep.mubr.f32.mxu0 0.0
      %2768 = vmatmul.mubr.f32.gmra.mrb[0].mxu0 %v2695
      %v2769 = vpop.f32.mrb[0].mxu0
      %v2770 = vadd.f32 0.0, %v2769
      %v2771 = vpop.f32.mrb[0].mxu0
      %v2772 = vadd.f32 0.0, %v2771
      %2773 = vdwg.mxu0
      %2774 = vmatprep.subr.mxu0 0.0
      %2775 = vmatpush1.msra.mxu0 %v2701
      %2776 = vmatprep.subr.mxu0 0.0
      %2777 = vmatpush1.msra.mxu0 0.0
      %2778 = vmatprep.subr.mxu0 0.0
      %2779 = vmatpush1.msra.mxu0 0.0
      %2780 = vmatprep.subr.mxu0 0.0
      %2781 = vmatpush1.msra.mxu0 0.0
      %2782 = vmatprep.subr.mxu0 0.0
      %2783 = vmatpush1.msra.mxu0 0.0
      %2784 = vmatprep.subr.mxu0 0.0
      %2785 = vmatpush1.msra.mxu0 0.0
      %2786 = vmatprep.subr.mxu0 0.0
      %2787 = vmatpush1.msra.mxu0 0.0
      %2788 = vmatprep.subr.mxu0 0.0
      %2789 = vmatpush1.msra.mxu0 0.0
      %2790 = vmatprep.subr.mxu0 0.0
      %2791 = vmatpush1.msra.mxu0 0.0
      %2792 = vmatprep.subr.mxu0 0.0
      %2793 = vmatpush1.msra.mxu0 0.0
      %2794 = vmatprep.subr.mxu0 0.0
      %2795 = vmatpush1.msra.mxu0 0.0
      %2796 = vmatprep.subr.mxu0 0.0
      %2797 = vmatpush1.msra.mxu0 0.0
      %2798 = vmatprep.subr.mxu0 0.0
      %2799 = vmatpush1.msra.mxu0 0.0
      %2800 = vmatprep.subr.mxu0 0.0
      %2801 = vmatpush1.msra.mxu0 0.0
      %2802 = vmatprep.subr.mxu0 0.0
      %2803 = vmatpush1.msra.mxu0 0.0
      %2804 = vmatprep.subr.mxu0 0.0
      %2805 = vmatpush1.msra.mxu0 0.0
      %2806 = vmatprep.subr.mxu0 0.0
      %2807 = vmatpush1.msra.mxu0 0.0
      %2808 = vmatprep.subr.mxu0 0.0
      %2809 = vmatpush1.msra.mxu0 0.0
      %2810 = vmatprep.subr.mxu0 0.0
      %2811 = vmatpush1.msra.mxu0 0.0
      %2812 = vmatprep.subr.mxu0 0.0
      %2813 = vmatpush1.msra.mxu0 0.0
      %2814 = vmatprep.subr.mxu0 0.0
      %2815 = vmatpush1.msra.mxu0 0.0
      %2816 = vmatprep.subr.mxu0 0.0
      %2817 = vmatpush1.msra.mxu0 0.0
      %2818 = vmatprep.subr.mxu0 0.0
      %2819 = vmatpush1.msra.mxu0 0.0
      %2820 = vmatprep.subr.mxu0 0.0
      %2821 = vmatpush1.msra.mxu0 0.0
      %2822 = vmatprep.subr.mxu0 0.0
      %2823 = vmatpush1.msra.mxu0 0.0
      %2824 = vmatprep.subr.mxu0 0.0
      %2825 = vmatpush1.msra.mxu0 0.0
      %2826 = vmatprep.subr.mxu0 0.0
      %2827 = vmatpush1.msra.mxu0 0.0
      %2828 = vmatprep.subr.mxu0 0.0
      %2829 = vmatpush1.msra.mxu0 0.0
      %2830 = vmatprep.subr.mxu0 0.0
      %2831 = vmatpush1.msra.mxu0 0.0
      %2832 = vmatprep.subr.mxu0 0.0
      %2833 = vmatpush1.msra.mxu0 0.0
      %2834 = vmatprep.subr.mxu0 0.0
      %2835 = vmatpush1.msra.mxu0 0.0
      %2836 = vmatprep.subr.mxu0 0.0
      %2837 = vmatpush1.msra.mxu0 0.0
      %2838 = vmatprep.mubr.f32.mxu0 0.0
      %2839 = vmatmul.mubr.f32.gmra.mrb[0].mxu0 %v2695
      %v2840 = vpop.f32.mrb[0].mxu0
      %v2841 = vadd.f32 0.0, %v2840
      %v2842 = vpop.f32.mrb[0].mxu0
      %2843 = vdwg.mxu0
      %v2844 = vld [vmem:[#allocation2] sm:$0xff]
      %v2845 = vld [vmem:[#allocation2 + $0x8] sm:$0xff]
      %v2846 = vld [vmem:[#allocation2 + $0x10] sm:$0xff]
      %v2847 = vadd.f32 %v2844, %v2770
      %v2848 = vadd.f32 %v2845, %v2772
      %v2849 = vadd.f32 %v2846, %v2841
      %2850 = vst [vmem:[#allocation2] sm:$0xff] %v2847
      %2851 = vst [vmem:[#allocation2 + $0x8] sm:$0xff] %v2848
      %2852 = vst.msk [vmem:[#allocation2 + $0x10] sm:$0xff] %vm387, %v2849
      %v2853 = vld [vmem:[%s214] sm:$0xff]
      %v2854 = vld [vmem:[%s214 + $0x8] sm:$0xf]
      %v2855 = vld [vmem:[%s0] sm:$0xff]
      %2857 = vrot.lane.b32.xlu0 %v2855, 68
      %v2858 = vpop.permute.xlu0 %2857
      %v2861 = vcombine.high %v2853, %v2853
      %2862 = vrot.lane.b32.xlu0 %v2853, 68
      %v2863 = vpop.permute.xlu0 %2862
      %2864 = vrot.lane.b32.xlu0 %v2861, 68
      %v2865 = vpop.permute.xlu0 %2864
      %2866 = vrot.lane.b32.xlu0 %v2854, 68
      %v2867 = vpop.permute.xlu0 %2866
      %vm2868 = vcmask 556032
      %v2869 = vsel %vm2868, %v2863, %v2865
      %v2870 = vsel %vm2868, %v2865, %v2867
      %v2871 = vsel %vm233, %v2858, 0
      %v2873 = vsel %vm237, %v2869, 0
      %v2875 = vsel %vm237, %v2870, 0
      %v2877 = vsel %vm237, %v2867, 0
      %2879 = vmatprep.subr.mxu0 %v2875
      %2880 = vmatpush1.msra.mxu0 %v2873
      %2881 = vmatprep.subr.mxu0 0.0
      %2882 = vmatpush1.msra.mxu0 0.0
      %2883 = vmatprep.subr.mxu0 0.0
      %2884 = vmatpush1.msra.mxu0 0.0
      %2885 = vmatprep.subr.mxu0 0.0
      %2886 = vmatpush1.msra.mxu0 0.0
      %2887 = vmatprep.subr.mxu0 0.0
      %2888 = vmatpush1.msra.mxu0 0.0
      %2889 = vmatprep.subr.mxu0 0.0
      %2890 = vmatpush1.msra.mxu0 0.0
      %2891 = vmatprep.subr.mxu0 0.0
      %2892 = vmatpush1.msra.mxu0 0.0
      %2893 = vmatprep.subr.mxu0 0.0
      %2894 = vmatpush1.msra.mxu0 0.0
      %2895 = vmatprep.subr.mxu0 0.0
      %2896 = vmatpush1.msra.mxu0 0.0
      %2897 = vmatprep.subr.mxu0 0.0
      %2898 = vmatpush1.msra.mxu0 0.0
      %2899 = vmatprep.subr.mxu0 0.0
      %2900 = vmatpush1.msra.mxu0 0.0
      %2901 = vmatprep.subr.mxu0 0.0
      %2902 = vmatpush1.msra.mxu0 0.0
      %2903 = vmatprep.subr.mxu0 0.0
      %2904 = vmatpush1.msra.mxu0 0.0
      %2905 = vmatprep.subr.mxu0 0.0
      %2906 = vmatpush1.msra.mxu0 0.0
      %2907 = vmatprep.subr.mxu0 0.0
      %2908 = vmatpush1.msra.mxu0 0.0
      %2909 = vmatprep.subr.mxu0 0.0
      %2910 = vmatpush1.msra.mxu0 0.0
      %2911 = vmatprep.subr.mxu0 0.0
      %2912 = vmatpush1.msra.mxu0 0.0
      %2913 = vmatprep.subr.mxu0 0.0
      %2914 = vmatpush1.msra.mxu0 0.0
      %2915 = vmatprep.subr.mxu0 0.0
      %2916 = vmatpush1.msra.mxu0 0.0
      %2917 = vmatprep.subr.mxu0 0.0
      %2918 = vmatpush1.msra.mxu0 0.0
      %2919 = vmatprep.subr.mxu0 0.0
      %2920 = vmatpush1.msra.mxu0 0.0
      %2921 = vmatprep.subr.mxu0 0.0
      %2922 = vmatpush1.msra.mxu0 0.0
      %2923 = vmatprep.subr.mxu0 0.0
      %2924 = vmatpush1.msra.mxu0 0.0
      %2925 = vmatprep.subr.mxu0 0.0
      %2926 = vmatpush1.msra.mxu0 0.0
      %2927 = vmatprep.subr.mxu0 0.0
      %2928 = vmatpush1.msra.mxu0 0.0
      %2929 = vmatprep.subr.mxu0 0.0
      %2930 = vmatpush1.msra.mxu0 0.0
      %2931 = vmatprep.subr.mxu0 0.0
      %2932 = vmatpush1.msra.mxu0 0.0
      %2933 = vmatprep.subr.mxu0 0.0
      %2934 = vmatpush1.msra.mxu0 0.0
      %2935 = vmatprep.subr.mxu0 0.0
      %2936 = vmatpush1.msra.mxu0 0.0
      %2937 = vmatprep.subr.mxu0 0.0
      %2938 = vmatpush1.msra.mxu0 0.0
      %2939 = vmatprep.subr.mxu0 0.0
      %2940 = vmatpush1.msra.mxu0 0.0
      %2941 = vmatprep.subr.mxu0 0.0
      %2942 = vmatpush1.msra.mxu0 0.0
      %2943 = vmatprep.mubr.f32.mxu0 0.0
      %2944 = vmatmul.mubr.f32.gmra.mrb[0].mxu0 %v2871
      %v2945 = vpop.f32.mrb[0].mxu0
      %v2946 = vadd.f32 0.0, %v2945
      %v2947 = vpop.f32.mrb[0].mxu0
      %v2948 = vadd.f32 0.0, %v2947
      %2949 = vdwg.mxu0
      %2950 = vmatprep.subr.mxu0 0.0
      %2951 = vmatpush1.msra.mxu0 %v2877
      %2952 = vmatprep.subr.mxu0 0.0
      %2953 = vmatpush1.msra.mxu0 0.0
      %2954 = vmatprep.subr.mxu0 0.0
      %2955 = vmatpush1.msra.mxu0 0.0
      %2956 = vmatprep.subr.mxu0 0.0
      %2957 = vmatpush1.msra.mxu0 0.0
      %2958 = vmatprep.subr.mxu0 0.0
      %2959 = vmatpush1.msra.mxu0 0.0
      %2960 = vmatprep.subr.mxu0 0.0
      %2961 = vmatpush1.msra.mxu0 0.0
      %2962 = vmatprep.subr.mxu0 0.0
      %2963 = vmatpush1.msra.mxu0 0.0
      %2964 = vmatprep.subr.mxu0 0.0
      %2965 = vmatpush1.msra.mxu0 0.0
      %2966 = vmatprep.subr.mxu0 0.0
      %2967 = vmatpush1.msra.mxu0 0.0
      %2968 = vmatprep.subr.mxu0 0.0
      %2969 = vmatpush1.msra.mxu0 0.0
      %2970 = vmatprep.subr.mxu0 0.0
      %2971 = vmatpush1.msra.mxu0 0.0
      %2972 = vmatprep.subr.mxu0 0.0
      %2973 = vmatpush1.msra.mxu0 0.0
      %2974 = vmatprep.subr.mxu0 0.0
      %2975 = vmatpush1.msra.mxu0 0.0
      %2976 = vmatprep.subr.mxu0 0.0
      %2977 = vmatpush1.msra.mxu0 0.0
      %2978 = vmatprep.subr.mxu0 0.0
      %2979 = vmatpush1.msra.mxu0 0.0
      %2980 = vmatprep.subr.mxu0 0.0
      %2981 = vmatpush1.msra.mxu0 0.0
      %2982 = vmatprep.subr.mxu0 0.0
      %2983 = vmatpush1.msra.mxu0 0.0
      %2984 = vmatprep.subr.mxu0 0.0
      %2985 = vmatpush1.msra.mxu0 0.0
      %2986 = vmatprep.subr.mxu0 0.0
      %2987 = vmatpush1.msra.mxu0 0.0
      %2988 = vmatprep.subr.mxu0 0.0
      %2989 = vmatpush1.msra.mxu0 0.0
      %2990 = vmatprep.subr.mxu0 0.0
      %2991 = vmatpush1.msra.mxu0 0.0
      %2992 = vmatprep.subr.mxu0 0.0
      %2993 = vmatpush1.msra.mxu0 0.0
      %2994 = vmatprep.subr.mxu0 0.0
      %2995 = vmatpush1.msra.mxu0 0.0
      %2996 = vmatprep.subr.mxu0 0.0
      %2997 = vmatpush1.msra.mxu0 0.0
      %2998 = vmatprep.subr.mxu0 0.0
      %2999 = vmatpush1.msra.mxu0 0.0
      %3000 = vmatprep.subr.mxu0 0.0
      %3001 = vmatpush1.msra.mxu0 0.0
      %3002 = vmatprep.subr.mxu0 0.0
      %3003 = vmatpush1.msra.mxu0 0.0
      %3004 = vmatprep.subr.mxu0 0.0
      %3005 = vmatpush1.msra.mxu0 0.0
      %3006 = vmatprep.subr.mxu0 0.0
      %3007 = vmatpush1.msra.mxu0 0.0
      %3008 = vmatprep.subr.mxu0 0.0
      %3009 = vmatpush1.msra.mxu0 0.0
      %3010 = vmatprep.subr.mxu0 0.0
      %3011 = vmatpush1.msra.mxu0 0.0
      %3012 = vmatprep.subr.mxu0 0.0
      %3013 = vmatpush1.msra.mxu0 0.0
      %3014 = vmatprep.mubr.f32.mxu0 0.0
      %3015 = vmatmul.mubr.f32.gmra.mrb[0].mxu0 %v2871
      %v3016 = vpop.f32.mrb[0].mxu0
      %v3017 = vadd.f32 0.0, %v3016
      %v3018 = vpop.f32.mrb[0].mxu0
      %3019 = vdwg.mxu0
      %v3020 = vld [vmem:[#allocation2] sm:$0xff]
      %v3021 = vld [vmem:[#allocation2 + $0x8] sm:$0xff]
      %v3022 = vld [vmem:[#allocation2 + $0x10] sm:$0xff]
      %v3023 = vadd.f32 %v3020, %v2946
      %v3024 = vadd.f32 %v3021, %v2948
      %v3025 = vadd.f32 %v3022, %v3017
      %3026 = vst [vmem:[#allocation2] sm:$0xff] %v3023
      %3027 = vst [vmem:[#allocation2 + $0x8] sm:$0xff] %v3024
      %3028 = vst.msk [vmem:[#allocation2 + $0x10] sm:$0xff] %vm387, %v3025
      %v3029 = vld [vmem:[%s214] sm:$0xff]
      %v3030 = vld [vmem:[%s214 + $0x8] sm:$0xf]
      %v3031 = vld [vmem:[%s0] sm:$0xff]
      %3033 = vrot.lane.b32.xlu0 %v3031, 64
      %v3034 = vpop.permute.xlu0 %3033
      %v3037 = vcombine.high %v3029, %v3029
      %3038 = vrot.lane.b32.xlu0 %v3029, 67
      %v3039 = vpop.permute.xlu0 %3038
      %3040 = vrot.lane.b32.xlu0 %v3037, 67
      %v3041 = vpop.permute.xlu0 %3040
      %3042 = vrot.lane.b32.xlu0 %v3030, 67
      %v3043 = vpop.permute.xlu0 %3042
      %vm3044 = vcmask 547840
      %v3045 = vsel %vm3044, %v3039, %v3041
      %v3046 = vsel %vm3044, %v3041, %v3043
      %v3047 = vsel %vm233, %v3034, 0
      %v3049 = vsel %vm237, %v3045, 0
      %v3051 = vsel %vm237, %v3046, 0
      %v3053 = vsel %vm237, %v3043, 0
      %3055 = vmatprep.subr.mxu0 %v3051
      %3056 = vmatpush1.msra.mxu0 %v3049
      %3057 = vmatprep.subr.mxu0 0.0
      %3058 = vmatpush1.msra.mxu0 0.0
      %3059 = vmatprep.subr.mxu0 0.0
      %3060 = vmatpush1.msra.mxu0 0.0
      %3061 = vmatprep.subr.mxu0 0.0
      %3062 = vmatpush1.msra.mxu0 0.0
      %3063 = vmatprep.subr.mxu0 0.0
      %3064 = vmatpush1.msra.mxu0 0.0
      %3065 = vmatprep.subr.mxu0 0.0
      %3066 = vmatpush1.msra.mxu0 0.0
      %3067 = vmatprep.subr.mxu0 0.0
      %3068 = vmatpush1.msra.mxu0 0.0
      %3069 = vmatprep.subr.mxu0 0.0
      %3070 = vmatpush1.msra.mxu0 0.0
      %3071 = vmatprep.subr.mxu0 0.0
      %3072 = vmatpush1.msra.mxu0 0.0
      %3073 = vmatprep.subr.mxu0 0.0
      %3074 = vmatpush1.msra.mxu0 0.0
      %3075 = vmatprep.subr.mxu0 0.0
      %3076 = vmatpush1.msra.mxu0 0.0
      %3077 = vmatprep.subr.mxu0 0.0
      %3078 = vmatpush1.msra.mxu0 0.0
      %3079 = vmatprep.subr.mxu0 0.0
      %3080 = vmatpush1.msra.mxu0 0.0
      %3081 = vmatprep.subr.mxu0 0.0
      %3082 = vmatpush1.msra.mxu0 0.0
      %3083 = vmatprep.subr.mxu0 0.0
      %3084 = vmatpush1.msra.mxu0 0.0
      %3085 = vmatprep.subr.mxu0 0.0
      %3086 = vmatpush1.msra.mxu0 0.0
      %3087 = vmatprep.subr.mxu0 0.0
      %3088 = vmatpush1.msra.mxu0 0.0
      %3089 = vmatprep.subr.mxu0 0.0
      %3090 = vmatpush1.msra.mxu0 0.0
      %3091 = vmatprep.subr.mxu0 0.0
      %3092 = vmatpush1.msra.mxu0 0.0
      %3093 = vmatprep.subr.mxu0 0.0
      %3094 = vmatpush1.msra.mxu0 0.0
      %3095 = vmatprep.subr.mxu0 0.0
      %3096 = vmatpush1.msra.mxu0 0.0
      %3097 = vmatprep.subr.mxu0 0.0
      %3098 = vmatpush1.msra.mxu0 0.0
      %3099 = vmatprep.subr.mxu0 0.0
      %3100 = vmatpush1.msra.mxu0 0.0
      %3101 = vmatprep.subr.mxu0 0.0
      %3102 = vmatpush1.msra.mxu0 0.0
      %3103 = vmatprep.subr.mxu0 0.0
      %3104 = vmatpush1.msra.mxu0 0.0
      %3105 = vmatprep.subr.mxu0 0.0
      %3106 = vmatpush1.msra.mxu0 0.0
      %3107 = vmatprep.subr.mxu0 0.0
      %3108 = vmatpush1.msra.mxu0 0.0
      %3109 = vmatprep.subr.mxu0 0.0
      %3110 = vmatpush1.msra.mxu0 0.0
      %3111 = vmatprep.subr.mxu0 0.0
      %3112 = vmatpush1.msra.mxu0 0.0
      %3113 = vmatprep.subr.mxu0 0.0
      %3114 = vmatpush1.msra.mxu0 0.0
      %3115 = vmatprep.subr.mxu0 0.0
      %3116 = vmatpush1.msra.mxu0 0.0
      %3117 = vmatprep.subr.mxu0 0.0
      %3118 = vmatpush1.msra.mxu0 0.0
      %3119 = vmatprep.mubr.f32.mxu0 0.0
      %3120 = vmatmul.mubr.f32.gmra.mrb[0].mxu0 %v3047
      %v3121 = vpop.f32.mrb[0].mxu0
      %v3122 = vadd.f32 0.0, %v3121
      %v3123 = vpop.f32.mrb[0].mxu0
      %v3124 = vadd.f32 0.0, %v3123
      %3125 = vdwg.mxu0
      %3126 = vmatprep.subr.mxu0 0.0
      %3127 = vmatpush1.msra.mxu0 %v3053
      %3128 = vmatprep.subr.mxu0 0.0
      %3129 = vmatpush1.msra.mxu0 0.0
      %3130 = vmatprep.subr.mxu0 0.0
      %3131 = vmatpush1.msra.mxu0 0.0
      %3132 = vmatprep.subr.mxu0 0.0
      %3133 = vmatpush1.msra.mxu0 0.0
      %3134 = vmatprep.subr.mxu0 0.0
      %3135 = vmatpush1.msra.mxu0 0.0
      %3136 = vmatprep.subr.mxu0 0.0
      %3137 = vmatpush1.msra.mxu0 0.0
      %3138 = vmatprep.subr.mxu0 0.0
      %3139 = vmatpush1.msra.mxu0 0.0
      %3140 = vmatprep.subr.mxu0 0.0
      %3141 = vmatpush1.msra.mxu0 0.0
      %3142 = vmatprep.subr.mxu0 0.0
      %3143 = vmatpush1.msra.mxu0 0.0
      %3144 = vmatprep.subr.mxu0 0.0
      %3145 = vmatpush1.msra.mxu0 0.0
      %3146 = vmatprep.subr.mxu0 0.0
      %3147 = vmatpush1.msra.mxu0 0.0
      %3148 = vmatprep.subr.mxu0 0.0
      %3149 = vmatpush1.msra.mxu0 0.0
      %3150 = vmatprep.subr.mxu0 0.0
      %3151 = vmatpush1.msra.mxu0 0.0
      %3152 = vmatprep.subr.mxu0 0.0
      %3153 = vmatpush1.msra.mxu0 0.0
      %3154 = vmatprep.subr.mxu0 0.0
      %3155 = vmatpush1.msra.mxu0 0.0
      %3156 = vmatprep.subr.mxu0 0.0
      %3157 = vmatpush1.msra.mxu0 0.0
      %3158 = vmatprep.subr.mxu0 0.0
      %3159 = vmatpush1.msra.mxu0 0.0
      %3160 = vmatprep.subr.mxu0 0.0
      %3161 = vmatpush1.msra.mxu0 0.0
      %3162 = vmatprep.subr.mxu0 0.0
      %3163 = vmatpush1.msra.mxu0 0.0
      %3164 = vmatprep.subr.mxu0 0.0
      %3165 = vmatpush1.msra.mxu0 0.0
      %3166 = vmatprep.subr.mxu0 0.0
      %3167 = vmatpush1.msra.mxu0 0.0
      %3168 = vmatprep.subr.mxu0 0.0
      %3169 = vmatpush1.msra.mxu0 0.0
      %3170 = vmatprep.subr.mxu0 0.0
      %3171 = vmatpush1.msra.mxu0 0.0
      %3172 = vmatprep.subr.mxu0 0.0
      %3173 = vmatpush1.msra.mxu0 0.0
      %3174 = vmatprep.subr.mxu0 0.0
      %3175 = vmatpush1.msra.mxu0 0.0
      %3176 = vmatprep.subr.mxu0 0.0
      %3177 = vmatpush1.msra.mxu0 0.0
      %3178 = vmatprep.subr.mxu0 0.0
      %3179 = vmatpush1.msra.mxu0 0.0
      %3180 = vmatprep.subr.mxu0 0.0
      %3181 = vmatpush1.msra.mxu0 0.0
      %3182 = vmatprep.subr.mxu0 0.0
      %3183 = vmatpush1.msra.mxu0 0.0
      %3184 = vmatprep.subr.mxu0 0.0
      %3185 = vmatpush1.msra.mxu0 0.0
      %3186 = vmatprep.subr.mxu0 0.0
      %3187 = vmatpush1.msra.mxu0 0.0
      %3188 = vmatprep.subr.mxu0 0.0
      %3189 = vmatpush1.msra.mxu0 0.0
      %3190 = vmatprep.mubr.f32.mxu0 0.0
      %3191 = vmatmul.mubr.f32.gmra.mrb[0].mxu0 %v3047
      %v3192 = vpop.f32.mrb[0].mxu0
      %v3193 = vadd.f32 0.0, %v3192
      %v3194 = vpop.f32.mrb[0].mxu0
      %3195 = vdwg.mxu0
      %v3196 = vld [vmem:[#allocation2] sm:$0xff]
      %v3197 = vld [vmem:[#allocation2 + $0x8] sm:$0xff]
      %v3198 = vld [vmem:[#allocation2 + $0x10] sm:$0xff]
      %v3199 = vadd.f32 %v3196, %v3122
      %v3200 = vadd.f32 %v3197, %v3124
      %v3201 = vadd.f32 %v3198, %v3193
      %3202 = vst [vmem:[#allocation2] sm:$0xff] %v3199
      %3203 = vst [vmem:[#allocation2 + $0x8] sm:$0xff] %v3200
      %3204 = vst.msk [vmem:[#allocation2 + $0x10] sm:$0xff] %vm387, %v3201
      %v3205 = vld [vmem:[%s214] sm:$0xff]
      %v3206 = vld [vmem:[%s214 + $0x8] sm:$0xf]
      %v3207 = vld [vmem:[%s0] sm:$0xff]
      %3209 = vrot.lane.b32.xlu0 %v3207, 60
      %v3210 = vpop.permute.xlu0 %3209
      %v3213 = vcombine.high %v3205, %v3205
      %3214 = vrot.lane.b32.xlu0 %v3205, 66
      %v3215 = vpop.permute.xlu0 %3214
      %3216 = vrot.lane.b32.xlu0 %v3213, 66
      %v3217 = vpop.permute.xlu0 %3216
      %3218 = vrot.lane.b32.xlu0 %v3206, 66
      %v3219 = vpop.permute.xlu0 %3218
      %vm3220 = vcmask 539648
      %v3221 = vsel %vm3220, %v3215, %v3217
      %v3222 = vsel %vm3220, %v3217, %v3219
      %v3223 = vsel %vm233, %v3210, 0
      %v3225 = vsel %vm237, %v3221, 0
      %v3227 = vsel %vm237, %v3222, 0
      %v3229 = vsel %vm237, %v3219, 0
      %3231 = vmatprep.subr.mxu0 %v3227
      %3232 = vmatpush1.msra.mxu0 %v3225
      %3233 = vmatprep.subr.mxu0 0.0
      %3234 = vmatpush1.msra.mxu0 0.0
      %3235 = vmatprep.subr.mxu0 0.0
      %3236 = vmatpush1.msra.mxu0 0.0
      %3237 = vmatprep.subr.mxu0 0.0
      %3238 = vmatpush1.msra.mxu0 0.0
      %3239 = vmatprep.subr.mxu0 0.0
      %3240 = vmatpush1.msra.mxu0 0.0
      %3241 = vmatprep.subr.mxu0 0.0
      %3242 = vmatpush1.msra.mxu0 0.0
      %3243 = vmatprep.subr.mxu0 0.0
      %3244 = vmatpush1.msra.mxu0 0.0
      %3245 = vmatprep.subr.mxu0 0.0
      %3246 = vmatpush1.msra.mxu0 0.0
      %3247 = vmatprep.subr.mxu0 0.0
      %3248 = vmatpush1.msra.mxu0 0.0
      %3249 = vmatprep.subr.mxu0 0.0
      %3250 = vmatpush1.msra.mxu0 0.0
      %3251 = vmatprep.subr.mxu0 0.0
      %3252 = vmatpush1.msra.mxu0 0.0
      %3253 = vmatprep.subr.mxu0 0.0
      %3254 = vmatpush1.msra.mxu0 0.0
      %3255 = vmatprep.subr.mxu0 0.0
      %3256 = vmatpush1.msra.mxu0 0.0
      %3257 = vmatprep.subr.mxu0 0.0
      %3258 = vmatpush1.msra.mxu0 0.0
      %3259 = vmatprep.subr.mxu0 0.0
      %3260 = vmatpush1.msra.mxu0 0.0
      %3261 = vmatprep.subr.mxu0 0.0
      %3262 = vmatpush1.msra.mxu0 0.0
      %3263 = vmatprep.subr.mxu0 0.0
      %3264 = vmatpush1.msra.mxu0 0.0
      %3265 = vmatprep.subr.mxu0 0.0
      %3266 = vmatpush1.msra.mxu0 0.0
      %3267 = vmatprep.subr.mxu0 0.0
      %3268 = vmatpush1.msra.mxu0 0.0
      %3269 = vmatprep.subr.mxu0 0.0
      %3270 = vmatpush1.msra.mxu0 0.0
      %3271 = vmatprep.subr.mxu0 0.0
      %3272 = vmatpush1.msra.mxu0 0.0
      %3273 = vmatprep.subr.mxu0 0.0
      %3274 = vmatpush1.msra.mxu0 0.0
      %3275 = vmatprep.subr.mxu0 0.0
      %3276 = vmatpush1.msra.mxu0 0.0
      %3277 = vmatprep.subr.mxu0 0.0
      %3278 = vmatpush1.msra.mxu0 0.0
      %3279 = vmatprep.subr.mxu0 0.0
      %3280 = vmatpush1.msra.mxu0 0.0
      %3281 = vmatprep.subr.mxu0 0.0
      %3282 = vmatpush1.msra.mxu0 0.0
      %3283 = vmatprep.subr.mxu0 0.0
      %3284 = vmatpush1.msra.mxu0 0.0
      %3285 = vmatprep.subr.mxu0 0.0
      %3286 = vmatpush1.msra.mxu0 0.0
      %3287 = vmatprep.subr.mxu0 0.0
      %3288 = vmatpush1.msra.mxu0 0.0
      %3289 = vmatprep.subr.mxu0 0.0
      %3290 = vmatpush1.msra.mxu0 0.0
      %3291 = vmatprep.subr.mxu0 0.0
      %3292 = vmatpush1.msra.mxu0 0.0
      %3293 = vmatprep.subr.mxu0 0.0
      %3294 = vmatpush1.msra.mxu0 0.0
      %3295 = vmatprep.mubr.f32.mxu0 0.0
      %3296 = vmatmul.mubr.f32.gmra.mrb[0].mxu0 %v3223
      %v3297 = vpop.f32.mrb[0].mxu0
      %v3298 = vadd.f32 0.0, %v3297
      %v3299 = vpop.f32.mrb[0].mxu0
      %v3300 = vadd.f32 0.0, %v3299
      %3301 = vdwg.mxu0
      %3302 = vmatprep.subr.mxu0 0.0
      %3303 = vmatpush1.msra.mxu0 %v3229
      %3304 = vmatprep.subr.mxu0 0.0
      %3305 = vmatpush1.msra.mxu0 0.0
      %3306 = vmatprep.subr.mxu0 0.0
      %3307 = vmatpush1.msra.mxu0 0.0
      %3308 = vmatprep.subr.mxu0 0.0
      %3309 = vmatpush1.msra.mxu0 0.0
      %3310 = vmatprep.subr.mxu0 0.0
      %3311 = vmatpush1.msra.mxu0 0.0
      %3312 = vmatprep.subr.mxu0 0.0
      %3313 = vmatpush1.msra.mxu0 0.0
      %3314 = vmatprep.subr.mxu0 0.0
      %3315 = vmatpush1.msra.mxu0 0.0
      %3316 = vmatprep.subr.mxu0 0.0
      %3317 = vmatpush1.msra.mxu0 0.0
      %3318 = vmatprep.subr.mxu0 0.0
      %3319 = vmatpush1.msra.mxu0 0.0
      %3320 = vmatprep.subr.mxu0 0.0
      %3321 = vmatpush1.msra.mxu0 0.0
      %3322 = vmatprep.subr.mxu0 0.0
      %3323 = vmatpush1.msra.mxu0 0.0
      %3324 = vmatprep.subr.mxu0 0.0
      %3325 = vmatpush1.msra.mxu0 0.0
      %3326 = vmatprep.subr.mxu0 0.0
      %3327 = vmatpush1.msra.mxu0 0.0
      %3328 = vmatprep.subr.mxu0 0.0
      %3329 = vmatpush1.msra.mxu0 0.0
      %3330 = vmatprep.subr.mxu0 0.0
      %3331 = vmatpush1.msra.mxu0 0.0
      %3332 = vmatprep.subr.mxu0 0.0
      %3333 = vmatpush1.msra.mxu0 0.0
      %3334 = vmatprep.subr.mxu0 0.0
      %3335 = vmatpush1.msra.mxu0 0.0
      %3336 = vmatprep.subr.mxu0 0.0
      %3337 = vmatpush1.msra.mxu0 0.0
      %3338 = vmatprep.subr.mxu0 0.0
      %3339 = vmatpush1.msra.mxu0 0.0
      %3340 = vmatprep.subr.mxu0 0.0
      %3341 = vmatpush1.msra.mxu0 0.0
      %3342 = vmatprep.subr.mxu0 0.0
      %3343 = vmatpush1.msra.mxu0 0.0
      %3344 = vmatprep.subr.mxu0 0.0
      %3345 = vmatpush1.msra.mxu0 0.0
      %3346 = vmatprep.subr.mxu0 0.0
      %3347 = vmatpush1.msra.mxu0 0.0
      %3348 = vmatprep.subr.mxu0 0.0
      %3349 = vmatpush1.msra.mxu0 0.0
      %3350 = vmatprep.subr.mxu0 0.0
      %3351 = vmatpush1.msra.mxu0 0.0
      %3352 = vmatprep.subr.mxu0 0.0
      %3353 = vmatpush1.msra.mxu0 0.0
      %3354 = vmatprep.subr.mxu0 0.0
      %3355 = vmatpush1.msra.mxu0 0.0
      %3356 = vmatprep.subr.mxu0 0.0
      %3357 = vmatpush1.msra.mxu0 0.0
      %3358 = vmatprep.subr.mxu0 0.0
      %3359 = vmatpush1.msra.mxu0 0.0
      %3360 = vmatprep.subr.mxu0 0.0
      %3361 = vmatpush1.msra.mxu0 0.0
      %3362 = vmatprep.subr.mxu0 0.0
      %3363 = vmatpush1.msra.mxu0 0.0
      %3364 = vmatprep.subr.mxu0 0.0
      %3365 = vmatpush1.msra.mxu0 0.0
      %3366 = vmatprep.mubr.f32.mxu0 0.0
      %3367 = vmatmul.mubr.f32.gmra.mrb[0].mxu0 %v3223
      %v3368 = vpop.f32.mrb[0].mxu0
      %v3369 = vadd.f32 0.0, %v3368
      %v3370 = vpop.f32.mrb[0].mxu0
      %3371 = vdwg.mxu0
      %v3372 = vld [vmem:[#allocation2] sm:$0xff]
      %v3373 = vld [vmem:[#allocation2 + $0x8] sm:$0xff]
      %v3374 = vld [vmem:[#allocation2 + $0x10] sm:$0xff]
      %v3375 = vadd.f32 %v3372, %v3298
      %v3376 = vadd.f32 %v3373, %v3300
      %v3377 = vadd.f32 %v3374, %v3369
      %3378 = vst [vmem:[#allocation2] sm:$0xff] %v3375
      %3379 = vst [vmem:[#allocation2 + $0x8] sm:$0xff] %v3376
      %3380 = vst.msk [vmem:[#allocation2 + $0x10] sm:$0xff] %vm387, %v3377
      %v3381 = vld [vmem:[%s214] sm:$0xff]
      %v3382 = vld [vmem:[%s214 + $0x8] sm:$0xf]
      %v3383 = vld [vmem:[%s0] sm:$0xff]
      %3385 = vrot.lane.b32.xlu0 %v3383, 56
      %v3386 = vpop.permute.xlu0 %3385
      %v3389 = vcombine.high %v3381, %v3381
      %3390 = vrot.lane.b32.xlu0 %v3381, 65
      %v3391 = vpop.permute.xlu0 %3390
      %3392 = vrot.lane.b32.xlu0 %v3389, 65
      %v3393 = vpop.permute.xlu0 %3392
      %3394 = vrot.lane.b32.xlu0 %v3382, 65
      %v3395 = vpop.permute.xlu0 %3394
      %vm3396 = vcmask 531456
      %v3397 = vsel %vm3396, %v3391, %v3393
      %v3398 = vsel %vm3396, %v3393, %v3395
      %v3399 = vsel %vm233, %v3386, 0
      %v3401 = vsel %vm237, %v3397, 0
      %v3403 = vsel %vm237, %v3398, 0
      %v3405 = vsel %vm237, %v3395, 0
      %3407 = vmatprep.subr.mxu0 %v3403
      %3408 = vmatpush1.msra.mxu0 %v3401
      %3409 = vmatprep.subr.mxu0 0.0
      %3410 = vmatpush1.msra.mxu0 0.0
      %3411 = vmatprep.subr.mxu0 0.0
      %3412 = vmatpush1.msra.mxu0 0.0
      %3413 = vmatprep.subr.mxu0 0.0
      %3414 = vmatpush1.msra.mxu0 0.0
      %3415 = vmatprep.subr.mxu0 0.0
      %3416 = vmatpush1.msra.mxu0 0.0
      %3417 = vmatprep.subr.mxu0 0.0
      %3418 = vmatpush1.msra.mxu0 0.0
      %3419 = vmatprep.subr.mxu0 0.0
      %3420 = vmatpush1.msra.mxu0 0.0
      %3421 = vmatprep.subr.mxu0 0.0
      %3422 = vmatpush1.msra.mxu0 0.0
      %3423 = vmatprep.subr.mxu0 0.0
      %3424 = vmatpush1.msra.mxu0 0.0
      %3425 = vmatprep.subr.mxu0 0.0
      %3426 = vmatpush1.msra.mxu0 0.0
      %3427 = vmatprep.subr.mxu0 0.0
      %3428 = vmatpush1.msra.mxu0 0.0
      %3429 = vmatprep.subr.mxu0 0.0
      %3430 = vmatpush1.msra.mxu0 0.0
      %3431 = vmatprep.subr.mxu0 0.0
      %3432 = vmatpush1.msra.mxu0 0.0
      %3433 = vmatprep.subr.mxu0 0.0
      %3434 = vmatpush1.msra.mxu0 0.0
      %3435 = vmatprep.subr.mxu0 0.0
      %3436 = vmatpush1.msra.mxu0 0.0
      %3437 = vmatprep.subr.mxu0 0.0
      %3438 = vmatpush1.msra.mxu0 0.0
      %3439 = vmatprep.subr.mxu0 0.0
      %3440 = vmatpush1.msra.mxu0 0.0
      %3441 = vmatprep.subr.mxu0 0.0
      %3442 = vmatpush1.msra.mxu0 0.0
      %3443 = vmatprep.subr.mxu0 0.0
      %3444 = vmatpush1.msra.mxu0 0.0
      %3445 = vmatprep.subr.mxu0 0.0
      %3446 = vmatpush1.msra.mxu0 0.0
      %3447 = vmatprep.subr.mxu0 0.0
      %3448 = vmatpush1.msra.mxu0 0.0
      %3449 = vmatprep.subr.mxu0 0.0
      %3450 = vmatpush1.msra.mxu0 0.0
      %3451 = vmatprep.subr.mxu0 0.0
      %3452 = vmatpush1.msra.mxu0 0.0
      %3453 = vmatprep.subr.mxu0 0.0
      %3454 = vmatpush1.msra.mxu0 0.0
      %3455 = vmatprep.subr.mxu0 0.0
      %3456 = vmatpush1.msra.mxu0 0.0
      %3457 = vmatprep.subr.mxu0 0.0
      %3458 = vmatpush1.msra.mxu0 0.0
      %3459 = vmatprep.subr.mxu0 0.0
      %3460 = vmatpush1.msra.mxu0 0.0
      %3461 = vmatprep.subr.mxu0 0.0
      %3462 = vmatpush1.msra.mxu0 0.0
      %3463 = vmatprep.subr.mxu0 0.0
      %3464 = vmatpush1.msra.mxu0 0.0
      %3465 = vmatprep.subr.mxu0 0.0
      %3466 = vmatpush1.msra.mxu0 0.0
      %3467 = vmatprep.subr.mxu0 0.0
      %3468 = vmatpush1.msra.mxu0 0.0
      %3469 = vmatprep.subr.mxu0 0.0
      %3470 = vmatpush1.msra.mxu0 0.0
      %3471 = vmatprep.mubr.f32.mxu0 0.0
      %3472 = vmatmul.mubr.f32.gmra.mrb[0].mxu0 %v3399
      %v3473 = vpop.f32.mrb[0].mxu0
      %v3474 = vadd.f32 0.0, %v3473
      %v3475 = vpop.f32.mrb[0].mxu0
      %v3476 = vadd.f32 0.0, %v3475
      %3477 = vdwg.mxu0
      %3478 = vmatprep.subr.mxu0 0.0
      %3479 = vmatpush1.msra.mxu0 %v3405
      %3480 = vmatprep.subr.mxu0 0.0
      %3481 = vmatpush1.msra.mxu0 0.0
      %3482 = vmatprep.subr.mxu0 0.0
      %3483 = vmatpush1.msra.mxu0 0.0
      %3484 = vmatprep.subr.mxu0 0.0
      %3485 = vmatpush1.msra.mxu0 0.0
      %3486 = vmatprep.subr.mxu0 0.0
      %3487 = vmatpush1.msra.mxu0 0.0
      %3488 = vmatprep.subr.mxu0 0.0
      %3489 = vmatpush1.msra.mxu0 0.0
      %3490 = vmatprep.subr.mxu0 0.0
      %3491 = vmatpush1.msra.mxu0 0.0
      %3492 = vmatprep.subr.mxu0 0.0
      %3493 = vmatpush1.msra.mxu0 0.0
      %3494 = vmatprep.subr.mxu0 0.0
      %3495 = vmatpush1.msra.mxu0 0.0
      %3496 = vmatprep.subr.mxu0 0.0
      %3497 = vmatpush1.msra.mxu0 0.0
      %3498 = vmatprep.subr.mxu0 0.0
      %3499 = vmatpush1.msra.mxu0 0.0
      %3500 = vmatprep.subr.mxu0 0.0
      %3501 = vmatpush1.msra.mxu0 0.0
      %3502 = vmatprep.subr.mxu0 0.0
      %3503 = vmatpush1.msra.mxu0 0.0
      %3504 = vmatprep.subr.mxu0 0.0
      %3505 = vmatpush1.msra.mxu0 0.0
      %3506 = vmatprep.subr.mxu0 0.0
      %3507 = vmatpush1.msra.mxu0 0.0
      %3508 = vmatprep.subr.mxu0 0.0
      %3509 = vmatpush1.msra.mxu0 0.0
      %3510 = vmatprep.subr.mxu0 0.0
      %3511 = vmatpush1.msra.mxu0 0.0
      %3512 = vmatprep.subr.mxu0 0.0
      %3513 = vmatpush1.msra.mxu0 0.0
      %3514 = vmatprep.subr.mxu0 0.0
      %3515 = vmatpush1.msra.mxu0 0.0
      %3516 = vmatprep.subr.mxu0 0.0
      %3517 = vmatpush1.msra.mxu0 0.0
      %3518 = vmatprep.subr.mxu0 0.0
      %3519 = vmatpush1.msra.mxu0 0.0
      %3520 = vmatprep.subr.mxu0 0.0
      %3521 = vmatpush1.msra.mxu0 0.0
      %3522 = vmatprep.subr.mxu0 0.0
      %3523 = vmatpush1.msra.mxu0 0.0
      %3524 = vmatprep.subr.mxu0 0.0
      %3525 = vmatpush1.msra.mxu0 0.0
      %3526 = vmatprep.subr.mxu0 0.0
      %3527 = vmatpush1.msra.mxu0 0.0
      %3528 = vmatprep.subr.mxu0 0.0
      %3529 = vmatpush1.msra.mxu0 0.0
      %3530 = vmatprep.subr.mxu0 0.0
      %3531 = vmatpush1.msra.mxu0 0.0
      %3532 = vmatprep.subr.mxu0 0.0
      %3533 = vmatpush1.msra.mxu0 0.0
      %3534 = vmatprep.subr.mxu0 0.0
      %3535 = vmatpush1.msra.mxu0 0.0
      %3536 = vmatprep.subr.mxu0 0.0
      %3537 = vmatpush1.msra.mxu0 0.0
      %3538 = vmatprep.subr.mxu0 0.0
      %3539 = vmatpush1.msra.mxu0 0.0
      %3540 = vmatprep.subr.mxu0 0.0
      %3541 = vmatpush1.msra.mxu0 0.0
      %3542 = vmatprep.mubr.f32.mxu0 0.0
      %3543 = vmatmul.mubr.f32.gmra.mrb[0].mxu0 %v3399
      %v3544 = vpop.f32.mrb[0].mxu0
      %v3545 = vadd.f32 0.0, %v3544
      %v3546 = vpop.f32.mrb[0].mxu0
      %3547 = vdwg.mxu0
      %v3548 = vld [vmem:[#allocation2] sm:$0xff]
      %v3549 = vld [vmem:[#allocation2 + $0x8] sm:$0xff]
      %v3550 = vld [vmem:[#allocation2 + $0x10] sm:$0xff]
      %v3551 = vadd.f32 %v3548, %v3474
      %v3552 = vadd.f32 %v3549, %v3476
      %v3553 = vadd.f32 %v3550, %v3545
      %3554 = vst [vmem:[#allocation2] sm:$0xff] %v3551
      %3555 = vst [vmem:[#allocation2 + $0x8] sm:$0xff] %v3552
      %3556 = vst.msk [vmem:[#allocation2 + $0x10] sm:$0xff] %vm387, %v3553
      %v3557 = vld [vmem:[%s214] sm:$0xff]
      %v3558 = vld [vmem:[%s214 + $0x8] sm:$0xf]
      %v3559 = vld [vmem:[%s0] sm:$0xff]
      %3561 = vrot.lane.b32.xlu0 %v3559, 52
      %v3562 = vpop.permute.xlu0 %3561
      %v3565 = vcombine.high %v3557, %v3557
      %3566 = vrot.lane.b32.xlu0 %v3557, 64
      %v3567 = vpop.permute.xlu0 %3566
      %3568 = vrot.lane.b32.xlu0 %v3565, 64
      %v3569 = vpop.permute.xlu0 %3568
      %3570 = vrot.lane.b32.xlu0 %v3558, 64
      %v3571 = vpop.permute.xlu0 %3570
      %v3572 = vsel %vm387, %v3567, %v3569
      %v3573 = vsel %vm387, %v3569, %v3571
      %v3574 = vsel %vm233, %v3562, 0
      %v3576 = vsel %vm237, %v3572, 0
      %v3578 = vsel %vm237, %v3573, 0
      %v3580 = vsel %vm237, %v3571, 0
      %3582 = vmatprep.subr.mxu0 %v3578
      %3583 = vmatpush1.msra.mxu0 %v3576
      %3584 = vmatprep.subr.mxu0 0.0
      %3585 = vmatpush1.msra.mxu0 0.0
      %3586 = vmatprep.subr.mxu0 0.0
      %3587 = vmatpush1.msra.mxu0 0.0
      %3588 = vmatprep.subr.mxu0 0.0
      %3589 = vmatpush1.msra.mxu0 0.0
      %3590 = vmatprep.subr.mxu0 0.0
      %3591 = vmatpush1.msra.mxu0 0.0
      %3592 = vmatprep.subr.mxu0 0.0
      %3593 = vmatpush1.msra.mxu0 0.0
      %3594 = vmatprep.subr.mxu0 0.0
      %3595 = vmatpush1.msra.mxu0 0.0
      %3596 = vmatprep.subr.mxu0 0.0
      %3597 = vmatpush1.msra.mxu0 0.0
      %3598 = vmatprep.subr.mxu0 0.0
      %3599 = vmatpush1.msra.mxu0 0.0
      %3600 = vmatprep.subr.mxu0 0.0
      %3601 = vmatpush1.msra.mxu0 0.0
      %3602 = vmatprep.subr.mxu0 0.0
      %3603 = vmatpush1.msra.mxu0 0.0
      %3604 = vmatprep.subr.mxu0 0.0
      %3605 = vmatpush1.msra.mxu0 0.0
      %3606 = vmatprep.subr.mxu0 0.0
      %3607 = vmatpush1.msra.mxu0 0.0
      %3608 = vmatprep.subr.mxu0 0.0
      %3609 = vmatpush1.msra.mxu0 0.0
      %3610 = vmatprep.subr.mxu0 0.0
      %3611 = vmatpush1.msra.mxu0 0.0
      %3612 = vmatprep.subr.mxu0 0.0
      %3613 = vmatpush1.msra.mxu0 0.0
      %3614 = vmatprep.subr.mxu0 0.0
      %3615 = vmatpush1.msra.mxu0 0.0
      %3616 = vmatprep.subr.mxu0 0.0
      %3617 = vmatpush1.msra.mxu0 0.0
      %3618 = vmatprep.subr.mxu0 0.0
      %3619 = vmatpush1.msra.mxu0 0.0
      %3620 = vmatprep.subr.mxu0 0.0
      %3621 = vmatpush1.msra.mxu0 0.0
      %3622 = vmatprep.subr.mxu0 0.0
      %3623 = vmatpush1.msra.mxu0 0.0
      %3624 = vmatprep.subr.mxu0 0.0
      %3625 = vmatpush1.msra.mxu0 0.0
      %3626 = vmatprep.subr.mxu0 0.0
      %3627 = vmatpush1.msra.mxu0 0.0
      %3628 = vmatprep.subr.mxu0 0.0
      %3629 = vmatpush1.msra.mxu0 0.0
      %3630 = vmatprep.subr.mxu0 0.0
      %3631 = vmatpush1.msra.mxu0 0.0
      %3632 = vmatprep.subr.mxu0 0.0
      %3633 = vmatpush1.msra.mxu0 0.0
      %3634 = vmatprep.subr.mxu0 0.0
      %3635 = vmatpush1.msra.mxu0 0.0
      %3636 = vmatprep.subr.mxu0 0.0
      %3637 = vmatpush1.msra.mxu0 0.0
      %3638 = vmatprep.subr.mxu0 0.0
      %3639 = vmatpush1.msra.mxu0 0.0
      %3640 = vmatprep.subr.mxu0 0.0
      %3641 = vmatpush1.msra.mxu0 0.0
      %3642 = vmatprep.subr.mxu0 0.0
      %3643 = vmatpush1.msra.mxu0 0.0
      %3644 = vmatprep.subr.mxu0 0.0
      %3645 = vmatpush1.msra.mxu0 0.0
      %3646 = vmatprep.mubr.f32.mxu0 0.0
      %3647 = vmatmul.mubr.f32.gmra.mrb[0].mxu0 %v3574
      %v3648 = vpop.f32.mrb[0].mxu0
      %v3649 = vadd.f32 0.0, %v3648
      %v3650 = vpop.f32.mrb[0].mxu0
      %v3651 = vadd.f32 0.0, %v3650
      %3652 = vdwg.mxu0
      %3653 = vmatprep.subr.mxu0 0.0
      %3654 = vmatpush1.msra.mxu0 %v3580
      %3655 = vmatprep.subr.mxu0 0.0
      %3656 = vmatpush1.msra.mxu0 0.0
      %3657 = vmatprep.subr.mxu0 0.0
      %3658 = vmatpush1.msra.mxu0 0.0
      %3659 = vmatprep.subr.mxu0 0.0
      %3660 = vmatpush1.msra.mxu0 0.0
      %3661 = vmatprep.subr.mxu0 0.0
      %3662 = vmatpush1.msra.mxu0 0.0
      %3663 = vmatprep.subr.mxu0 0.0
      %3664 = vmatpush1.msra.mxu0 0.0
      %3665 = vmatprep.subr.mxu0 0.0
      %3666 = vmatpush1.msra.mxu0 0.0
      %3667 = vmatprep.subr.mxu0 0.0
      %3668 = vmatpush1.msra.mxu0 0.0
      %3669 = vmatprep.subr.mxu0 0.0
      %3670 = vmatpush1.msra.mxu0 0.0
      %3671 = vmatprep.subr.mxu0 0.0
      %3672 = vmatpush1.msra.mxu0 0.0
      %3673 = vmatprep.subr.mxu0 0.0
      %3674 = vmatpush1.msra.mxu0 0.0
      %3675 = vmatprep.subr.mxu0 0.0
      %3676 = vmatpush1.msra.mxu0 0.0
      %3677 = vmatprep.subr.mxu0 0.0
      %3678 = vmatpush1.msra.mxu0 0.0
      %3679 = vmatprep.subr.mxu0 0.0
      %3680 = vmatpush1.msra.mxu0 0.0
      %3681 = vmatprep.subr.mxu0 0.0
      %3682 = vmatpush1.msra.mxu0 0.0
      %3683 = vmatprep.subr.mxu0 0.0
      %3684 = vmatpush1.msra.mxu0 0.0
      %3685 = vmatprep.subr.mxu0 0.0
      %3686 = vmatpush1.msra.mxu0 0.0
      %3687 = vmatprep.subr.mxu0 0.0
      %3688 = vmatpush1.msra.mxu0 0.0
      %3689 = vmatprep.subr.mxu0 0.0
      %3690 = vmatpush1.msra.mxu0 0.0
      %3691 = vmatprep.subr.mxu0 0.0
      %3692 = vmatpush1.msra.mxu0 0.0
      %3693 = vmatprep.subr.mxu0 0.0
      %3694 = vmatpush1.msra.mxu0 0.0
      %3695 = vmatprep.subr.mxu0 0.0
      %3696 = vmatpush1.msra.mxu0 0.0
      %3697 = vmatprep.subr.mxu0 0.0
      %3698 = vmatpush1.msra.mxu0 0.0
      %3699 = vmatprep.subr.mxu0 0.0
      %3700 = vmatpush1.msra.mxu0 0.0
      %3701 = vmatprep.subr.mxu0 0.0
      %3702 = vmatpush1.msra.mxu0 0.0
      %3703 = vmatprep.subr.mxu0 0.0
      %3704 = vmatpush1.msra.mxu0 0.0
      %3705 = vmatprep.subr.mxu0 0.0
      %3706 = vmatpush1.msra.mxu0 0.0
      %3707 = vmatprep.subr.mxu0 0.0
      %3708 = vmatpush1.msra.mxu0 0.0
      %3709 = vmatprep.subr.mxu0 0.0
      %3710 = vmatpush1.msra.mxu0 0.0
      %3711 = vmatprep.subr.mxu0 0.0
      %3712 = vmatpush1.msra.mxu0 0.0
      %3713 = vmatprep.subr.mxu0 0.0
      %3714 = vmatpush1.msra.mxu0 0.0
      %3715 = vmatprep.subr.mxu0 0.0
      %3716 = vmatpush1.msra.mxu0 0.0
      %3717 = vmatprep.mubr.f32.mxu0 0.0
      %3718 = vmatmul.mubr.f32.gmra.mrb[0].mxu0 %v3574
      %v3719 = vpop.f32.mrb[0].mxu0
      %v3720 = vadd.f32 0.0, %v3719
      %v3721 = vpop.f32.mrb[0].mxu0
      %3722 = vdwg.mxu0
      %v3723 = vld [vmem:[#allocation2] sm:$0xff]
      %v3724 = vld [vmem:[#allocation2 + $0x8] sm:$0xff]
      %v3725 = vld [vmem:[#allocation2 + $0x10] sm:$0xff]
      %v3726 = vadd.f32 %v3723, %v3649
      %v3727 = vadd.f32 %v3724, %v3651
      %v3728 = vadd.f32 %v3725, %v3720
      %3729 = vst [vmem:[#allocation2] sm:$0xff] %v3726
      %3730 = vst [vmem:[#allocation2 + $0x8] sm:$0xff] %v3727
      %3731 = vst.msk [vmem:[#allocation2 + $0x10] sm:$0xff] %vm387, %v3728
      %v3732 = vld [vmem:[%s214] sm:$0xff]
      %v3733 = vld [vmem:[%s214 + $0x8] sm:$0xff]
      %v3734 = vld [vmem:[%s0] sm:$0xff]
      %3736 = vrot.lane.b32.xlu0 %v3734, 48
      %v3737 = vpop.permute.xlu0 %3736
      %v3740 = vcombine.high %v3732, %v3732
      %v3741 = vcombine.high %v3733, %v3733
      %3742 = vrot.lane.b32.xlu0 %v3732, 48
      %v3743 = vpop.permute.xlu0 %3742
      %3744 = vrot.lane.b32.xlu0 %v3740, 48
      %v3745 = vpop.permute.xlu0 %3744
      %3746 = vrot.lane.b32.xlu0 %v3733, 48
      %v3747 = vpop.permute.xlu0 %3746
      %3748 = vrot.lane.b32.xlu0 %v3741, 48
      %v3749 = vpop.permute.xlu0 %3748
      %vm3750 = vcmask 392192
      %v3751 = vsel %vm3750, %v3743, %v3745
      %v3752 = vsel %vm3750, %v3745, %v3747
      %v3753 = vsel %vm3750, %v3747, %v3749
      %v3754 = vsel %vm233, %v3737, 0
      %v3756 = vsel %vm237, %v3751, 0
      %v3758 = vsel %vm237, %v3752, 0
      %v3760 = vsel %vm237, %v3753, 0
      %3762 = vmatprep.subr.mxu0 %v3758
      %3763 = vmatpush1.msra.mxu0 %v3756
      %3764 = vmatprep.subr.mxu0 0.0
      %3765 = vmatpush1.msra.mxu0 0.0
      %3766 = vmatprep.subr.mxu0 0.0
      %3767 = vmatpush1.msra.mxu0 0.0
      %3768 = vmatprep.subr.mxu0 0.0
      %3769 = vmatpush1.msra.mxu0 0.0
      %3770 = vmatprep.subr.mxu0 0.0
      %3771 = vmatpush1.msra.mxu0 0.0
      %3772 = vmatprep.subr.mxu0 0.0
      %3773 = vmatpush1.msra.mxu0 0.0
      %3774 = vmatprep.subr.mxu0 0.0
      %3775 = vmatpush1.msra.mxu0 0.0
      %3776 = vmatprep.subr.mxu0 0.0
      %3777 = vmatpush1.msra.mxu0 0.0
      %3778 = vmatprep.subr.mxu0 0.0
      %3779 = vmatpush1.msra.mxu0 0.0
      %3780 = vmatprep.subr.mxu0 0.0
      %3781 = vmatpush1.msra.mxu0 0.0
      %3782 = vmatprep.subr.mxu0 0.0
      %3783 = vmatpush1.msra.mxu0 0.0
      %3784 = vmatprep.subr.mxu0 0.0
      %3785 = vmatpush1.msra.mxu0 0.0
      %3786 = vmatprep.subr.mxu0 0.0
      %3787 = vmatpush1.msra.mxu0 0.0
      %3788 = vmatprep.subr.mxu0 0.0
      %3789 = vmatpush1.msra.mxu0 0.0
      %3790 = vmatprep.subr.mxu0 0.0
      %3791 = vmatpush1.msra.mxu0 0.0
      %3792 = vmatprep.subr.mxu0 0.0
      %3793 = vmatpush1.msra.mxu0 0.0
      %3794 = vmatprep.subr.mxu0 0.0
      %3795 = vmatpush1.msra.mxu0 0.0
      %3796 = vmatprep.subr.mxu0 0.0
      %3797 = vmatpush1.msra.mxu0 0.0
      %3798 = vmatprep.subr.mxu0 0.0
      %3799 = vmatpush1.msra.mxu0 0.0
      %3800 = vmatprep.subr.mxu0 0.0
      %3801 = vmatpush1.msra.mxu0 0.0
      %3802 = vmatprep.subr.mxu0 0.0
      %3803 = vmatpush1.msra.mxu0 0.0
      %3804 = vmatprep.subr.mxu0 0.0
      %3805 = vmatpush1.msra.mxu0 0.0
      %3806 = vmatprep.subr.mxu0 0.0
      %3807 = vmatpush1.msra.mxu0 0.0
      %3808 = vmatprep.subr.mxu0 0.0
      %3809 = vmatpush1.msra.mxu0 0.0
      %3810 = vmatprep.subr.mxu0 0.0
      %3811 = vmatpush1.msra.mxu0 0.0
      %3812 = vmatprep.subr.mxu0 0.0
      %3813 = vmatpush1.msra.mxu0 0.0
      %3814 = vmatprep.subr.mxu0 0.0
      %3815 = vmatpush1.msra.mxu0 0.0
      %3816 = vmatprep.subr.mxu0 0.0
      %3817 = vmatpush1.msra.mxu0 0.0
      %3818 = vmatprep.subr.mxu0 0.0
      %3819 = vmatpush1.msra.mxu0 0.0
      %3820 = vmatprep.subr.mxu0 0.0
      %3821 = vmatpush1.msra.mxu0 0.0
      %3822 = vmatprep.subr.mxu0 0.0
      %3823 = vmatpush1.msra.mxu0 0.0
      %3824 = vmatprep.subr.mxu0 0.0
      %3825 = vmatpush1.msra.mxu0 0.0
      %3826 = vmatprep.mubr.f32.mxu0 0.0
      %3827 = vmatmul.mubr.f32.gmra.mrb[0].mxu0 %v3754
      %v3828 = vpop.f32.mrb[0].mxu0
      %v3829 = vadd.f32 0.0, %v3828
      %v3830 = vpop.f32.mrb[0].mxu0
      %v3831 = vadd.f32 0.0, %v3830
      %3832 = vdwg.mxu0
      %3833 = vmatprep.subr.mxu0 0.0
      %3834 = vmatpush1.msra.mxu0 %v3760
      %3835 = vmatprep.subr.mxu0 0.0
      %3836 = vmatpush1.msra.mxu0 0.0
      %3837 = vmatprep.subr.mxu0 0.0
      %3838 = vmatpush1.msra.mxu0 0.0
      %3839 = vmatprep.subr.mxu0 0.0
      %3840 = vmatpush1.msra.mxu0 0.0
      %3841 = vmatprep.subr.mxu0 0.0
      %3842 = vmatpush1.msra.mxu0 0.0
      %3843 = vmatprep.subr.mxu0 0.0
      %3844 = vmatpush1.msra.mxu0 0.0
      %3845 = vmatprep.subr.mxu0 0.0
      %3846 = vmatpush1.msra.mxu0 0.0
      %3847 = vmatprep.subr.mxu0 0.0
      %3848 = vmatpush1.msra.mxu0 0.0
      %3849 = vmatprep.subr.mxu0 0.0
      %3850 = vmatpush1.msra.mxu0 0.0
      %3851 = vmatprep.subr.mxu0 0.0
      %3852 = vmatpush1.msra.mxu0 0.0
      %3853 = vmatprep.subr.mxu0 0.0
      %3854 = vmatpush1.msra.mxu0 0.0
      %3855 = vmatprep.subr.mxu0 0.0
      %3856 = vmatpush1.msra.mxu0 0.0
      %3857 = vmatprep.subr.mxu0 0.0
      %3858 = vmatpush1.msra.mxu0 0.0
      %3859 = vmatprep.subr.mxu0 0.0
      %3860 = vmatpush1.msra.mxu0 0.0
      %3861 = vmatprep.subr.mxu0 0.0
      %3862 = vmatpush1.msra.mxu0 0.0
      %3863 = vmatprep.subr.mxu0 0.0
      %3864 = vmatpush1.msra.mxu0 0.0
      %3865 = vmatprep.subr.mxu0 0.0
      %3866 = vmatpush1.msra.mxu0 0.0
      %3867 = vmatprep.subr.mxu0 0.0
      %3868 = vmatpush1.msra.mxu0 0.0
      %3869 = vmatprep.subr.mxu0 0.0
      %3870 = vmatpush1.msra.mxu0 0.0
      %3871 = vmatprep.subr.mxu0 0.0
      %3872 = vmatpush1.msra.mxu0 0.0
      %3873 = vmatprep.subr.mxu0 0.0
      %3874 = vmatpush1.msra.mxu0 0.0
      %3875 = vmatprep.subr.mxu0 0.0
      %3876 = vmatpush1.msra.mxu0 0.0
      %3877 = vmatprep.subr.mxu0 0.0
      %3878 = vmatpush1.msra.mxu0 0.0
      %3879 = vmatprep.subr.mxu0 0.0
      %3880 = vmatpush1.msra.mxu0 0.0
      %3881 = vmatprep.subr.mxu0 0.0
      %3882 = vmatpush1.msra.mxu0 0.0
      %3883 = vmatprep.subr.mxu0 0.0
      %3884 = vmatpush1.msra.mxu0 0.0
      %3885 = vmatprep.subr.mxu0 0.0
      %3886 = vmatpush1.msra.mxu0 0.0
      %3887 = vmatprep.subr.mxu0 0.0
      %3888 = vmatpush1.msra.mxu0 0.0
      %3889 = vmatprep.subr.mxu0 0.0
      %3890 = vmatpush1.msra.mxu0 0.0
      %3891 = vmatprep.subr.mxu0 0.0
      %3892 = vmatpush1.msra.mxu0 0.0
      %3893 = vmatprep.subr.mxu0 0.0
      %3894 = vmatpush1.msra.mxu0 0.0
      %3895 = vmatprep.subr.mxu0 0.0
      %3896 = vmatpush1.msra.mxu0 0.0
      %3897 = vmatprep.mubr.f32.mxu0 0.0
      %3898 = vmatmul.mubr.f32.gmra.mrb[0].mxu0 %v3754
      %v3899 = vpop.f32.mrb[0].mxu0
      %v3900 = vadd.f32 0.0, %v3899
      %v3901 = vpop.f32.mrb[0].mxu0
      %3902 = vdwg.mxu0
      %v3903 = vld [vmem:[#allocation2] sm:$0xff]
      %v3904 = vld [vmem:[#allocation2 + $0x8] sm:$0xff]
      %v3905 = vld [vmem:[#allocation2 + $0x10] sm:$0xff]
      %v3906 = vadd.f32 %v3903, %v3829
      %v3907 = vadd.f32 %v3904, %v3831
      %v3908 = vadd.f32 %v3905, %v3900
      %3909 = vst [vmem:[#allocation2] sm:$0xff] %v3906
      %3910 = vst [vmem:[#allocation2 + $0x8] sm:$0xff] %v3907
      %3911 = vst.msk [vmem:[#allocation2 + $0x10] sm:$0xff] %vm387, %v3908
      %v3912 = vld [vmem:[%s214] sm:$0xff]
      %v3913 = vld [vmem:[%s214 + $0x8] sm:$0xff]
      %v3914 = vld [vmem:[%s0] sm:$0xff]
      %3916 = vrot.lane.b32.xlu0 %v3914, 44
      %v3917 = vpop.permute.xlu0 %3916
      %v3920 = vcombine.high %v3912, %v3912
      %v3921 = vcombine.high %v3913, %v3913
      %3922 = vrot.lane.b32.xlu0 %v3912, 47
      %v3923 = vpop.permute.xlu0 %3922
      %3924 = vrot.lane.b32.xlu0 %v3920, 47
      %v3925 = vpop.permute.xlu0 %3924
      %3926 = vrot.lane.b32.xlu0 %v3913, 47
      %v3927 = vpop.permute.xlu0 %3926
      %3928 = vrot.lane.b32.xlu0 %v3921, 47
      %v3929 = vpop.permute.xlu0 %3928
      %vm3930 = vcmask 384000
      %v3931 = vsel %vm3930, %v3923, %v3925
      %v3932 = vsel %vm3930, %v3925, %v3927
      %v3933 = vsel %vm3930, %v3927, %v3929
      %v3934 = vsel %vm233, %v3917, 0
      %v3936 = vsel %vm237, %v3931, 0
      %v3938 = vsel %vm237, %v3932, 0
      %v3940 = vsel %vm237, %v3933, 0
      %3942 = vmatprep.subr.mxu0 %v3938
      %3943 = vmatpush1.msra.mxu0 %v3936
      %3944 = vmatprep.subr.mxu0 0.0
      %3945 = vmatpush1.msra.mxu0 0.0
      %3946 = vmatprep.subr.mxu0 0.0
      %3947 = vmatpush1.msra.mxu0 0.0
      %3948 = vmatprep.subr.mxu0 0.0
      %3949 = vmatpush1.msra.mxu0 0.0
      %3950 = vmatprep.subr.mxu0 0.0
      %3951 = vmatpush1.msra.mxu0 0.0
      %3952 = vmatprep.subr.mxu0 0.0
      %3953 = vmatpush1.msra.mxu0 0.0
      %3954 = vmatprep.subr.mxu0 0.0
      %3955 = vmatpush1.msra.mxu0 0.0
      %3956 = vmatprep.subr.mxu0 0.0
      %3957 = vmatpush1.msra.mxu0 0.0
      %3958 = vmatprep.subr.mxu0 0.0
      %3959 = vmatpush1.msra.mxu0 0.0
      %3960 = vmatprep.subr.mxu0 0.0
      %3961 = vmatpush1.msra.mxu0 0.0
      %3962 = vmatprep.subr.mxu0 0.0
      %3963 = vmatpush1.msra.mxu0 0.0
      %3964 = vmatprep.subr.mxu0 0.0
      %3965 = vmatpush1.msra.mxu0 0.0
      %3966 = vmatprep.subr.mxu0 0.0
      %3967 = vmatpush1.msra.mxu0 0.0
      %3968 = vmatprep.subr.mxu0 0.0
      %3969 = vmatpush1.msra.mxu0 0.0
      %3970 = vmatprep.subr.mxu0 0.0
      %3971 = vmatpush1.msra.mxu0 0.0
      %3972 = vmatprep.subr.mxu0 0.0
      %3973 = vmatpush1.msra.mxu0 0.0
      %3974 = vmatprep.subr.mxu0 0.0
      %3975 = vmatpush1.msra.mxu0 0.0
      %3976 = vmatprep.subr.mxu0 0.0
      %3977 = vmatpush1.msra.mxu0 0.0
      %3978 = vmatprep.subr.mxu0 0.0
      %3979 = vmatpush1.msra.mxu0 0.0
      %3980 = vmatprep.subr.mxu0 0.0
      %3981 = vmatpush1.msra.mxu0 0.0
      %3982 = vmatprep.subr.mxu0 0.0
      %3983 = vmatpush1.msra.mxu0 0.0
      %3984 = vmatprep.subr.mxu0 0.0
      %3985 = vmatpush1.msra.mxu0 0.0
      %3986 = vmatprep.subr.mxu0 0.0
      %3987 = vmatpush1.msra.mxu0 0.0
      %3988 = vmatprep.subr.mxu0 0.0
      %3989 = vmatpush1.msra.mxu0 0.0
      %3990 = vmatprep.subr.mxu0 0.0
      %3991 = vmatpush1.msra.mxu0 0.0
      %3992 = vmatprep.subr.mxu0 0.0
      %3993 = vmatpush1.msra.mxu0 0.0
      %3994 = vmatprep.subr.mxu0 0.0
      %3995 = vmatpush1.msra.mxu0 0.0
      %3996 = vmatprep.subr.mxu0 0.0
      %3997 = vmatpush1.msra.mxu0 0.0
      %3998 = vmatprep.subr.mxu0 0.0
      %3999 = vmatpush1.msra.mxu0 0.0
      %4000 = vmatprep.subr.mxu0 0.0
      %4001 = vmatpush1.msra.mxu0 0.0
      %4002 = vmatprep.subr.mxu0 0.0
      %4003 = vmatpush1.msra.mxu0 0.0
      %4004 = vmatprep.subr.mxu0 0.0
      %4005 = vmatpush1.msra.mxu0 0.0
      %4006 = vmatprep.mubr.f32.mxu0 0.0
      %4007 = vmatmul.mubr.f32.gmra.mrb[0].mxu0 %v3934
      %v4008 = vpop.f32.mrb[0].mxu0
      %v4009 = vadd.f32 0.0, %v4008
      %v4010 = vpop.f32.mrb[0].mxu0
      %v4011 = vadd.f32 0.0, %v4010
      %4012 = vdwg.mxu0
      %4013 = vmatprep.subr.mxu0 0.0
      %4014 = vmatpush1.msra.mxu0 %v3940
      %4015 = vmatprep.subr.mxu0 0.0
      %4016 = vmatpush1.msra.mxu0 0.0
      %4017 = vmatprep.subr.mxu0 0.0
      %4018 = vmatpush1.msra.mxu0 0.0
      %4019 = vmatprep.subr.mxu0 0.0
      %4020 = vmatpush1.msra.mxu0 0.0
      %4021 = vmatprep.subr.mxu0 0.0
      %4022 = vmatpush1.msra.mxu0 0.0
      %4023 = vmatprep.subr.mxu0 0.0
      %4024 = vmatpush1.msra.mxu0 0.0
      %4025 = vmatprep.subr.mxu0 0.0
      %4026 = vmatpush1.msra.mxu0 0.0
      %4027 = vmatprep.subr.mxu0 0.0
      %4028 = vmatpush1.msra.mxu0 0.0
      %4029 = vmatprep.subr.mxu0 0.0
      %4030 = vmatpush1.msra.mxu0 0.0
      %4031 = vmatprep.subr.mxu0 0.0
      %4032 = vmatpush1.msra.mxu0 0.0
      %4033 = vmatprep.subr.mxu0 0.0
      %4034 = vmatpush1.msra.mxu0 0.0
      %4035 = vmatprep.subr.mxu0 0.0
      %4036 = vmatpush1.msra.mxu0 0.0
      %4037 = vmatprep.subr.mxu0 0.0
      %4038 = vmatpush1.msra.mxu0 0.0
      %4039 = vmatprep.subr.mxu0 0.0
      %4040 = vmatpush1.msra.mxu0 0.0
      %4041 = vmatprep.subr.mxu0 0.0
      %4042 = vmatpush1.msra.mxu0 0.0
      %4043 = vmatprep.subr.mxu0 0.0
      %4044 = vmatpush1.msra.mxu0 0.0
      %4045 = vmatprep.subr.mxu0 0.0
      %4046 = vmatpush1.msra.mxu0 0.0
      %4047 = vmatprep.subr.mxu0 0.0
      %4048 = vmatpush1.msra.mxu0 0.0
      %4049 = vmatprep.subr.mxu0 0.0
      %4050 = vmatpush1.msra.mxu0 0.0
      %4051 = vmatprep.subr.mxu0 0.0
      %4052 = vmatpush1.msra.mxu0 0.0
      %4053 = vmatprep.subr.mxu0 0.0
      %4054 = vmatpush1.msra.mxu0 0.0
      %4055 = vmatprep.subr.mxu0 0.0
      %4056 = vmatpush1.msra.mxu0 0.0
      %4057 = vmatprep.subr.mxu0 0.0
      %4058 = vmatpush1.msra.mxu0 0.0
      %4059 = vmatprep.subr.mxu0 0.0
      %4060 = vmatpush1.msra.mxu0 0.0
      %4061 = vmatprep.subr.mxu0 0.0
      %4062 = vmatpush1.msra.mxu0 0.0
      %4063 = vmatprep.subr.mxu0 0.0
      %4064 = vmatpush1.msra.mxu0 0.0
      %4065 = vmatprep.subr.mxu0 0.0
      %4066 = vmatpush1.msra.mxu0 0.0
      %4067 = vmatprep.subr.mxu0 0.0
      %4068 = vmatpush1.msra.mxu0 0.0
      %4069 = vmatprep.subr.mxu0 0.0
      %4070 = vmatpush1.msra.mxu0 0.0
      %4071 = vmatprep.subr.mxu0 0.0
      %4072 = vmatpush1.msra.mxu0 0.0
      %4073 = vmatprep.subr.mxu0 0.0
      %4074 = vmatpush1.msra.mxu0 0.0
      %4075 = vmatprep.subr.mxu0 0.0
      %4076 = vmatpush1.msra.mxu0 0.0
      %4077 = vmatprep.mubr.f32.mxu0 0.0
      %4078 = vmatmul.mubr.f32.gmra.mrb[0].mxu0 %v3934
      %v4079 = vpop.f32.mrb[0].mxu0
      %v4080 = vadd.f32 0.0, %v4079
      %v4081 = vpop.f32.mrb[0].mxu0
      %4082 = vdwg.mxu0
      %v4083 = vld [vmem:[#allocation2] sm:$0xff]
      %v4084 = vld [vmem:[#allocation2 + $0x8] sm:$0xff]
      %v4085 = vld [vmem:[#allocation2 + $0x10] sm:$0xff]
      %v4086 = vadd.f32 %v4083, %v4009
      %v4087 = vadd.f32 %v4084, %v4011
      %v4088 = vadd.f32 %v4085, %v4080
      %4089 = vst [vmem:[#allocation2] sm:$0xff] %v4086
      %4090 = vst [vmem:[#allocation2 + $0x8] sm:$0xff] %v4087
      %4091 = vst.msk [vmem:[#allocation2 + $0x10] sm:$0xff] %vm387, %v4088
      %v4092 = vld [vmem:[%s214] sm:$0xff]
      %v4093 = vld [vmem:[%s214 + $0x8] sm:$0xff]
      %v4094 = vld [vmem:[%s0] sm:$0xff]
      %4096 = vrot.lane.b32.xlu0 %v4094, 40
      %v4097 = vpop.permute.xlu0 %4096
      %v4100 = vcombine.high %v4092, %v4092
      %v4101 = vcombine.high %v4093, %v4093
      %4102 = vrot.lane.b32.xlu0 %v4092, 46
      %v4103 = vpop.permute.xlu0 %4102
      %4104 = vrot.lane.b32.xlu0 %v4100, 46
      %v4105 = vpop.permute.xlu0 %4104
      %4106 = vrot.lane.b32.xlu0 %v4093, 46
      %v4107 = vpop.permute.xlu0 %4106
      %4108 = vrot.lane.b32.xlu0 %v4101, 46
      %v4109 = vpop.permute.xlu0 %4108
      %vm4110 = vcmask 375808
      %v4111 = vsel %vm4110, %v4103, %v4105
      %v4112 = vsel %vm4110, %v4105, %v4107
      %v4113 = vsel %vm4110, %v4107, %v4109
      %v4114 = vsel %vm233, %v4097, 0
      %v4116 = vsel %vm237, %v4111, 0
      %v4118 = vsel %vm237, %v4112, 0
      %v4120 = vsel %vm237, %v4113, 0
      %4122 = vmatprep.subr.mxu0 %v4118
      %4123 = vmatpush1.msra.mxu0 %v4116
      %4124 = vmatprep.subr.mxu0 0.0
      %4125 = vmatpush1.msra.mxu0 0.0
      %4126 = vmatprep.subr.mxu0 0.0
      %4127 = vmatpush1.msra.mxu0 0.0
      %4128 = vmatprep.subr.mxu0 0.0
      %4129 = vmatpush1.msra.mxu0 0.0
      %4130 = vmatprep.subr.mxu0 0.0
      %4131 = vmatpush1.msra.mxu0 0.0
      %4132 = vmatprep.subr.mxu0 0.0
      %4133 = vmatpush1.msra.mxu0 0.0
      %4134 = vmatprep.subr.mxu0 0.0
      %4135 = vmatpush1.msra.mxu0 0.0
      %4136 = vmatprep.subr.mxu0 0.0
      %4137 = vmatpush1.msra.mxu0 0.0
      %4138 = vmatprep.subr.mxu0 0.0
      %4139 = vmatpush1.msra.mxu0 0.0
      %4140 = vmatprep.subr.mxu0 0.0
      %4141 = vmatpush1.msra.mxu0 0.0
      %4142 = vmatprep.subr.mxu0 0.0
      %4143 = vmatpush1.msra.mxu0 0.0
      %4144 = vmatprep.subr.mxu0 0.0
      %4145 = vmatpush1.msra.mxu0 0.0
      %4146 = vmatprep.subr.mxu0 0.0
      %4147 = vmatpush1.msra.mxu0 0.0
      %4148 = vmatprep.subr.mxu0 0.0
      %4149 = vmatpush1.msra.mxu0 0.0
      %4150 = vmatprep.subr.mxu0 0.0
      %4151 = vmatpush1.msra.mxu0 0.0
      %4152 = vmatprep.subr.mxu0 0.0
      %4153 = vmatpush1.msra.mxu0 0.0
      %4154 = vmatprep.subr.mxu0 0.0
      %4155 = vmatpush1.msra.mxu0 0.0
      %4156 = vmatprep.subr.mxu0 0.0
      %4157 = vmatpush1.msra.mxu0 0.0
      %4158 = vmatprep.subr.mxu0 0.0
      %4159 = vmatpush1.msra.mxu0 0.0
      %4160 = vmatprep.subr.mxu0 0.0
      %4161 = vmatpush1.msra.mxu0 0.0
      %4162 = vmatprep.subr.mxu0 0.0
      %4163 = vmatpush1.msra.mxu0 0.0
      %4164 = vmatprep.subr.mxu0 0.0
      %4165 = vmatpush1.msra.mxu0 0.0
      %4166 = vmatprep.subr.mxu0 0.0
      %4167 = vmatpush1.msra.mxu0 0.0
      %4168 = vmatprep.subr.mxu0 0.0
      %4169 = vmatpush1.msra.mxu0 0.0
      %4170 = vmatprep.subr.mxu0 0.0
      %4171 = vmatpush1.msra.mxu0 0.0
      %4172 = vmatprep.subr.mxu0 0.0
      %4173 = vmatpush1.msra.mxu0 0.0
      %4174 = vmatprep.subr.mxu0 0.0
      %4175 = vmatpush1.msra.mxu0 0.0
      %4176 = vmatprep.subr.mxu0 0.0
      %4177 = vmatpush1.msra.mxu0 0.0
      %4178 = vmatprep.subr.mxu0 0.0
      %4179 = vmatpush1.msra.mxu0 0.0
      %4180 = vmatprep.subr.mxu0 0.0
      %4181 = vmatpush1.msra.mxu0 0.0
      %4182 = vmatprep.subr.mxu0 0.0
      %4183 = vmatpush1.msra.mxu0 0.0
      %4184 = vmatprep.subr.mxu0 0.0
      %4185 = vmatpush1.msra.mxu0 0.0
      %4186 = vmatprep.mubr.f32.mxu0 0.0
      %4187 = vmatmul.mubr.f32.gmra.mrb[0].mxu0 %v4114
      %v4188 = vpop.f32.mrb[0].mxu0
      %v4189 = vadd.f32 0.0, %v4188
      %v4190 = vpop.f32.mrb[0].mxu0
      %v4191 = vadd.f32 0.0, %v4190
      %4192 = vdwg.mxu0
      %4193 = vmatprep.subr.mxu0 0.0
      %4194 = vmatpush1.msra.mxu0 %v4120
      %4195 = vmatprep.subr.mxu0 0.0
      %4196 = vmatpush1.msra.mxu0 0.0
      %4197 = vmatprep.subr.mxu0 0.0
      %4198 = vmatpush1.msra.mxu0 0.0
      %4199 = vmatprep.subr.mxu0 0.0
      %4200 = vmatpush1.msra.mxu0 0.0
      %4201 = vmatprep.subr.mxu0 0.0
      %4202 = vmatpush1.msra.mxu0 0.0
      %4203 = vmatprep.subr.mxu0 0.0
      %4204 = vmatpush1.msra.mxu0 0.0
      %4205 = vmatprep.subr.mxu0 0.0
      %4206 = vmatpush1.msra.mxu0 0.0
      %4207 = vmatprep.subr.mxu0 0.0
      %4208 = vmatpush1.msra.mxu0 0.0
      %4209 = vmatprep.subr.mxu0 0.0
      %4210 = vmatpush1.msra.mxu0 0.0
      %4211 = vmatprep.subr.mxu0 0.0
      %4212 = vmatpush1.msra.mxu0 0.0
      %4213 = vmatprep.subr.mxu0 0.0
      %4214 = vmatpush1.msra.mxu0 0.0
      %4215 = vmatprep.subr.mxu0 0.0
      %4216 = vmatpush1.msra.mxu0 0.0
      %4217 = vmatprep.subr.mxu0 0.0
      %4218 = vmatpush1.msra.mxu0 0.0
      %4219 = vmatprep.subr.mxu0 0.0
      %4220 = vmatpush1.msra.mxu0 0.0
      %4221 = vmatprep.subr.mxu0 0.0
      %4222 = vmatpush1.msra.mxu0 0.0
      %4223 = vmatprep.subr.mxu0 0.0
      %4224 = vmatpush1.msra.mxu0 0.0
      %4225 = vmatprep.subr.mxu0 0.0
      %4226 = vmatpush1.msra.mxu0 0.0
      %4227 = vmatprep.subr.mxu0 0.0
      %4228 = vmatpush1.msra.mxu0 0.0
      %4229 = vmatprep.subr.mxu0 0.0
      %4230 = vmatpush1.msra.mxu0 0.0
      %4231 = vmatprep.subr.mxu0 0.0
      %4232 = vmatpush1.msra.mxu0 0.0
      %4233 = vmatprep.subr.mxu0 0.0
      %4234 = vmatpush1.msra.mxu0 0.0
      %4235 = vmatprep.subr.mxu0 0.0
      %4236 = vmatpush1.msra.mxu0 0.0
      %4237 = vmatprep.subr.mxu0 0.0
      %4238 = vmatpush1.msra.mxu0 0.0
      %4239 = vmatprep.subr.mxu0 0.0
      %4240 = vmatpush1.msra.mxu0 0.0
      %4241 = vmatprep.subr.mxu0 0.0
      %4242 = vmatpush1.msra.mxu0 0.0
      %4243 = vmatprep.subr.mxu0 0.0
      %4244 = vmatpush1.msra.mxu0 0.0
      %4245 = vmatprep.subr.mxu0 0.0
      %4246 = vmatpush1.msra.mxu0 0.0
      %4247 = vmatprep.subr.mxu0 0.0
      %4248 = vmatpush1.msra.mxu0 0.0
      %4249 = vmatprep.subr.mxu0 0.0
      %4250 = vmatpush1.msra.mxu0 0.0
      %4251 = vmatprep.subr.mxu0 0.0
      %4252 = vmatpush1.msra.mxu0 0.0
      %4253 = vmatprep.subr.mxu0 0.0
      %4254 = vmatpush1.msra.mxu0 0.0
      %4255 = vmatprep.subr.mxu0 0.0
      %4256 = vmatpush1.msra.mxu0 0.0
      %4257 = vmatprep.mubr.f32.mxu0 0.0
      %4258 = vmatmul.mubr.f32.gmra.mrb[0].mxu0 %v4114
      %v4259 = vpop.f32.mrb[0].mxu0
      %v4260 = vadd.f32 0.0, %v4259
      %v4261 = vpop.f32.mrb[0].mxu0
      %4262 = vdwg.mxu0
      %v4263 = vld [vmem:[#allocation2] sm:$0xff]
      %v4264 = vld [vmem:[#allocation2 + $0x8] sm:$0xff]
      %v4265 = vld [vmem:[#allocation2 + $0x10] sm:$0xff]
      %v4266 = vadd.f32 %v4263, %v4189
      %v4267 = vadd.f32 %v4264, %v4191
      %v4268 = vadd.f32 %v4265, %v4260
      %4269 = vst [vmem:[#allocation2] sm:$0xff] %v4266
      %4270 = vst [vmem:[#allocation2 + $0x8] sm:$0xff] %v4267
      %4271 = vst.msk [vmem:[#allocation2 + $0x10] sm:$0xff] %vm387, %v4268
      %v4272 = vld [vmem:[%s214] sm:$0xff]
      %v4273 = vld [vmem:[%s214 + $0x8] sm:$0xff]
      %v4274 = vld [vmem:[%s0] sm:$0xff]
      %4276 = vrot.lane.b32.xlu0 %v4274, 36
      %v4277 = vpop.permute.xlu0 %4276
      %v4280 = vcombine.high %v4272, %v4272
      %v4281 = vcombine.high %v4273, %v4273
      %4282 = vrot.lane.b32.xlu0 %v4272, 45
      %v4283 = vpop.permute.xlu0 %4282
      %4284 = vrot.lane.b32.xlu0 %v4280, 45
      %v4285 = vpop.permute.xlu0 %4284
      %4286 = vrot.lane.b32.xlu0 %v4273, 45
      %v4287 = vpop.permute.xlu0 %4286
      %4288 = vrot.lane.b32.xlu0 %v4281, 45
      %v4289 = vpop.permute.xlu0 %4288
      %vm4290 = vcmask 367616
      %v4291 = vsel %vm4290, %v4283, %v4285
      %v4292 = vsel %vm4290, %v4285, %v4287
      %v4293 = vsel %vm4290, %v4287, %v4289
      %v4294 = vsel %vm233, %v4277, 0
      %v4296 = vsel %vm237, %v4291, 0
      %v4298 = vsel %vm237, %v4292, 0
      %v4300 = vsel %vm237, %v4293, 0
      %4302 = vmatprep.subr.mxu0 %v4298
      %4303 = vmatpush1.msra.mxu0 %v4296
      %4304 = vmatprep.subr.mxu0 0.0
      %4305 = vmatpush1.msra.mxu0 0.0
      %4306 = vmatprep.subr.mxu0 0.0
      %4307 = vmatpush1.msra.mxu0 0.0
      %4308 = vmatprep.subr.mxu0 0.0
      %4309 = vmatpush1.msra.mxu0 0.0
      %4310 = vmatprep.subr.mxu0 0.0
      %4311 = vmatpush1.msra.mxu0 0.0
      %4312 = vmatprep.subr.mxu0 0.0
      %4313 = vmatpush1.msra.mxu0 0.0
      %4314 = vmatprep.subr.mxu0 0.0
      %4315 = vmatpush1.msra.mxu0 0.0
      %4316 = vmatprep.subr.mxu0 0.0
      %4317 = vmatpush1.msra.mxu0 0.0
      %4318 = vmatprep.subr.mxu0 0.0
      %4319 = vmatpush1.msra.mxu0 0.0
      %4320 = vmatprep.subr.mxu0 0.0
      %4321 = vmatpush1.msra.mxu0 0.0
      %4322 = vmatprep.subr.mxu0 0.0
      %4323 = vmatpush1.msra.mxu0 0.0
      %4324 = vmatprep.subr.mxu0 0.0
      %4325 = vmatpush1.msra.mxu0 0.0
      %4326 = vmatprep.subr.mxu0 0.0
      %4327 = vmatpush1.msra.mxu0 0.0
      %4328 = vmatprep.subr.mxu0 0.0
      %4329 = vmatpush1.msra.mxu0 0.0
      %4330 = vmatprep.subr.mxu0 0.0
      %4331 = vmatpush1.msra.mxu0 0.0
      %4332 = vmatprep.subr.mxu0 0.0
      %4333 = vmatpush1.msra.mxu0 0.0
      %4334 = vmatprep.subr.mxu0 0.0
      %4335 = vmatpush1.msra.mxu0 0.0
      %4336 = vmatprep.subr.mxu0 0.0
      %4337 = vmatpush1.msra.mxu0 0.0
      %4338 = vmatprep.subr.mxu0 0.0
      %4339 = vmatpush1.msra.mxu0 0.0
      %4340 = vmatprep.subr.mxu0 0.0
      %4341 = vmatpush1.msra.mxu0 0.0
      %4342 = vmatprep.subr.mxu0 0.0
      %4343 = vmatpush1.msra.mxu0 0.0
      %4344 = vmatprep.subr.mxu0 0.0
      %4345 = vmatpush1.msra.mxu0 0.0
      %4346 = vmatprep.subr.mxu0 0.0
      %4347 = vmatpush1.msra.mxu0 0.0
      %4348 = vmatprep.subr.mxu0 0.0
      %4349 = vmatpush1.msra.mxu0 0.0
      %4350 = vmatprep.subr.mxu0 0.0
      %4351 = vmatpush1.msra.mxu0 0.0
      %4352 = vmatprep.subr.mxu0 0.0
      %4353 = vmatpush1.msra.mxu0 0.0
      %4354 = vmatprep.subr.mxu0 0.0
      %4355 = vmatpush1.msra.mxu0 0.0
      %4356 = vmatprep.subr.mxu0 0.0
      %4357 = vmatpush1.msra.mxu0 0.0
      %4358 = vmatprep.subr.mxu0 0.0
      %4359 = vmatpush1.msra.mxu0 0.0
      %4360 = vmatprep.subr.mxu0 0.0
      %4361 = vmatpush1.msra.mxu0 0.0
      %4362 = vmatprep.subr.mxu0 0.0
      %4363 = vmatpush1.msra.mxu0 0.0
      %4364 = vmatprep.subr.mxu0 0.0
      %4365 = vmatpush1.msra.mxu0 0.0
      %4366 = vmatprep.mubr.f32.mxu0 0.0
      %4367 = vmatmul.mubr.f32.gmra.mrb[0].mxu0 %v4294
      %v4368 = vpop.f32.mrb[0].mxu0
      %v4369 = vadd.f32 0.0, %v4368
      %v4370 = vpop.f32.mrb[0].mxu0
      %v4371 = vadd.f32 0.0, %v4370
      %4372 = vdwg.mxu0
      %4373 = vmatprep.subr.mxu0 0.0
      %4374 = vmatpush1.msra.mxu0 %v4300
      %4375 = vmatprep.subr.mxu0 0.0
      %4376 = vmatpush1.msra.mxu0 0.0
      %4377 = vmatprep.subr.mxu0 0.0
      %4378 = vmatpush1.msra.mxu0 0.0
      %4379 = vmatprep.subr.mxu0 0.0
      %4380 = vmatpush1.msra.mxu0 0.0
      %4381 = vmatprep.subr.mxu0 0.0
      %4382 = vmatpush1.msra.mxu0 0.0
      %4383 = vmatprep.subr.mxu0 0.0
      %4384 = vmatpush1.msra.mxu0 0.0
      %4385 = vmatprep.subr.mxu0 0.0
      %4386 = vmatpush1.msra.mxu0 0.0
      %4387 = vmatprep.subr.mxu0 0.0
      %4388 = vmatpush1.msra.mxu0 0.0
      %4389 = vmatprep.subr.mxu0 0.0
      %4390 = vmatpush1.msra.mxu0 0.0
      %4391 = vmatprep.subr.mxu0 0.0
      %4392 = vmatpush1.msra.mxu0 0.0
      %4393 = vmatprep.subr.mxu0 0.0
      %4394 = vmatpush1.msra.mxu0 0.0
      %4395 = vmatprep.subr.mxu0 0.0
      %4396 = vmatpush1.msra.mxu0 0.0
      %4397 = vmatprep.subr.mxu0 0.0
      %4398 = vmatpush1.msra.mxu0 0.0
      %4399 = vmatprep.subr.mxu0 0.0
      %4400 = vmatpush1.msra.mxu0 0.0
      %4401 = vmatprep.subr.mxu0 0.0
      %4402 = vmatpush1.msra.mxu0 0.0
      %4403 = vmatprep.subr.mxu0 0.0
      %4404 = vmatpush1.msra.mxu0 0.0
      %4405 = vmatprep.subr.mxu0 0.0
      %4406 = vmatpush1.msra.mxu0 0.0
      %4407 = vmatprep.subr.mxu0 0.0
      %4408 = vmatpush1.msra.mxu0 0.0
      %4409 = vmatprep.subr.mxu0 0.0
      %4410 = vmatpush1.msra.mxu0 0.0
      %4411 = vmatprep.subr.mxu0 0.0
      %4412 = vmatpush1.msra.mxu0 0.0
      %4413 = vmatprep.subr.mxu0 0.0
      %4414 = vmatpush1.msra.mxu0 0.0
      %4415 = vmatprep.subr.mxu0 0.0
      %4416 = vmatpush1.msra.mxu0 0.0
      %4417 = vmatprep.subr.mxu0 0.0
      %4418 = vmatpush1.msra.mxu0 0.0
      %4419 = vmatprep.subr.mxu0 0.0
      %4420 = vmatpush1.msra.mxu0 0.0
      %4421 = vmatprep.subr.mxu0 0.0
      %4422 = vmatpush1.msra.mxu0 0.0
      %4423 = vmatprep.subr.mxu0 0.0
      %4424 = vmatpush1.msra.mxu0 0.0
      %4425 = vmatprep.subr.mxu0 0.0
      %4426 = vmatpush1.msra.mxu0 0.0
      %4427 = vmatprep.subr.mxu0 0.0
      %4428 = vmatpush1.msra.mxu0 0.0
      %4429 = vmatprep.subr.mxu0 0.0
      %4430 = vmatpush1.msra.mxu0 0.0
      %4431 = vmatprep.subr.mxu0 0.0
      %4432 = vmatpush1.msra.mxu0 0.0
      %4433 = vmatprep.subr.mxu0 0.0
      %4434 = vmatpush1.msra.mxu0 0.0
      %4435 = vmatprep.subr.mxu0 0.0
      %4436 = vmatpush1.msra.mxu0 0.0
      %4437 = vmatprep.mubr.f32.mxu0 0.0
      %4438 = vmatmul.mubr.f32.gmra.mrb[0].mxu0 %v4294
      %v4439 = vpop.f32.mrb[0].mxu0
      %v4440 = vadd.f32 0.0, %v4439
      %v4441 = vpop.f32.mrb[0].mxu0
      %4442 = vdwg.mxu0
      %v4443 = vld [vmem:[#allocation2] sm:$0xff]
      %v4444 = vld [vmem:[#allocation2 + $0x8] sm:$0xff]
      %v4445 = vld [vmem:[#allocation2 + $0x10] sm:$0xff]
      %v4446 = vadd.f32 %v4443, %v4369
      %v4447 = vadd.f32 %v4444, %v4371
      %v4448 = vadd.f32 %v4445, %v4440
      %4449 = vst [vmem:[#allocation2] sm:$0xff] %v4446
      %4450 = vst [vmem:[#allocation2 + $0x8] sm:$0xff] %v4447
      %4451 = vst.msk [vmem:[#allocation2 + $0x10] sm:$0xff] %vm387, %v4448
      %v4452 = vld [vmem:[%s214] sm:$0xff]
      %v4453 = vld [vmem:[%s214 + $0x8] sm:$0xff]
      %v4454 = vld [vmem:[%s0] sm:$0xff]
      %4456 = vrot.lane.b32.xlu0 %v4454, 32
      %v4457 = vpop.permute.xlu0 %4456
      %v4460 = vcombine.high %v4452, %v4452
      %v4461 = vcombine.high %v4453, %v4453
      %4462 = vrot.lane.b32.xlu0 %v4452, 44
      %v4463 = vpop.permute.xlu0 %4462
      %4464 = vrot.lane.b32.xlu0 %v4460, 44
      %v4465 = vpop.permute.xlu0 %4464
      %4466 = vrot.lane.b32.xlu0 %v4453, 44
      %v4467 = vpop.permute.xlu0 %4466
      %4468 = vrot.lane.b32.xlu0 %v4461, 44
      %v4469 = vpop.permute.xlu0 %4468
      %vm4470 = vcmask 359424
      %v4471 = vsel %vm4470, %v4463, %v4465
      %v4472 = vsel %vm4470, %v4465, %v4467
      %v4473 = vsel %vm4470, %v4467, %v4469
      %v4474 = vsel %vm233, %v4457, 0
      %v4476 = vsel %vm237, %v4471, 0
      %v4478 = vsel %vm237, %v4472, 0
      %v4480 = vsel %vm237, %v4473, 0
      %4482 = vmatprep.subr.mxu0 %v4478
      %4483 = vmatpush1.msra.mxu0 %v4476
      %4484 = vmatprep.subr.mxu0 0.0
      %4485 = vmatpush1.msra.mxu0 0.0
      %4486 = vmatprep.subr.mxu0 0.0
      %4487 = vmatpush1.msra.mxu0 0.0
      %4488 = vmatprep.subr.mxu0 0.0
      %4489 = vmatpush1.msra.mxu0 0.0
      %4490 = vmatprep.subr.mxu0 0.0
      %4491 = vmatpush1.msra.mxu0 0.0
      %4492 = vmatprep.subr.mxu0 0.0
      %4493 = vmatpush1.msra.mxu0 0.0
      %4494 = vmatprep.subr.mxu0 0.0
      %4495 = vmatpush1.msra.mxu0 0.0
      %4496 = vmatprep.subr.mxu0 0.0
      %4497 = vmatpush1.msra.mxu0 0.0
      %4498 = vmatprep.subr.mxu0 0.0
      %4499 = vmatpush1.msra.mxu0 0.0
      %4500 = vmatprep.subr.mxu0 0.0
      %4501 = vmatpush1.msra.mxu0 0.0
      %4502 = vmatprep.subr.mxu0 0.0
      %4503 = vmatpush1.msra.mxu0 0.0
      %4504 = vmatprep.subr.mxu0 0.0
      %4505 = vmatpush1.msra.mxu0 0.0
      %4506 = vmatprep.subr.mxu0 0.0
      %4507 = vmatpush1.msra.mxu0 0.0
      %4508 = vmatprep.subr.mxu0 0.0
      %4509 = vmatpush1.msra.mxu0 0.0
      %4510 = vmatprep.subr.mxu0 0.0
      %4511 = vmatpush1.msra.mxu0 0.0
      %4512 = vmatprep.subr.mxu0 0.0
      %4513 = vmatpush1.msra.mxu0 0.0
      %4514 = vmatprep.subr.mxu0 0.0
      %4515 = vmatpush1.msra.mxu0 0.0
      %4516 = vmatprep.subr.mxu0 0.0
      %4517 = vmatpush1.msra.mxu0 0.0
      %4518 = vmatprep.subr.mxu0 0.0
      %4519 = vmatpush1.msra.mxu0 0.0
      %4520 = vmatprep.subr.mxu0 0.0
      %4521 = vmatpush1.msra.mxu0 0.0
      %4522 = vmatprep.subr.mxu0 0.0
      %4523 = vmatpush1.msra.mxu0 0.0
      %4524 = vmatprep.subr.mxu0 0.0
      %4525 = vmatpush1.msra.mxu0 0.0
      %4526 = vmatprep.subr.mxu0 0.0
      %4527 = vmatpush1.msra.mxu0 0.0
      %4528 = vmatprep.subr.mxu0 0.0
      %4529 = vmatpush1.msra.mxu0 0.0
      %4530 = vmatprep.subr.mxu0 0.0
      %4531 = vmatpush1.msra.mxu0 0.0
      %4532 = vmatprep.subr.mxu0 0.0
      %4533 = vmatpush1.msra.mxu0 0.0
      %4534 = vmatprep.subr.mxu0 0.0
      %4535 = vmatpush1.msra.mxu0 0.0
      %4536 = vmatprep.subr.mxu0 0.0
      %4537 = vmatpush1.msra.mxu0 0.0
      %4538 = vmatprep.subr.mxu0 0.0
      %4539 = vmatpush1.msra.mxu0 0.0
      %4540 = vmatprep.subr.mxu0 0.0
      %4541 = vmatpush1.msra.mxu0 0.0
      %4542 = vmatprep.subr.mxu0 0.0
      %4543 = vmatpush1.msra.mxu0 0.0
      %4544 = vmatprep.subr.mxu0 0.0
      %4545 = vmatpush1.msra.mxu0 0.0
      %4546 = vmatprep.mubr.f32.mxu0 0.0
      %4547 = vmatmul.mubr.f32.gmra.mrb[0].mxu0 %v4474
      %v4548 = vpop.f32.mrb[0].mxu0
      %v4549 = vadd.f32 0.0, %v4548
      %v4550 = vpop.f32.mrb[0].mxu0
      %v4551 = vadd.f32 0.0, %v4550
      %4552 = vdwg.mxu0
      %4553 = vmatprep.subr.mxu0 0.0
      %4554 = vmatpush1.msra.mxu0 %v4480
      %4555 = vmatprep.subr.mxu0 0.0
      %4556 = vmatpush1.msra.mxu0 0.0
      %4557 = vmatprep.subr.mxu0 0.0
      %4558 = vmatpush1.msra.mxu0 0.0
      %4559 = vmatprep.subr.mxu0 0.0
      %4560 = vmatpush1.msra.mxu0 0.0
      %4561 = vmatprep.subr.mxu0 0.0
      %4562 = vmatpush1.msra.mxu0 0.0
      %4563 = vmatprep.subr.mxu0 0.0
      %4564 = vmatpush1.msra.mxu0 0.0
      %4565 = vmatprep.subr.mxu0 0.0
      %4566 = vmatpush1.msra.mxu0 0.0
      %4567 = vmatprep.subr.mxu0 0.0
      %4568 = vmatpush1.msra.mxu0 0.0
      %4569 = vmatprep.subr.mxu0 0.0
      %4570 = vmatpush1.msra.mxu0 0.0
      %4571 = vmatprep.subr.mxu0 0.0
      %4572 = vmatpush1.msra.mxu0 0.0
      %4573 = vmatprep.subr.mxu0 0.0
      %4574 = vmatpush1.msra.mxu0 0.0
      %4575 = vmatprep.subr.mxu0 0.0
      %4576 = vmatpush1.msra.mxu0 0.0
      %4577 = vmatprep.subr.mxu0 0.0
      %4578 = vmatpush1.msra.mxu0 0.0
      %4579 = vmatprep.subr.mxu0 0.0
      %4580 = vmatpush1.msra.mxu0 0.0
      %4581 = vmatprep.subr.mxu0 0.0
      %4582 = vmatpush1.msra.mxu0 0.0
      %4583 = vmatprep.subr.mxu0 0.0
      %4584 = vmatpush1.msra.mxu0 0.0
      %4585 = vmatprep.subr.mxu0 0.0
      %4586 = vmatpush1.msra.mxu0 0.0
      %4587 = vmatprep.subr.mxu0 0.0
      %4588 = vmatpush1.msra.mxu0 0.0
      %4589 = vmatprep.subr.mxu0 0.0
      %4590 = vmatpush1.msra.mxu0 0.0
      %4591 = vmatprep.subr.mxu0 0.0
      %4592 = vmatpush1.msra.mxu0 0.0
      %4593 = vmatprep.subr.mxu0 0.0
      %4594 = vmatpush1.msra.mxu0 0.0
      %4595 = vmatprep.subr.mxu0 0.0
      %4596 = vmatpush1.msra.mxu0 0.0
      %4597 = vmatprep.subr.mxu0 0.0
      %4598 = vmatpush1.msra.mxu0 0.0
      %4599 = vmatprep.subr.mxu0 0.0
      %4600 = vmatpush1.msra.mxu0 0.0
      %4601 = vmatprep.subr.mxu0 0.0
      %4602 = vmatpush1.msra.mxu0 0.0
      %4603 = vmatprep.subr.mxu0 0.0
      %4604 = vmatpush1.msra.mxu0 0.0
      %4605 = vmatprep.subr.mxu0 0.0
      %4606 = vmatpush1.msra.mxu0 0.0
      %4607 = vmatprep.subr.mxu0 0.0
      %4608 = vmatpush1.msra.mxu0 0.0
      %4609 = vmatprep.subr.mxu0 0.0
      %4610 = vmatpush1.msra.mxu0 0.0
      %4611 = vmatprep.subr.mxu0 0.0
      %4612 = vmatpush1.msra.mxu0 0.0
      %4613 = vmatprep.subr.mxu0 0.0
      %4614 = vmatpush1.msra.mxu0 0.0
      %4615 = vmatprep.subr.mxu0 0.0
      %4616 = vmatpush1.msra.mxu0 0.0
      %4617 = vmatprep.mubr.f32.mxu0 0.0
      %4618 = vmatmul.mubr.f32.gmra.mrb[0].mxu0 %v4474
      %v4619 = vpop.f32.mrb[0].mxu0
      %v4620 = vadd.f32 0.0, %v4619
      %v4621 = vpop.f32.mrb[0].mxu0
      %4622 = vdwg.mxu0
      %v4623 = vld [vmem:[#allocation2] sm:$0xff]
      %v4624 = vld [vmem:[#allocation2 + $0x8] sm:$0xff]
      %v4625 = vld [vmem:[#allocation2 + $0x10] sm:$0xff]
      %v4626 = vadd.f32 %v4623, %v4549
      %v4627 = vadd.f32 %v4624, %v4551
      %v4628 = vadd.f32 %v4625, %v4620
      %4629 = vst [vmem:[#allocation2] sm:$0xff] %v4626
      %4630 = vst [vmem:[#allocation2 + $0x8] sm:$0xff] %v4627
      %4631 = vst.msk [vmem:[#allocation2 + $0x10] sm:$0xff] %vm387, %v4628
      %v4632 = vld [vmem:[#allocation2] sm:$0xff]
      %v4633 = vld [vmem:[#allocation2 + $0x8] sm:$0xff]
      %v4634 = vld [vmem:[#allocation2 + $0x10] sm:$0xff]
      %v4635 = vld [vmem:[%s1] sm:$0x7]
      %v4637 = vlaneseq
      %v4638 = vshrl.u32 %v4637, 7
      %v4639 = vsub.s32 0, %v4638
      %v4640 = vrot.slane %v4635, %v4639
      %v4641 = vlaneseq
      %v4642 = vshrl.u32 %v4641, 7
      %v4643 = vsub.s32 1, %v4642
      %v4644 = vrot.slane %v4635, %v4643
      %v4645 = vlaneseq
      %v4646 = vshrl.u32 %v4645, 7
      %v4647 = vsub.s32 2, %v4646
      %v4648 = vrot.slane %v4635, %v4647
      %v4652 = vmul.f32 %v4632, %v4640
      %v4653 = vmul.f32 %v4633, %v4644
      %v4654 = vmul.f32 %v4634, %v4648
      %4655 = vst [vmem:[%s219] sm:$0xff] %v4652
      %4656 = vst [vmem:[%s219 + $0x8] sm:$0xff] %v4653
      %4657 = vst.msk [vmem:[%s219 + $0x10] sm:$0xff] %vm387, %v4654
      %v4658 = vld [vmem:[%s4] sm:$0xff]
      %v4659 = vadd.f32 %v4652, %v4653
      %v4660 = vsel %vm387, %v4654, 0.0
      %v4661 = vadd.f32 %v4659, %v4660
      %4662 = vadd.xlane.f32.xlu0 %v4661
      %v4663 = vpop.xlane.xlu0 %4662
      %v4664 = vadd.f32 %v4658, %v4663
      %vm4665 = vcmask 7168
      %4666 = vst.msk [vmem:[%s4] sm:$0xff] %vm4665, %v4664
      %v4667 = vld [vmem:[%s5] sm:$0xff]
      %v4668 = vmul.f32 %v4652, %v4652
      %v4669 = vmul.f32 %v4653, %v4653
      %v4670 = vmul.f32 %v4654, %v4654
      %v4671 = vadd.f32 %v4668, %v4669
      %v4672 = vsel %vm387, %v4670, 0.0
      %v4673 = vadd.f32 %v4671, %v4672
      %4674 = vadd.xlane.f32.xlu0 %v4673
      %v4675 = vpop.xlane.xlu0 %4674
      %v4676 = vadd.f32 %v4667, %v4675
      %4677 = vst.msk [vmem:[%s5] sm:$0xff] %vm4665, %v4676
      %p4678 = scmp.lt.s32.totalorder %s17, 1
      %s4679 = scalar_select %p4678, %s17, 1
      %s4680 = smul.addr %s4679, 3
      %s4681 = smul.addr %s4680, 8
      %s4682 = scalar_lea.vmem %s3, %s4681
      // Predicated region
      $region37: #{decoder_forward.2} parent=31 // pred_check
        %p4683 = pneg %p103
      $region38: #{decoder_forward.2} parent=31 // pred_check_branch
        %4685 = sbr.rel (%p4683) target = $region40
      $region39: #{decoder_forward.2} parent=31 // pred_region
        _
      $region40: #{decoder_forward.2} parent=31 // pred_fallthru
        _
      // Predicated region
      $region41: #{decoder_forward.2} parent=31 // pred_check
        %p4686 = pneg %p124
      $region42: #{decoder_forward.2} parent=31 // pred_check_branch
        %4688 = sbr.rel (%p4686) target = $region44
      $region43: #{decoder_forward.2} parent=31 // pred_region
        _
      $region44: #{decoder_forward.2} parent=31 // pred_fallthru
        _
      // Predicated region
      $region45: #{decoder_forward.2} parent=31 // pred_check
        %p4689 = pneg %p145
      $region46: #{decoder_forward.2} parent=31 // pred_check_branch
        %4691 = sbr.rel (%p4689) target = $region48
      $region47: #{decoder_forward.2} parent=31 // pred_region
        _
      $region48: #{decoder_forward.2} parent=31 // pred_fallthru
        _
      // Predicated region
      $region49: #{decoder_forward.2} parent=31 // pred_check
        %p4692 = pneg %p124
      $region50: #{decoder_forward.2} parent=31 // pred_check_branch
        %4694 = sbr.rel (%p4692) target = $region52
      $region51: #{decoder_forward.2} parent=31 // pred_region
        _
      $region52: #{decoder_forward.2} parent=31 // pred_fallthru
        _
      // Predicated region
      $region53: #{decoder_forward.2} parent=31 // pred_check
        %p4695 = pneg %p145
      $region54: #{decoder_forward.2} parent=31 // pred_check_branch
        %4697 = sbr.rel (%p4695) target = $region56
      $region55: #{decoder_forward.2} parent=31 // pred_region
        _
      $region56: #{decoder_forward.2} parent=31 // pred_fallthru
        _
    $region32: #{decoder_forward.2} parent=5 // pred_fallthru
      _
    %p4698 = scmp.le.s32.totalorder 2, %s12
    // Predicated region
    $region57: #{decoder_forward.2} parent=5 // pred_check
      %p4699 = pneg %p4698
    $region58: #{decoder_forward.2} parent=5 // pred_check_branch
      %4701 = sbr.rel (%p4699) target = $region60
    $region59: #{decoder_forward.2} parent=5 // pred_region
      %s4702 = ssub.s32 %s12, 2
      // Predicated region
      $region61: #{decoder_forward.2} parent=59 // pred_check
        %p4703 = pneg %p109
      $region62: #{decoder_forward.2} parent=59 // pred_check_branch
        %4705 = sbr.rel (%p4703) target = $region64
      $region63: #{decoder_forward.2} parent=59 // pred_region
        %p4706 = scmp.lt.s32.totalorder %s18, 1
        %s4707 = scalar_select %p4706, %s18, 1
        %s4708 = smul.addr %s4707, 3
        %s4709 = smul.addr %s4708, 8
        %s4710 = scalar_lea.vmem %s3, %s4709
      $region64: #{decoder_forward.2} parent=59 // pred_fallthru
        _
    $region60: #{decoder_forward.2} parent=5 // pred_fallthru
      _
  $region6: #{decoder_forward.2} parent=0 // loop_footer
    %s16 = sadd.s32 1, %s12
  $region7: #{decoder_forward.2} parent=0 // loop_footer_branch
    %11 = sbr.rel target = $region3
  $region8: #{decoder_forward.2} parent=0 // loop_exit
    _

</llo_original>
